<compile_context>
chip_gen: v7x
topology: tpu7x:2x2x1
jax: 0.10.0
libtpu: 0.0.40
codegen_flags: <defaults>
</compile_context>

<pallas_src>
import math

import jax
import jax.numpy as jnp
from jax.experimental import pallas as pl
from jax.experimental.pallas import tpu as pltpu

C = 20                 # out_channels per TransformerConv (heads = 1)
CONV_W = 4 * C         # fused q|k|v|skip width per conv = 80
NUM_LAYERS = 4
OUT_DIM = 2
BN_EPS = 1e-5

# vector-slab row layout (shape [VEC_ROWS, CONV_W], f32):
#   row 2*l + c : fused bias of layer l, conv c  =
#                 [bq/sqrt(d) | bk | bv*r*g | bs*r*g (+ BN shift for c==0)]
#   row 8       : out_fc bias (width 2, zero padded)
_ROW_OUTB = 2 * NUM_LAYERS
VEC_ROWS = 16


# ----------------------------------------------------------------------------
# kernel
# ----------------------------------------------------------------------------

def hpg_kernel(x_ref, adj_s_ref, adj_d_ref, w0_ref, wr_ref, wout_ref, vec_ref,
               out_ref):
    adj_s = adj_s_ref[...]
    adj_d = adj_d_ref[...]
    n = adj_s.shape[0]

    def attention(proj, adj):
        # proj: [N, 80] f32 = [q/sqrt(d) | k | v*(r*g) | skip*(r*g) (+BN shift)]
        q = proj[:, 0 * C:1 * C]
        k = proj[:, 1 * C:2 * C]
        v = proj[:, 2 * C:3 * C]
        skip = proj[:, 3 * C:4 * C]
        # scores[i, j] = q_i . k_j  -- contract last dims, no explicit transpose
        scores = jax.lax.dot_general(q, k, (((1,), (1,)), ((), ())),
                                     preferred_element_type=jnp.float32)
        masked = jnp.where(adj > 0, scores, -1e30)
        m = jnp.max(masked, axis=-1, keepdims=True)
        p = jnp.exp(masked - m) * adj                 # exact zeros off-edge
        denom = jnp.sum(p, axis=-1, keepdims=True)
        attn = p / jnp.where(denom > 0, denom, 1.0)   # isolated node -> 0 aggregate
        return jnp.dot(attn, v, preferred_element_type=jnp.float32) + skip

    x = x_ref[...]                                    # [N, F_in] bf16
    out_acc = jnp.zeros((n, OUT_DIM), jnp.float32)
    for l in range(NUM_LAYERS):                       # static unroll (4 layers)
        projs = []
        for c in range(2):                            # conv1 (same) / conv2 (diff)
            w = w0_ref[c] if l == 0 else wr_ref[l - 1, c]          # [F_in, 80] bf16
            b = vec_ref[2 * l + c:2 * l + c + 1, :]                # [1, 80] f32
            projs.append(jnp.dot(x, w, preferred_element_type=jnp.float32) + b)
        # blend ratios + inference BatchNorm are folded into v/skip weights,
        # so the layer output is simply the sum of both convs + LeakyReLU.
        y = attention(projs[0], adj_s) + attention(projs[1], adj_d)
        xf = jnp.where(y > 0, y, 0.01 * y)            # LeakyReLU(0.01), f32
        # accumulate the final Linear(80,2) layer-slice instead of concatenating
        out_acc = out_acc + jnp.dot(xf, wout_ref[l],
                                    preferred_element_type=jnp.float32)
        x = xf.astype(x_ref.dtype)                    # bf16 input for next layer
    out_ref[...] = out_acc + vec_ref[_ROW_OUTB:_ROW_OUTB + 1, 0:OUT_DIM]


# ----------------------------------------------------------------------------
# one-time parameter packing (call OUTSIDE the per-call jit and reuse)
# ----------------------------------------------------------------------------

def pack_params(params, *, weight_dtype=jnp.bfloat16):
    """Packs ~40 HPG parameter arrays into 4 kernel slabs.

    Folds at pack time:
      * 1/sqrt(d) into the q projection,
      * blend ratios r1=w1/(w1+w2), r2=w2/(w1+w2) and the inference BatchNorm
        affine (g = gamma*rsqrt(var+eps), shift = beta - mean*g) into the
        v / skip projections (columns and biases); the BN shift is added to
        conv1's skip bias.
    Returns (w0 [2,F_in,80], wr [3,2,20,80], wout [4,20,2], vec [16,80]).
    """
    scale = 1.0 / math.sqrt(C)
    w0_convs, wr_convs, bias_rows = [], [], []
    for l in range(NUM_LAYERS):
        bn = params["bns"][l]
        g = bn["gamma"] * jax.lax.rsqrt(bn["var"] + BN_EPS)
        bn_shift = bn["beta"] - bn["mean"] * g
        w1, w2 = params["weights1"][l], params["weights2"][l]
        ratios = (w1 / (w1 + w2), w2 / (w1 + w2))
        for c, convs in enumerate((params["convs1"], params["convs2"])):
            cp = convs[l]
            rg = ratios[c] * g
            bs = cp["bs"] * rg + (bn_shift if c == 0 else 0.0)
            w = jnp.concatenate(
                [cp["wq"] * scale, cp["wk"], cp["wv"] * rg, cp["ws"] * rg], axis=1)
            b = jnp.concatenate([cp["bq"] * scale, cp["bk"], cp["bv"] * rg, bs])
            (w0_convs if l == 0 else wr_convs).append(w)
            bias_rows.append(b.astype(jnp.float32))
    w0 = jnp.stack(w0_convs).astype(weight_dtype)                       # [2, F_in, 80]
    wr = jnp.stack(wr_convs).reshape(
        NUM_LAYERS - 1, 2, C, CONV_W).astype(weight_dtype)              # [3, 2, 20, 80]
    wout = params["out_w"].reshape(NUM_LAYERS, C, OUT_DIM).astype(jnp.float32)
    bias_rows.append(jnp.pad(params["out_b"].astype(jnp.float32),
                             (0, CONV_W - OUT_DIM)))
    vec = jnp.stack(bias_rows)
    vec = jnp.pad(vec, ((0, VEC_ROWS - vec.shape[0]), (0, 0)))
    return w0, wr, wout, vec


def _dense_adj(edge_index, n):
    # adj[i, j] = 1 iff edge j -> i (softmax over in-neighbours, as in PyG)
    return jnp.zeros((n, n), jnp.float32).at[edge_index[1], edge_index[0]].set(1.0)


@jax.jit
def hpg_forward(features, same_index, diff_index, w0, wr, wout, vec):
    n = features.shape[0]
    adj_s = _dense_adj(same_index, n)
    adj_d = _dense_adj(diff_index, n)
    x = features.astype(w0.dtype)
    f_in = x.shape[1]

    flops = (2 * n * f_in * 2 * CONV_W                       # layer-0 projections
             + 2 * n * C * 2 * CONV_W * (NUM_LAYERS - 1)     # layers 1..3 projections
             + NUM_LAYERS * 2 * 4 * n * n * C                # scores + aggregation
             + NUM_LAYERS * 2 * n * C * OUT_DIM)             # output accumulation
    bytes_accessed = (x.size * x.dtype.itemsize + w0.size * w0.dtype.itemsize
                      + wr.size * wr.dtype.itemsize + wout.size * 4 + vec.size * 4
                      + 2 * n * n * 4 + n * OUT_DIM * 4)

    args = (x, adj_s, adj_d, w0, wr, wout, vec)
    return pl.pallas_call(
        hpg_kernel,
        out_shape=jax.ShapeDtypeStruct((n, OUT_DIM), jnp.float32),
        in_specs=[pl.BlockSpec(memory_space=pltpu.MemorySpace.VMEM)] * len(args),
        out_specs=pl.BlockSpec(memory_space=pltpu.MemorySpace.VMEM),
        cost_estimate=pl.CostEstimate(flops=flops,
                                      transcendentals=NUM_LAYERS * 2 * n * n,
                                      bytes_accessed=bytes_accessed),
    )(*args)


# ----------------------------------------------------------------------------
# pure-JAX references for validation
# ----------------------------------------------------------------------------

_HI = jax.lax.Precision.HIGHEST


def hpg_packed_ref(features, same_index, diff_index, w0, wr, wout, vec):
    """Pure-JAX mirror of the kernel math (same packing, same dtypes)."""
    n = features.shape[0]
    adj_s = _dense_adj(same_index, n)
    adj_d = _dense_adj(diff_index, n)

    def attention(proj, adj):
        q, k = proj[:, :C], proj[:, C:2 * C]
        v, skip = proj[:, 2 * C:3 * C], proj[:, 3 * C:]
        scores = jnp.dot(q, k.T, precision=_HI)
        masked = jnp.where(adj > 0, scores, -1e30)
        p = jnp.exp(masked - jnp.max(masked, axis=-1, keepdims=True)) * adj
        denom = jnp.sum(p, axis=-1, keepdims=True)
        attn = p / jnp.where(denom > 0, denom, 1.0)
        return jnp.dot(attn, v, precision=_HI) + skip

    x = features.astype(w0.dtype)
    out = jnp.zeros((n, OUT_DIM), jnp.float32)
    for l in range(NUM_LAYERS):
        projs = []
        for c in range(2):
            w = w0[c] if l == 0 else wr[l - 1, c]
            projs.append(jnp.dot(x, w, preferred_element_type=jnp.float32,
                                 precision=_HI) + vec[2 * l + c])
        y = attention(projs[0], adj_s) + attention(projs[1], adj_d)
        xf = jnp.where(y > 0, y, 0.01 * y)
        out = out + jnp.dot(xf, wout[l], preferred_element_type=jnp.float32,
                            precision=_HI)
        x = xf.astype(w0.dtype)
    return out + vec[_ROW_OUTB, :OUT_DIM]


def _transformer_conv_ref(x, adj, cp):
    q = jnp.dot(x, cp["wq"], precision=_HI) + cp["bq"]
    k = jnp.dot(x, cp["wk"], precision=_HI) + cp["bk"]
    v = jnp.dot(x, cp["wv"], precision=_HI) + cp["bv"]
    skip = jnp.dot(x, cp["ws"], precision=_HI) + cp["bs"]
    scores = jnp.dot(q, k.T, precision=_HI) / math.sqrt(C)
    masked = jnp.where(adj > 0, scores, -1e30)
    p = jnp.exp(masked - jnp.max(masked, axis=-1, keepdims=True)) * adj
    denom = jnp.sum(p, axis=-1, keepdims=True)
    attn = p / jnp.where(denom > 0, denom, 1.0)
    return jnp.dot(attn, v, precision=_HI) + skip


def hpg_ref(features, same_index, diff_index, p):
    """Direct f32 mirror of the PyTorch module (inference)."""
    n = features.shape[0]
    adj_s = _dense_adj(same_index, n)
    adj_d = _dense_adj(diff_index, n)
    x = features
    fc = []
    for l in range(NUM_LAYERS):
        x1 = _transformer_conv_ref(x, adj_s, p["convs1"][l])
        x2 = _transformer_conv_ref(x, adj_d, p["convs2"][l])
        w1, w2 = p["weights1"][l], p["weights2"][l]
        x = (w1 / (w1 + w2)) * x1 + (w2 / (w1 + w2)) * x2
        bn = p["bns"][l]
        x = (x - bn["mean"]) * jax.lax.rsqrt(bn["var"] + BN_EPS) * bn["gamma"] + bn["beta"]
        x = jnp.where(x > 0, x, 0.01 * x)
        fc.append(x)
    fc = jnp.concatenate(fc, axis=-1)
    return jnp.dot(fc, p["out_w"], precision=_HI) + p["out_b"]


def init_params(key, in_dim):
    s = 0.05

    def conv_params(k, fin):
        ks = jax.random.split(k, 8)

        def w(kk, shape):
            return (s * jax.random.normal(kk, shape)).astype(jnp.float32)

        return dict(wq=w(ks[0], (fin, C)), bq=w(ks[1], (C,)),
                    wk=w(ks[2], (fin, C)), bk=w(ks[3], (C,)),
                    wv=w(ks[4], (fin, C)), bv=w(ks[5], (C,)),
                    ws=w(ks[6], (fin, C)), bs=w(ks[7], (C,)))

    def bn_params(k):
        k1, k2, k3, k4 = jax.random.split(k, 4)
        return dict(
            gamma=(1.0 + 0.1 * jax.random.normal(k1, (C,))).astype(jnp.float32),
            beta=(0.1 * jax.random.normal(k2, (C,))).astype(jnp.float32),
            mean=(0.1 * jax.random.normal(k3, (C,))).astype(jnp.float32),
            var=(1.0 + 0.1 * jax.random.uniform(k4, (C,))).astype(jnp.float32),
        )

    keys = jax.random.split(key, 3 * NUM_LAYERS + 1)
    convs1, convs2, bns = [], [], []
    for l in range(NUM_LAYERS):
        fin = in_dim if l == 0 else C
        convs1.append(conv_params(keys[2 * l], fin))
        convs2.append(conv_params(keys[2 * l + 1], fin))
        bns.append(bn_params(keys[2 * NUM_LAYERS + l]))
    ko1, ko2 = jax.random.split(keys[-1])
    return dict(
        convs1=convs1, convs2=convs2, bns=bns,
        weights1=jnp.full((NUM_LAYERS,), 0.8, jnp.float32),
        weights2=jnp.full((NUM_LAYERS,), 0.2, jnp.float32),
        out_w=(s * jax.random.normal(ko1, (NUM_LAYERS * C, OUT_DIM))).astype(jnp.float32),
        out_b=(s * jax.random.normal(ko2, (OUT_DIM,))).astype(jnp.float32),
    )


if __name__ == "__main__":
    N = 16            # number of graph nodes
    IN_DIM = 2000     # input feature dim (as in the PyTorch module)
    E = 48            # edges per graph view

    key = jax.random.PRNGKey(0)
    kx, ks1, ks2, kd1, kd2, kp = jax.random.split(key, 6)

    features = jax.random.normal(kx, (N, IN_DIM), dtype=jnp.float32)
    same_index = jnp.stack([jax.random.randint(ks1, (E,), 0, N),
                            jax.random.randint(ks2, (E,), 0, N)]).astype(jnp.int32)
    diff_index = jnp.stack([jax.random.randint(kd1, (E,), 0, N),
                            jax.random.randint(kd2, (E,), 0, N)]).astype(jnp.int32)

    params = init_params(kp, IN_DIM)

    # Pack ONCE outside the per-call jit (review item 1); bf16 weights (item 2).
    packed = pack_params(params, weight_dtype=jnp.bfloat16)

    out = hpg_forward(features, same_index, diff_index, *packed)
    out = jax.block_until_ready(out)
    assert out.shape == (N, OUT_DIM)
    assert bool(jnp.all(jnp.isfinite(out)))

    # (a) kernel vs precision-matched pure-JAX mirror of the packed/bf16 math.
    ref_match = hpg_packed_ref(features, same_index, diff_index, *packed)
    assert bool(jnp.allclose(out, ref_match, atol=2e-3, rtol=2e-3))

    # (b) pack-time folding (BN / blend / 1/sqrt(d)) validated in full f32
    #     against a direct mirror of the PyTorch module.
    packed_f32 = pack_params(params, weight_dtype=jnp.float32)
    ref_fold = hpg_packed_ref(features, same_index, diff_index, *packed_f32)
    ref_full = hpg_ref(features, same_index, diff_index, params)
    assert bool(jnp.allclose(ref_fold, ref_full, atol=2e-3, rtol=2e-3))

    print("KERNEL_OK")
</pallas_src>

<mosaic_0001>
module attributes {stable_mosaic.version = 11 : i64} {
  func.func @hpg_kernel(%arg0: memref<16x2000xbf16, #tpu.memory_space<vmem>>, %arg1: memref<16x16xf32, #tpu.memory_space<vmem>>, %arg2: memref<16x16xf32, #tpu.memory_space<vmem>>, %arg3: memref<2x2000x80xbf16, #tpu.memory_space<vmem>>, %arg4: memref<3x2x20x80xbf16, #tpu.memory_space<vmem>>, %arg5: memref<4x20x2xf32, #tpu.memory_space<vmem>>, %arg6: memref<16x80xf32, #tpu.memory_space<vmem>>, %arg7: memref<16x2xf32, #tpu.memory_space<vmem>>) attributes {dimension_semantics = [], scalar_prefetch = 0 : i64, scratch_operands = 0 : i64, tpu.core_type = #tpu.core_type<tc>} {
    %c0 = arith.constant 0 : index
    %c0_0 = arith.constant 0 : index
    %0 = vector.load %arg1[%c0, %c0_0] : memref<16x16xf32, #tpu.memory_space<vmem>>, vector<16x16xf32>
    %c0_1 = arith.constant 0 : index
    %c0_2 = arith.constant 0 : index
    %1 = vector.load %arg2[%c0_1, %c0_2] : memref<16x16xf32, #tpu.memory_space<vmem>>, vector<16x16xf32>
    %c0_3 = arith.constant 0 : index
    %c0_4 = arith.constant 0 : index
    %2 = vector.load %arg0[%c0_3, %c0_4] : memref<16x2000xbf16, #tpu.memory_space<vmem>>, vector<16x2000xbf16>
    %cst = arith.constant 0.000000e+00 : f32
    %3 = vector.broadcast %cst : f32 to vector<16x2xf32>
    %c0_5 = arith.constant 0 : index
    %c0_6 = arith.constant 0 : index
    %c0_7 = arith.constant 0 : index
    %4 = vector.load %arg3[%c0_5, %c0_6, %c0_7] : memref<2x2000x80xbf16, #tpu.memory_space<vmem>>, vector<1x2000x80xbf16>
    %5 = vector.shape_cast %4 : vector<1x2000x80xbf16> to vector<2000x80xbf16>
    %c0_8 = arith.constant 0 : index
    %c0_9 = arith.constant 0 : index
    %6 = vector.load %arg6[%c0_8, %c0_9] : memref<16x80xf32, #tpu.memory_space<vmem>>, vector<1x80xf32>
    %cst_10 = arith.constant dense<0.000000e+00> : vector<16x80xf32>
    %7 = tpu.matmul %2, %5, %cst_10 {dimension_numbers = #tpu.dot_dimension_numbers<[1], [0], [0], [1], [0, 0, 1, 1], [], []>} : vector<16x2000xbf16>, vector<2000x80xbf16>, vector<16x80xf32> -> vector<16x80xf32>
    %8 = vector.broadcast %6 : vector<1x80xf32> to vector<16x80xf32>
    %9 = arith.addf %7, %8 : vector<16x80xf32>
    %c1 = arith.constant 1 : index
    %c0_11 = arith.constant 0 : index
    %c0_12 = arith.constant 0 : index
    %10 = vector.load %arg3[%c1, %c0_11, %c0_12] : memref<2x2000x80xbf16, #tpu.memory_space<vmem>>, vector<1x2000x80xbf16>
    %11 = vector.shape_cast %10 : vector<1x2000x80xbf16> to vector<2000x80xbf16>
    %c1_13 = arith.constant 1 : index
    %c0_14 = arith.constant 0 : index
    %12 = vector.load %arg6[%c1_13, %c0_14] : memref<16x80xf32, #tpu.memory_space<vmem>>, vector<1x80xf32>
    %cst_15 = arith.constant dense<0.000000e+00> : vector<16x80xf32>
    %13 = tpu.matmul %2, %11, %cst_15 {dimension_numbers = #tpu.dot_dimension_numbers<[1], [0], [0], [1], [0, 0, 1, 1], [], []>} : vector<16x2000xbf16>, vector<2000x80xbf16>, vector<16x80xf32> -> vector<16x80xf32>
    %14 = vector.broadcast %12 : vector<1x80xf32> to vector<16x80xf32>
    %15 = arith.addf %13, %14 : vector<16x80xf32>
    %16 = vector.extract_strided_slice %9 {offsets = [0, 0], sizes = [16, 20], strides = [1, 1]} : vector<16x80xf32> to vector<16x20xf32>
    %17 = vector.extract_strided_slice %9 {offsets = [0, 20], sizes = [16, 20], strides = [1, 1]} : vector<16x80xf32> to vector<16x20xf32>
    %18 = vector.extract_strided_slice %9 {offsets = [0, 40], sizes = [16, 20], strides = [1, 1]} : vector<16x80xf32> to vector<16x20xf32>
    %19 = vector.extract_strided_slice %9 {offsets = [0, 60], sizes = [16, 20], strides = [1, 1]} : vector<16x80xf32> to vector<16x20xf32>
    %cst_16 = arith.constant dense<0.000000e+00> : vector<16x16xf32>
    %20 = tpu.matmul %16, %17, %cst_16 {dimension_numbers = #tpu.dot_dimension_numbers<[1], [1], [0], [0], [0, 0, 1, 0], [], []>} : vector<16x20xf32>, vector<16x20xf32>, vector<16x16xf32> -> vector<16x16xf32>
    %cst_17 = arith.constant 0.000000e+00 : f32
    %21 = vector.broadcast %cst_17 : f32 to vector<16x16xf32>
    %22 = arith.cmpf ogt, %0, %21 : vector<16x16xf32>
    %cst_18 = arith.constant -1.000000e+30 : f32
    %23 = vector.broadcast %cst_18 : f32 to vector<16x16xf32>
    %24 = arith.select %22, %20, %23 : vector<16x16xi1>, vector<16x16xf32>
    %cst_19 = arith.constant dense<0xFF800000> : vector<16xf32>
    %25 = vector.multi_reduction <maximumf>, %24, %cst_19 [1] : vector<16x16xf32> to vector<16xf32>
    %26 = vector.shape_cast %25 : vector<16xf32> to vector<16x1xf32>
    %27 = vector.broadcast %26 : vector<16x1xf32> to vector<16x16xf32>
    %28 = arith.subf %24, %27 : vector<16x16xf32>
    %29 = math.exp %28 : vector<16x16xf32>
    %30 = arith.mulf %29, %0 : vector<16x16xf32>
    %cst_20 = arith.constant dense<0.000000e+00> : vector<16xf32>
    %31 = vector.multi_reduction <add>, %30, %cst_20 [1] : vector<16x16xf32> to vector<16xf32>
    %32 = vector.shape_cast %31 : vector<16xf32> to vector<16x1xf32>
    %cst_21 = arith.constant 0.000000e+00 : f32
    %33 = vector.broadcast %cst_21 : f32 to vector<16x1xf32>
    %34 = arith.cmpf ogt, %32, %33 : vector<16x1xf32>
    %cst_22 = arith.constant 1.000000e+00 : f32
    %35 = vector.broadcast %cst_22 : f32 to vector<16x1xf32>
    %36 = arith.select %34, %32, %35 : vector<16x1xi1>, vector<16x1xf32>
    %37 = vector.broadcast %36 : vector<16x1xf32> to vector<16x16xf32>
    %38 = arith.divf %30, %37 : vector<16x16xf32>
    %cst_23 = arith.constant dense<0.000000e+00> : vector<16x20xf32>
    %39 = tpu.matmul %38, %18, %cst_23 {dimension_numbers = #tpu.dot_dimension_numbers<[1], [0], [0], [1], [0, 0, 1, 1], [], []>} : vector<16x16xf32>, vector<16x20xf32>, vector<16x20xf32> -> vector<16x20xf32>
    %40 = arith.addf %39, %19 : vector<16x20xf32>
    %41 = vector.extract_strided_slice %15 {offsets = [0, 0], sizes = [16, 20], strides = [1, 1]} : vector<16x80xf32> to vector<16x20xf32>
    %42 = vector.extract_strided_slice %15 {offsets = [0, 20], sizes = [16, 20], strides = [1, 1]} : vector<16x80xf32> to vector<16x20xf32>
    %43 = vector.extract_strided_slice %15 {offsets = [0, 40], sizes = [16, 20], strides = [1, 1]} : vector<16x80xf32> to vector<16x20xf32>
    %44 = vector.extract_strided_slice %15 {offsets = [0, 60], sizes = [16, 20], strides = [1, 1]} : vector<16x80xf32> to vector<16x20xf32>
    %cst_24 = arith.constant dense<0.000000e+00> : vector<16x16xf32>
    %45 = tpu.matmul %41, %42, %cst_24 {dimension_numbers = #tpu.dot_dimension_numbers<[1], [1], [0], [0], [0, 0, 1, 0], [], []>} : vector<16x20xf32>, vector<16x20xf32>, vector<16x16xf32> -> vector<16x16xf32>
    %cst_25 = arith.constant 0.000000e+00 : f32
    %46 = vector.broadcast %cst_25 : f32 to vector<16x16xf32>
    %47 = arith.cmpf ogt, %1, %46 : vector<16x16xf32>
    %cst_26 = arith.constant -1.000000e+30 : f32
    %48 = vector.broadcast %cst_26 : f32 to vector<16x16xf32>
    %49 = arith.select %47, %45, %48 : vector<16x16xi1>, vector<16x16xf32>
    %cst_27 = arith.constant dense<0xFF800000> : vector<16xf32>
    %50 = vector.multi_reduction <maximumf>, %49, %cst_27 [1] : vector<16x16xf32> to vector<16xf32>
    %51 = vector.shape_cast %50 : vector<16xf32> to vector<16x1xf32>
    %52 = vector.broadcast %51 : vector<16x1xf32> to vector<16x16xf32>
    %53 = arith.subf %49, %52 : vector<16x16xf32>
    %54 = math.exp %53 : vector<16x16xf32>
    %55 = arith.mulf %54, %1 : vector<16x16xf32>
    %cst_28 = arith.constant dense<0.000000e+00> : vector<16xf32>
    %56 = vector.multi_reduction <add>, %55, %cst_28 [1] : vector<16x16xf32> to vector<16xf32>
    %57 = vector.shape_cast %56 : vector<16xf32> to vector<16x1xf32>
    %cst_29 = arith.constant 0.000000e+00 : f32
    %58 = vector.broadcast %cst_29 : f32 to vector<16x1xf32>
    %59 = arith.cmpf ogt, %57, %58 : vector<16x1xf32>
    %cst_30 = arith.constant 1.000000e+00 : f32
    %60 = vector.broadcast %cst_30 : f32 to vector<16x1xf32>
    %61 = arith.select %59, %57, %60 : vector<16x1xi1>, vector<16x1xf32>
    %62 = vector.broadcast %61 : vector<16x1xf32> to vector<16x16xf32>
    %63 = arith.divf %55, %62 : vector<16x16xf32>
    %cst_31 = arith.constant dense<0.000000e+00> : vector<16x20xf32>
    %64 = tpu.matmul %63, %43, %cst_31 {dimension_numbers = #tpu.dot_dimension_numbers<[1], [0], [0], [1], [0, 0, 1, 1], [], []>} : vector<16x16xf32>, vector<16x20xf32>, vector<16x20xf32> -> vector<16x20xf32>
    %65 = arith.addf %64, %44 : vector<16x20xf32>
    %66 = arith.addf %40, %65 : vector<16x20xf32>
    %cst_32 = arith.constant 0.000000e+00 : f32
    %67 = vector.broadcast %cst_32 : f32 to vector<16x20xf32>
    %68 = arith.cmpf ogt, %66, %67 : vector<16x20xf32>
    %cst_33 = arith.constant 0.00999999977 : f32
    %69 = vector.broadcast %cst_33 : f32 to vector<16x20xf32>
    %70 = arith.mulf %69, %66 : vector<16x20xf32>
    %71 = arith.select %68, %66, %70 : vector<16x20xi1>, vector<16x20xf32>
    %c0_34 = arith.constant 0 : index
    %c0_35 = arith.constant 0 : index
    %c0_36 = arith.constant 0 : index
    %72 = vector.load %arg5[%c0_34, %c0_35, %c0_36] : memref<4x20x2xf32, #tpu.memory_space<vmem>>, vector<1x20x2xf32>
    %73 = vector.shape_cast %72 : vector<1x20x2xf32> to vector<20x2xf32>
    %cst_37 = arith.constant dense<0.000000e+00> : vector<16x2xf32>
    %74 = tpu.matmul %71, %73, %cst_37 {dimension_numbers = #tpu.dot_dimension_numbers<[1], [0], [0], [1], [0, 0, 1, 1], [], []>} : vector<16x20xf32>, vector<20x2xf32>, vector<16x2xf32> -> vector<16x2xf32>
    %75 = arith.addf %3, %74 : vector<16x2xf32>
    %76 = arith.truncf %71 : vector<16x20xf32> to vector<16x20xbf16>
    %c0_38 = arith.constant 0 : index
    %c0_39 = arith.constant 0 : index
    %c0_40 = arith.constant 0 : index
    %c0_41 = arith.constant 0 : index
    %77 = vector.load %arg4[%c0_38, %c0_39, %c0_40, %c0_41] : memref<3x2x20x80xbf16, #tpu.memory_space<vmem>>, vector<1x1x20x80xbf16>
    %78 = vector.shape_cast %77 : vector<1x1x20x80xbf16> to vector<20x80xbf16>
    %c2 = arith.constant 2 : index
    %c0_42 = arith.constant 0 : index
    %79 = vector.load %arg6[%c2, %c0_42] : memref<16x80xf32, #tpu.memory_space<vmem>>, vector<1x80xf32>
    %cst_43 = arith.constant dense<0.000000e+00> : vector<16x80xf32>
    %80 = tpu.matmul %76, %78, %cst_43 {dimension_numbers = #tpu.dot_dimension_numbers<[1], [0], [0], [1], [0, 0, 1, 1], [], []>} : vector<16x20xbf16>, vector<20x80xbf16>, vector<16x80xf32> -> vector<16x80xf32>
    %81 = vector.broadcast %79 : vector<1x80xf32> to vector<16x80xf32>
    %82 = arith.addf %80, %81 : vector<16x80xf32>
    %c0_44 = arith.constant 0 : index
    %c1_45 = arith.constant 1 : index
    %c0_46 = arith.constant 0 : index
    %c0_47 = arith.constant 0 : index
    %83 = vector.load %arg4[%c0_44, %c1_45, %c0_46, %c0_47] : memref<3x2x20x80xbf16, #tpu.memory_space<vmem>>, vector<1x1x20x80xbf16>
    %84 = vector.shape_cast %83 : vector<1x1x20x80xbf16> to vector<20x80xbf16>
    %c3 = arith.constant 3 : index
    %c0_48 = arith.constant 0 : index
    %85 = vector.load %arg6[%c3, %c0_48] : memref<16x80xf32, #tpu.memory_space<vmem>>, vector<1x80xf32>
    %cst_49 = arith.constant dense<0.000000e+00> : vector<16x80xf32>
    %86 = tpu.matmul %76, %84, %cst_49 {dimension_numbers = #tpu.dot_dimension_numbers<[1], [0], [0], [1], [0, 0, 1, 1], [], []>} : vector<16x20xbf16>, vector<20x80xbf16>, vector<16x80xf32> -> vector<16x80xf32>
    %87 = vector.broadcast %85 : vector<1x80xf32> to vector<16x80xf32>
    %88 = arith.addf %86, %87 : vector<16x80xf32>
    %89 = vector.extract_strided_slice %82 {offsets = [0, 0], sizes = [16, 20], strides = [1, 1]} : vector<16x80xf32> to vector<16x20xf32>
    %90 = vector.extract_strided_slice %82 {offsets = [0, 20], sizes = [16, 20], strides = [1, 1]} : vector<16x80xf32> to vector<16x20xf32>
    %91 = vector.extract_strided_slice %82 {offsets = [0, 40], sizes = [16, 20], strides = [1, 1]} : vector<16x80xf32> to vector<16x20xf32>
    %92 = vector.extract_strided_slice %82 {offsets = [0, 60], sizes = [16, 20], strides = [1, 1]} : vector<16x80xf32> to vector<16x20xf32>
    %cst_50 = arith.constant dense<0.000000e+00> : vector<16x16xf32>
    %93 = tpu.matmul %89, %90, %cst_50 {dimension_numbers = #tpu.dot_dimension_numbers<[1], [1], [0], [0], [0, 0, 1, 0], [], []>} : vector<16x20xf32>, vector<16x20xf32>, vector<16x16xf32> -> vector<16x16xf32>
    %cst_51 = arith.constant 0.000000e+00 : f32
    %94 = vector.broadcast %cst_51 : f32 to vector<16x16xf32>
    %95 = arith.cmpf ogt, %0, %94 : vector<16x16xf32>
    %cst_52 = arith.constant -1.000000e+30 : f32
    %96 = vector.broadcast %cst_52 : f32 to vector<16x16xf32>
    %97 = arith.select %95, %93, %96 : vector<16x16xi1>, vector<16x16xf32>
    %cst_53 = arith.constant dense<0xFF800000> : vector<16xf32>
    %98 = vector.multi_reduction <maximumf>, %97, %cst_53 [1] : vector<16x16xf32> to vector<16xf32>
    %99 = vector.shape_cast %98 : vector<16xf32> to vector<16x1xf32>
    %100 = vector.broadcast %99 : vector<16x1xf32> to vector<16x16xf32>
    %101 = arith.subf %97, %100 : vector<16x16xf32>
    %102 = math.exp %101 : vector<16x16xf32>
    %103 = arith.mulf %102, %0 : vector<16x16xf32>
    %cst_54 = arith.constant dense<0.000000e+00> : vector<16xf32>
    %104 = vector.multi_reduction <add>, %103, %cst_54 [1] : vector<16x16xf32> to vector<16xf32>
    %105 = vector.shape_cast %104 : vector<16xf32> to vector<16x1xf32>
    %cst_55 = arith.constant 0.000000e+00 : f32
    %106 = vector.broadcast %cst_55 : f32 to vector<16x1xf32>
    %107 = arith.cmpf ogt, %105, %106 : vector<16x1xf32>
    %cst_56 = arith.constant 1.000000e+00 : f32
    %108 = vector.broadcast %cst_56 : f32 to vector<16x1xf32>
    %109 = arith.select %107, %105, %108 : vector<16x1xi1>, vector<16x1xf32>
    %110 = vector.broadcast %109 : vector<16x1xf32> to vector<16x16xf32>
    %111 = arith.divf %103, %110 : vector<16x16xf32>
    %cst_57 = arith.constant dense<0.000000e+00> : vector<16x20xf32>
    %112 = tpu.matmul %111, %91, %cst_57 {dimension_numbers = #tpu.dot_dimension_numbers<[1], [0], [0], [1], [0, 0, 1, 1], [], []>} : vector<16x16xf32>, vector<16x20xf32>, vector<16x20xf32> -> vector<16x20xf32>
    %113 = arith.addf %112, %92 : vector<16x20xf32>
    %114 = vector.extract_strided_slice %88 {offsets = [0, 0], sizes = [16, 20], strides = [1, 1]} : vector<16x80xf32> to vector<16x20xf32>
    %115 = vector.extract_strided_slice %88 {offsets = [0, 20], sizes = [16, 20], strides = [1, 1]} : vector<16x80xf32> to vector<16x20xf32>
    %116 = vector.extract_strided_slice %88 {offsets = [0, 40], sizes = [16, 20], strides = [1, 1]} : vector<16x80xf32> to vector<16x20xf32>
    %117 = vector.extract_strided_slice %88 {offsets = [0, 60], sizes = [16, 20], strides = [1, 1]} : vector<16x80xf32> to vector<16x20xf32>
    %cst_58 = arith.constant dense<0.000000e+00> : vector<16x16xf32>
    %118 = tpu.matmul %114, %115, %cst_58 {dimension_numbers = #tpu.dot_dimension_numbers<[1], [1], [0], [0], [0, 0, 1, 0], [], []>} : vector<16x20xf32>, vector<16x20xf32>, vector<16x16xf32> -> vector<16x16xf32>
    %cst_59 = arith.constant 0.000000e+00 : f32
    %119 = vector.broadcast %cst_59 : f32 to vector<16x16xf32>
    %120 = arith.cmpf ogt, %1, %119 : vector<16x16xf32>
    %cst_60 = arith.constant -1.000000e+30 : f32
    %121 = vector.broadcast %cst_60 : f32 to vector<16x16xf32>
    %122 = arith.select %120, %118, %121 : vector<16x16xi1>, vector<16x16xf32>
    %cst_61 = arith.constant dense<0xFF800000> : vector<16xf32>
    %123 = vector.multi_reduction <maximumf>, %122, %cst_61 [1] : vector<16x16xf32> to vector<16xf32>
    %124 = vector.shape_cast %123 : vector<16xf32> to vector<16x1xf32>
    %125 = vector.broadcast %124 : vector<16x1xf32> to vector<16x16xf32>
    %126 = arith.subf %122, %125 : vector<16x16xf32>
    %127 = math.exp %126 : vector<16x16xf32>
    %128 = arith.mulf %127, %1 : vector<16x16xf32>
    %cst_62 = arith.constant dense<0.000000e+00> : vector<16xf32>
    %129 = vector.multi_reduction <add>, %128, %cst_62 [1] : vector<16x16xf32> to vector<16xf32>
    %130 = vector.shape_cast %129 : vector<16xf32> to vector<16x1xf32>
    %cst_63 = arith.constant 0.000000e+00 : f32
    %131 = vector.broadcast %cst_63 : f32 to vector<16x1xf32>
    %132 = arith.cmpf ogt, %130, %131 : vector<16x1xf32>
    %cst_64 = arith.constant 1.000000e+00 : f32
    %133 = vector.broadcast %cst_64 : f32 to vector<16x1xf32>
    %134 = arith.select %132, %130, %133 : vector<16x1xi1>, vector<16x1xf32>
    %135 = vector.broadcast %134 : vector<16x1xf32> to vector<16x16xf32>
    %136 = arith.divf %128, %135 : vector<16x16xf32>
    %cst_65 = arith.constant dense<0.000000e+00> : vector<16x20xf32>
    %137 = tpu.matmul %136, %116, %cst_65 {dimension_numbers = #tpu.dot_dimension_numbers<[1], [0], [0], [1], [0, 0, 1, 1], [], []>} : vector<16x16xf32>, vector<16x20xf32>, vector<16x20xf32> -> vector<16x20xf32>
    %138 = arith.addf %137, %117 : vector<16x20xf32>
    %139 = arith.addf %113, %138 : vector<16x20xf32>
    %cst_66 = arith.constant 0.000000e+00 : f32
    %140 = vector.broadcast %cst_66 : f32 to vector<16x20xf32>
    %141 = arith.cmpf ogt, %139, %140 : vector<16x20xf32>
    %cst_67 = arith.constant 0.00999999977 : f32
    %142 = vector.broadcast %cst_67 : f32 to vector<16x20xf32>
    %143 = arith.mulf %142, %139 : vector<16x20xf32>
    %144 = arith.select %141, %139, %143 : vector<16x20xi1>, vector<16x20xf32>
    %c1_68 = arith.constant 1 : index
    %c0_69 = arith.constant 0 : index
    %c0_70 = arith.constant 0 : index
    %145 = vector.load %arg5[%c1_68, %c0_69, %c0_70] : memref<4x20x2xf32, #tpu.memory_space<vmem>>, vector<1x20x2xf32>
    %146 = vector.shape_cast %145 : vector<1x20x2xf32> to vector<20x2xf32>
    %cst_71 = arith.constant dense<0.000000e+00> : vector<16x2xf32>
    %147 = tpu.matmul %144, %146, %cst_71 {dimension_numbers = #tpu.dot_dimension_numbers<[1], [0], [0], [1], [0, 0, 1, 1], [], []>} : vector<16x20xf32>, vector<20x2xf32>, vector<16x2xf32> -> vector<16x2xf32>
    %148 = arith.addf %75, %147 : vector<16x2xf32>
    %149 = arith.truncf %144 : vector<16x20xf32> to vector<16x20xbf16>
    %c1_72 = arith.constant 1 : index
    %c0_73 = arith.constant 0 : index
    %c0_74 = arith.constant 0 : index
    %c0_75 = arith.constant 0 : index
    %150 = vector.load %arg4[%c1_72, %c0_73, %c0_74, %c0_75] : memref<3x2x20x80xbf16, #tpu.memory_space<vmem>>, vector<1x1x20x80xbf16>
    %151 = vector.shape_cast %150 : vector<1x1x20x80xbf16> to vector<20x80xbf16>
    %c4 = arith.constant 4 : index
    %c0_76 = arith.constant 0 : index
    %152 = vector.load %arg6[%c4, %c0_76] : memref<16x80xf32, #tpu.memory_space<vmem>>, vector<1x80xf32>
    %cst_77 = arith.constant dense<0.000000e+00> : vector<16x80xf32>
    %153 = tpu.matmul %149, %151, %cst_77 {dimension_numbers = #tpu.dot_dimension_numbers<[1], [0], [0], [1], [0, 0, 1, 1], [], []>} : vector<16x20xbf16>, vector<20x80xbf16>, vector<16x80xf32> -> vector<16x80xf32>
    %154 = vector.broadcast %152 : vector<1x80xf32> to vector<16x80xf32>
    %155 = arith.addf %153, %154 : vector<16x80xf32>
    %c1_78 = arith.constant 1 : index
    %c1_79 = arith.constant 1 : index
    %c0_80 = arith.constant 0 : index
    %c0_81 = arith.constant 0 : index
    %156 = vector.load %arg4[%c1_78, %c1_79, %c0_80, %c0_81] : memref<3x2x20x80xbf16, #tpu.memory_space<vmem>>, vector<1x1x20x80xbf16>
    %157 = vector.shape_cast %156 : vector<1x1x20x80xbf16> to vector<20x80xbf16>
    %c5 = arith.constant 5 : index
    %c0_82 = arith.constant 0 : index
    %158 = vector.load %arg6[%c5, %c0_82] : memref<16x80xf32, #tpu.memory_space<vmem>>, vector<1x80xf32>
    %cst_83 = arith.constant dense<0.000000e+00> : vector<16x80xf32>
    %159 = tpu.matmul %149, %157, %cst_83 {dimension_numbers = #tpu.dot_dimension_numbers<[1], [0], [0], [1], [0, 0, 1, 1], [], []>} : vector<16x20xbf16>, vector<20x80xbf16>, vector<16x80xf32> -> vector<16x80xf32>
    %160 = vector.broadcast %158 : vector<1x80xf32> to vector<16x80xf32>
    %161 = arith.addf %159, %160 : vector<16x80xf32>
    %162 = vector.extract_strided_slice %155 {offsets = [0, 0], sizes = [16, 20], strides = [1, 1]} : vector<16x80xf32> to vector<16x20xf32>
    %163 = vector.extract_strided_slice %155 {offsets = [0, 20], sizes = [16, 20], strides = [1, 1]} : vector<16x80xf32> to vector<16x20xf32>
    %164 = vector.extract_strided_slice %155 {offsets = [0, 40], sizes = [16, 20], strides = [1, 1]} : vector<16x80xf32> to vector<16x20xf32>
    %165 = vector.extract_strided_slice %155 {offsets = [0, 60], sizes = [16, 20], strides = [1, 1]} : vector<16x80xf32> to vector<16x20xf32>
    %cst_84 = arith.constant dense<0.000000e+00> : vector<16x16xf32>
    %166 = tpu.matmul %162, %163, %cst_84 {dimension_numbers = #tpu.dot_dimension_numbers<[1], [1], [0], [0], [0, 0, 1, 0], [], []>} : vector<16x20xf32>, vector<16x20xf32>, vector<16x16xf32> -> vector<16x16xf32>
    %cst_85 = arith.constant 0.000000e+00 : f32
    %167 = vector.broadcast %cst_85 : f32 to vector<16x16xf32>
    %168 = arith.cmpf ogt, %0, %167 : vector<16x16xf32>
    %cst_86 = arith.constant -1.000000e+30 : f32
    %169 = vector.broadcast %cst_86 : f32 to vector<16x16xf32>
    %170 = arith.select %168, %166, %169 : vector<16x16xi1>, vector<16x16xf32>
    %cst_87 = arith.constant dense<0xFF800000> : vector<16xf32>
    %171 = vector.multi_reduction <maximumf>, %170, %cst_87 [1] : vector<16x16xf32> to vector<16xf32>
    %172 = vector.shape_cast %171 : vector<16xf32> to vector<16x1xf32>
    %173 = vector.broadcast %172 : vector<16x1xf32> to vector<16x16xf32>
    %174 = arith.subf %170, %173 : vector<16x16xf32>
    %175 = math.exp %174 : vector<16x16xf32>
    %176 = arith.mulf %175, %0 : vector<16x16xf32>
    %cst_88 = arith.constant dense<0.000000e+00> : vector<16xf32>
    %177 = vector.multi_reduction <add>, %176, %cst_88 [1] : vector<16x16xf32> to vector<16xf32>
    %178 = vector.shape_cast %177 : vector<16xf32> to vector<16x1xf32>
    %cst_89 = arith.constant 0.000000e+00 : f32
    %179 = vector.broadcast %cst_89 : f32 to vector<16x1xf32>
    %180 = arith.cmpf ogt, %178, %179 : vector<16x1xf32>
    %cst_90 = arith.constant 1.000000e+00 : f32
    %181 = vector.broadcast %cst_90 : f32 to vector<16x1xf32>
    %182 = arith.select %180, %178, %181 : vector<16x1xi1>, vector<16x1xf32>
    %183 = vector.broadcast %182 : vector<16x1xf32> to vector<16x16xf32>
    %184 = arith.divf %176, %183 : vector<16x16xf32>
    %cst_91 = arith.constant dense<0.000000e+00> : vector<16x20xf32>
    %185 = tpu.matmul %184, %164, %cst_91 {dimension_numbers = #tpu.dot_dimension_numbers<[1], [0], [0], [1], [0, 0, 1, 1], [], []>} : vector<16x16xf32>, vector<16x20xf32>, vector<16x20xf32> -> vector<16x20xf32>
    %186 = arith.addf %185, %165 : vector<16x20xf32>
    %187 = vector.extract_strided_slice %161 {offsets = [0, 0], sizes = [16, 20], strides = [1, 1]} : vector<16x80xf32> to vector<16x20xf32>
    %188 = vector.extract_strided_slice %161 {offsets = [0, 20], sizes = [16, 20], strides = [1, 1]} : vector<16x80xf32> to vector<16x20xf32>
    %189 = vector.extract_strided_slice %161 {offsets = [0, 40], sizes = [16, 20], strides = [1, 1]} : vector<16x80xf32> to vector<16x20xf32>
    %190 = vector.extract_strided_slice %161 {offsets = [0, 60], sizes = [16, 20], strides = [1, 1]} : vector<16x80xf32> to vector<16x20xf32>
    %cst_92 = arith.constant dense<0.000000e+00> : vector<16x16xf32>
    %191 = tpu.matmul %187, %188, %cst_92 {dimension_numbers = #tpu.dot_dimension_numbers<[1], [1], [0], [0], [0, 0, 1, 0], [], []>} : vector<16x20xf32>, vector<16x20xf32>, vector<16x16xf32> -> vector<16x16xf32>
    %cst_93 = arith.constant 0.000000e+00 : f32
    %192 = vector.broadcast %cst_93 : f32 to vector<16x16xf32>
    %193 = arith.cmpf ogt, %1, %192 : vector<16x16xf32>
    %cst_94 = arith.constant -1.000000e+30 : f32
    %194 = vector.broadcast %cst_94 : f32 to vector<16x16xf32>
    %195 = arith.select %193, %191, %194 : vector<16x16xi1>, vector<16x16xf32>
    %cst_95 = arith.constant dense<0xFF800000> : vector<16xf32>
    %196 = vector.multi_reduction <maximumf>, %195, %cst_95 [1] : vector<16x16xf32> to vector<16xf32>
    %197 = vector.shape_cast %196 : vector<16xf32> to vector<16x1xf32>
    %198 = vector.broadcast %197 : vector<16x1xf32> to vector<16x16xf32>
    %199 = arith.subf %195, %198 : vector<16x16xf32>
    %200 = math.exp %199 : vector<16x16xf32>
    %201 = arith.mulf %200, %1 : vector<16x16xf32>
    %cst_96 = arith.constant dense<0.000000e+00> : vector<16xf32>
    %202 = vector.multi_reduction <add>, %201, %cst_96 [1] : vector<16x16xf32> to vector<16xf32>
    %203 = vector.shape_cast %202 : vector<16xf32> to vector<16x1xf32>
    %cst_97 = arith.constant 0.000000e+00 : f32
    %204 = vector.broadcast %cst_97 : f32 to vector<16x1xf32>
    %205 = arith.cmpf ogt, %203, %204 : vector<16x1xf32>
    %cst_98 = arith.constant 1.000000e+00 : f32
    %206 = vector.broadcast %cst_98 : f32 to vector<16x1xf32>
    %207 = arith.select %205, %203, %206 : vector<16x1xi1>, vector<16x1xf32>
    %208 = vector.broadcast %207 : vector<16x1xf32> to vector<16x16xf32>
    %209 = arith.divf %201, %208 : vector<16x16xf32>
    %cst_99 = arith.constant dense<0.000000e+00> : vector<16x20xf32>
    %210 = tpu.matmul %209, %189, %cst_99 {dimension_numbers = #tpu.dot_dimension_numbers<[1], [0], [0], [1], [0, 0, 1, 1], [], []>} : vector<16x16xf32>, vector<16x20xf32>, vector<16x20xf32> -> vector<16x20xf32>
    %211 = arith.addf %210, %190 : vector<16x20xf32>
    %212 = arith.addf %186, %211 : vector<16x20xf32>
    %cst_100 = arith.constant 0.000000e+00 : f32
    %213 = vector.broadcast %cst_100 : f32 to vector<16x20xf32>
    %214 = arith.cmpf ogt, %212, %213 : vector<16x20xf32>
    %cst_101 = arith.constant 0.00999999977 : f32
    %215 = vector.broadcast %cst_101 : f32 to vector<16x20xf32>
    %216 = arith.mulf %215, %212 : vector<16x20xf32>
    %217 = arith.select %214, %212, %216 : vector<16x20xi1>, vector<16x20xf32>
    %c2_102 = arith.constant 2 : index
    %c0_103 = arith.constant 0 : index
    %c0_104 = arith.constant 0 : index
    %218 = vector.load %arg5[%c2_102, %c0_103, %c0_104] : memref<4x20x2xf32, #tpu.memory_space<vmem>>, vector<1x20x2xf32>
    %219 = vector.shape_cast %218 : vector<1x20x2xf32> to vector<20x2xf32>
    %cst_105 = arith.constant dense<0.000000e+00> : vector<16x2xf32>
    %220 = tpu.matmul %217, %219, %cst_105 {dimension_numbers = #tpu.dot_dimension_numbers<[1], [0], [0], [1], [0, 0, 1, 1], [], []>} : vector<16x20xf32>, vector<20x2xf32>, vector<16x2xf32> -> vector<16x2xf32>
    %221 = arith.addf %148, %220 : vector<16x2xf32>
    %222 = arith.truncf %217 : vector<16x20xf32> to vector<16x20xbf16>
    %c2_106 = arith.constant 2 : index
    %c0_107 = arith.constant 0 : index
    %c0_108 = arith.constant 0 : index
    %c0_109 = arith.constant 0 : index
    %223 = vector.load %arg4[%c2_106, %c0_107, %c0_108, %c0_109] : memref<3x2x20x80xbf16, #tpu.memory_space<vmem>>, vector<1x1x20x80xbf16>
    %224 = vector.shape_cast %223 : vector<1x1x20x80xbf16> to vector<20x80xbf16>
    %c6 = arith.constant 6 : index
    %c0_110 = arith.constant 0 : index
    %225 = vector.load %arg6[%c6, %c0_110] : memref<16x80xf32, #tpu.memory_space<vmem>>, vector<1x80xf32>
    %cst_111 = arith.constant dense<0.000000e+00> : vector<16x80xf32>
    %226 = tpu.matmul %222, %224, %cst_111 {dimension_numbers = #tpu.dot_dimension_numbers<[1], [0], [0], [1], [0, 0, 1, 1], [], []>} : vector<16x20xbf16>, vector<20x80xbf16>, vector<16x80xf32> -> vector<16x80xf32>
    %227 = vector.broadcast %225 : vector<1x80xf32> to vector<16x80xf32>
    %228 = arith.addf %226, %227 : vector<16x80xf32>
    %c2_112 = arith.constant 2 : index
    %c1_113 = arith.constant 1 : index
    %c0_114 = arith.constant 0 : index
    %c0_115 = arith.constant 0 : index
    %229 = vector.load %arg4[%c2_112, %c1_113, %c0_114, %c0_115] : memref<3x2x20x80xbf16, #tpu.memory_space<vmem>>, vector<1x1x20x80xbf16>
    %230 = vector.shape_cast %229 : vector<1x1x20x80xbf16> to vector<20x80xbf16>
    %c7 = arith.constant 7 : index
    %c0_116 = arith.constant 0 : index
    %231 = vector.load %arg6[%c7, %c0_116] : memref<16x80xf32, #tpu.memory_space<vmem>>, vector<1x80xf32>
    %cst_117 = arith.constant dense<0.000000e+00> : vector<16x80xf32>
    %232 = tpu.matmul %222, %230, %cst_117 {dimension_numbers = #tpu.dot_dimension_numbers<[1], [0], [0], [1], [0, 0, 1, 1], [], []>} : vector<16x20xbf16>, vector<20x80xbf16>, vector<16x80xf32> -> vector<16x80xf32>
    %233 = vector.broadcast %231 : vector<1x80xf32> to vector<16x80xf32>
    %234 = arith.addf %232, %233 : vector<16x80xf32>
    %235 = vector.extract_strided_slice %228 {offsets = [0, 0], sizes = [16, 20], strides = [1, 1]} : vector<16x80xf32> to vector<16x20xf32>
    %236 = vector.extract_strided_slice %228 {offsets = [0, 20], sizes = [16, 20], strides = [1, 1]} : vector<16x80xf32> to vector<16x20xf32>
    %237 = vector.extract_strided_slice %228 {offsets = [0, 40], sizes = [16, 20], strides = [1, 1]} : vector<16x80xf32> to vector<16x20xf32>
    %238 = vector.extract_strided_slice %228 {offsets = [0, 60], sizes = [16, 20], strides = [1, 1]} : vector<16x80xf32> to vector<16x20xf32>
    %cst_118 = arith.constant dense<0.000000e+00> : vector<16x16xf32>
    %239 = tpu.matmul %235, %236, %cst_118 {dimension_numbers = #tpu.dot_dimension_numbers<[1], [1], [0], [0], [0, 0, 1, 0], [], []>} : vector<16x20xf32>, vector<16x20xf32>, vector<16x16xf32> -> vector<16x16xf32>
    %cst_119 = arith.constant 0.000000e+00 : f32
    %240 = vector.broadcast %cst_119 : f32 to vector<16x16xf32>
    %241 = arith.cmpf ogt, %0, %240 : vector<16x16xf32>
    %cst_120 = arith.constant -1.000000e+30 : f32
    %242 = vector.broadcast %cst_120 : f32 to vector<16x16xf32>
    %243 = arith.select %241, %239, %242 : vector<16x16xi1>, vector<16x16xf32>
    %cst_121 = arith.constant dense<0xFF800000> : vector<16xf32>
    %244 = vector.multi_reduction <maximumf>, %243, %cst_121 [1] : vector<16x16xf32> to vector<16xf32>
    %245 = vector.shape_cast %244 : vector<16xf32> to vector<16x1xf32>
    %246 = vector.broadcast %245 : vector<16x1xf32> to vector<16x16xf32>
    %247 = arith.subf %243, %246 : vector<16x16xf32>
    %248 = math.exp %247 : vector<16x16xf32>
    %249 = arith.mulf %248, %0 : vector<16x16xf32>
    %cst_122 = arith.constant dense<0.000000e+00> : vector<16xf32>
    %250 = vector.multi_reduction <add>, %249, %cst_122 [1] : vector<16x16xf32> to vector<16xf32>
    %251 = vector.shape_cast %250 : vector<16xf32> to vector<16x1xf32>
    %cst_123 = arith.constant 0.000000e+00 : f32
    %252 = vector.broadcast %cst_123 : f32 to vector<16x1xf32>
    %253 = arith.cmpf ogt, %251, %252 : vector<16x1xf32>
    %cst_124 = arith.constant 1.000000e+00 : f32
    %254 = vector.broadcast %cst_124 : f32 to vector<16x1xf32>
    %255 = arith.select %253, %251, %254 : vector<16x1xi1>, vector<16x1xf32>
    %256 = vector.broadcast %255 : vector<16x1xf32> to vector<16x16xf32>
    %257 = arith.divf %249, %256 : vector<16x16xf32>
    %cst_125 = arith.constant dense<0.000000e+00> : vector<16x20xf32>
    %258 = tpu.matmul %257, %237, %cst_125 {dimension_numbers = #tpu.dot_dimension_numbers<[1], [0], [0], [1], [0, 0, 1, 1], [], []>} : vector<16x16xf32>, vector<16x20xf32>, vector<16x20xf32> -> vector<16x20xf32>
    %259 = arith.addf %258, %238 : vector<16x20xf32>
    %260 = vector.extract_strided_slice %234 {offsets = [0, 0], sizes = [16, 20], strides = [1, 1]} : vector<16x80xf32> to vector<16x20xf32>
    %261 = vector.extract_strided_slice %234 {offsets = [0, 20], sizes = [16, 20], strides = [1, 1]} : vector<16x80xf32> to vector<16x20xf32>
    %262 = vector.extract_strided_slice %234 {offsets = [0, 40], sizes = [16, 20], strides = [1, 1]} : vector<16x80xf32> to vector<16x20xf32>
    %263 = vector.extract_strided_slice %234 {offsets = [0, 60], sizes = [16, 20], strides = [1, 1]} : vector<16x80xf32> to vector<16x20xf32>
    %cst_126 = arith.constant dense<0.000000e+00> : vector<16x16xf32>
    %264 = tpu.matmul %260, %261, %cst_126 {dimension_numbers = #tpu.dot_dimension_numbers<[1], [1], [0], [0], [0, 0, 1, 0], [], []>} : vector<16x20xf32>, vector<16x20xf32>, vector<16x16xf32> -> vector<16x16xf32>
    %cst_127 = arith.constant 0.000000e+00 : f32
    %265 = vector.broadcast %cst_127 : f32 to vector<16x16xf32>
    %266 = arith.cmpf ogt, %1, %265 : vector<16x16xf32>
    %cst_128 = arith.constant -1.000000e+30 : f32
    %267 = vector.broadcast %cst_128 : f32 to vector<16x16xf32>
    %268 = arith.select %266, %264, %267 : vector<16x16xi1>, vector<16x16xf32>
    %cst_129 = arith.constant dense<0xFF800000> : vector<16xf32>
    %269 = vector.multi_reduction <maximumf>, %268, %cst_129 [1] : vector<16x16xf32> to vector<16xf32>
    %270 = vector.shape_cast %269 : vector<16xf32> to vector<16x1xf32>
    %271 = vector.broadcast %270 : vector<16x1xf32> to vector<16x16xf32>
    %272 = arith.subf %268, %271 : vector<16x16xf32>
    %273 = math.exp %272 : vector<16x16xf32>
    %274 = arith.mulf %273, %1 : vector<16x16xf32>
    %cst_130 = arith.constant dense<0.000000e+00> : vector<16xf32>
    %275 = vector.multi_reduction <add>, %274, %cst_130 [1] : vector<16x16xf32> to vector<16xf32>
    %276 = vector.shape_cast %275 : vector<16xf32> to vector<16x1xf32>
    %cst_131 = arith.constant 0.000000e+00 : f32
    %277 = vector.broadcast %cst_131 : f32 to vector<16x1xf32>
    %278 = arith.cmpf ogt, %276, %277 : vector<16x1xf32>
    %cst_132 = arith.constant 1.000000e+00 : f32
    %279 = vector.broadcast %cst_132 : f32 to vector<16x1xf32>
    %280 = arith.select %278, %276, %279 : vector<16x1xi1>, vector<16x1xf32>
    %281 = vector.broadcast %280 : vector<16x1xf32> to vector<16x16xf32>
    %282 = arith.divf %274, %281 : vector<16x16xf32>
    %cst_133 = arith.constant dense<0.000000e+00> : vector<16x20xf32>
    %283 = tpu.matmul %282, %262, %cst_133 {dimension_numbers = #tpu.dot_dimension_numbers<[1], [0], [0], [1], [0, 0, 1, 1], [], []>} : vector<16x16xf32>, vector<16x20xf32>, vector<16x20xf32> -> vector<16x20xf32>
    %284 = arith.addf %283, %263 : vector<16x20xf32>
    %285 = arith.addf %259, %284 : vector<16x20xf32>
    %cst_134 = arith.constant 0.000000e+00 : f32
    %286 = vector.broadcast %cst_134 : f32 to vector<16x20xf32>
    %287 = arith.cmpf ogt, %285, %286 : vector<16x20xf32>
    %cst_135 = arith.constant 0.00999999977 : f32
    %288 = vector.broadcast %cst_135 : f32 to vector<16x20xf32>
    %289 = arith.mulf %288, %285 : vector<16x20xf32>
    %290 = arith.select %287, %285, %289 : vector<16x20xi1>, vector<16x20xf32>
    %c3_136 = arith.constant 3 : index
    %c0_137 = arith.constant 0 : index
    %c0_138 = arith.constant 0 : index
    %291 = vector.load %arg5[%c3_136, %c0_137, %c0_138] : memref<4x20x2xf32, #tpu.memory_space<vmem>>, vector<1x20x2xf32>
    %292 = vector.shape_cast %291 : vector<1x20x2xf32> to vector<20x2xf32>
    %cst_139 = arith.constant dense<0.000000e+00> : vector<16x2xf32>
    %293 = tpu.matmul %290, %292, %cst_139 {dimension_numbers = #tpu.dot_dimension_numbers<[1], [0], [0], [1], [0, 0, 1, 1], [], []>} : vector<16x20xf32>, vector<20x2xf32>, vector<16x2xf32> -> vector<16x2xf32>
    %294 = arith.addf %221, %293 : vector<16x2xf32>
    %c8 = arith.constant 8 : index
    %c0_140 = arith.constant 0 : index
    %295 = vector.load %arg6[%c8, %c0_140] : memref<16x80xf32, #tpu.memory_space<vmem>>, vector<1x2xf32>
    %296 = vector.broadcast %295 : vector<1x2xf32> to vector<16x2xf32>
    %297 = arith.addf %294, %296 : vector<16x2xf32>
    %c0_141 = arith.constant 0 : index
    %c0_142 = arith.constant 0 : index
    %298 = vector.load %arg7[%c0_141, %c0_142] : memref<16x2xf32, #tpu.memory_space<vmem>>, vector<16x2xf32>
    tpu.vector_store %arg7[%c0_141, %c0_142], %297 {strides = array<i32>} : memref<16x2xf32, #tpu.memory_space<vmem>>, vector<16x2xf32>,
    return
  }
}

</mosaic_0001>

<llo_original>
// kernel: hpg_forward.1
$region0: #{hpg_forward.1}
  #allocation0 [shape = 'u32[]', space=smem, size = 0x4, offset = 0x4, fixed_abs, tag = 'smem constant byte address 0x4 - core index']
  #allocation1 [shape = 'u32[144,128]{1,0:T(1,128)}', space=vmem, size = 0x12000, scoped, tag = 'internal scratch']
  %s0 = inlined_call_operand.vmem [shape: bf16[16,2000], index: 0, kind: input, shape index: {}]
  %s1 = inlined_call_operand.vmem [shape: f32[16,16], index: 1, kind: input, shape index: {}]
  %s2 = inlined_call_operand.vmem [shape: f32[16,16], index: 2, kind: input, shape index: {}]
  %s3 = inlined_call_operand.vmem [shape: bf16[2,2000,80], index: 3, kind: input, shape index: {}]
  %s4 = inlined_call_operand.vmem [shape: bf16[3,2,20,80], index: 4, kind: input, shape index: {}]
  %s5 = inlined_call_operand.vmem [shape: f32[4,20,2], index: 5, kind: input, shape index: {}]
  %s6 = inlined_call_operand.vmem [shape: f32[16,80], index: 6, kind: input, shape index: {}]
  %s7 = inlined_call_operand.vmem [shape: f32[16,2], index: 7, kind: output, shape index: {}]
  %s8 = sld [smem:[#allocation0]]
  $region38: #{hpg_forward.1} parent=0
    _
  %s10 = ssub.s32 1, %s8
  %s11 = scalar_select 0, %s10, %s8
  // Predicated region
  $region2: #{hpg_forward.1} parent=0 // pred_check
    _
  $region3: #{hpg_forward.1} parent=0 // pred_check_branch
    %13 = sbr.rel (0) target = $region5
  $region4: #{hpg_forward.1} parent=0 // pred_region
    _
  $region5: #{hpg_forward.1} parent=0 // pred_fallthru
    _
  // Predicated region
  $region6: #{hpg_forward.1} parent=0 // pred_check
    _
  $region7: #{hpg_forward.1} parent=0 // pred_check_branch
    %15 = sbr.rel (0) target = $region9
  $region8: #{hpg_forward.1} parent=0 // pred_region
    _
  $region9: #{hpg_forward.1} parent=0 // pred_fallthru
    _
  // Predicated region
  $region10: #{hpg_forward.1} parent=0 // pred_check
    _
  $region11: #{hpg_forward.1} parent=0 // pred_check_branch
    %17 = sbr.rel (0) target = $region13
  $region12: #{hpg_forward.1} parent=0 // pred_region
    _
  $region13: #{hpg_forward.1} parent=0 // pred_fallthru
    _
  // Predicated region
  $region14: #{hpg_forward.1} parent=0 // pred_check
    _
  $region15: #{hpg_forward.1} parent=0 // pred_check_branch
    %19 = sbr.rel (0) target = $region17
  $region16: #{hpg_forward.1} parent=0 // pred_region
    _
  $region17: #{hpg_forward.1} parent=0 // pred_fallthru
    _
  // Predicated region
  $region18: #{hpg_forward.1} parent=0 // pred_check
    _
  $region19: #{hpg_forward.1} parent=0 // pred_check_branch
    %21 = sbr.rel (0) target = $region21
  $region20: #{hpg_forward.1} parent=0 // pred_region
    _
  $region21: #{hpg_forward.1} parent=0 // pred_fallthru
    _
  // Predicated region
  $region22: #{hpg_forward.1} parent=0 // pred_check
    _
  $region23: #{hpg_forward.1} parent=0 // pred_check_branch
    %23 = sbr.rel (0) target = $region25
  $region24: #{hpg_forward.1} parent=0 // pred_region
    _
  $region25: #{hpg_forward.1} parent=0 // pred_fallthru
    _
  // Predicated region
  $region26: #{hpg_forward.1} parent=0 // pred_check
    _
  $region27: #{hpg_forward.1} parent=0 // pred_check_branch
    %25 = sbr.rel (0) target = $region29
  $region28: #{hpg_forward.1} parent=0 // pred_region
    _
  $region29: #{hpg_forward.1} parent=0 // pred_fallthru
    _
  %v27 = vld [vmem:[%s1] sm:$0xff]
  %v28 = vld [vmem:[%s1 + $0x8] sm:$0xff]
  %v29 = vld [vmem:[%s2] sm:$0xff]
  %v30 = vld [vmem:[%s2 + $0x8] sm:$0xff]
  %v31 = vld [vmem:[%s0] sm:$0xff]
  %v32 = vld [vmem:[%s0 + $0x8] sm:$0xff]
  %v33 = vld [vmem:[%s0 + $0x10] sm:$0xff]
  %v34 = vld [vmem:[%s0 + $0x18] sm:$0xff]
  %v35 = vld [vmem:[%s0 + $0x20] sm:$0xff]
  %v36 = vld [vmem:[%s0 + $0x28] sm:$0xff]
  %v37 = vld [vmem:[%s0 + $0x30] sm:$0xff]
  %v38 = vld [vmem:[%s0 + $0x38] sm:$0xff]
  %v39 = vld [vmem:[%s0 + $0x40] sm:$0xff]
  %v40 = vld [vmem:[%s0 + $0x48] sm:$0xff]
  %v41 = vld [vmem:[%s0 + $0x50] sm:$0xff]
  %v42 = vld [vmem:[%s0 + $0x58] sm:$0xff]
  %v43 = vld [vmem:[%s0 + $0x60] sm:$0xff]
  %v44 = vld [vmem:[%s0 + $0x68] sm:$0xff]
  %v45 = vld [vmem:[%s0 + $0x70] sm:$0xff]
  %v46 = vld [vmem:[%s0 + $0x78] sm:$0xff]
  %v47 = vld [vmem:[%s3] sm:$0xf]
  %v48 = vld [vmem:[%s3 + $0x4] sm:$0xf]
  %v49 = vld [vmem:[%s3 + $0x8] sm:$0xf]
  %v50 = vld [vmem:[%s3 + $0xc] sm:$0xf]
  %v51 = vld [vmem:[%s3 + $0x10] sm:$0xf]
  %v52 = vld [vmem:[%s3 + $0x14] sm:$0xf]
  %v53 = vld [vmem:[%s3 + $0x18] sm:$0xf]
  %v54 = vld [vmem:[%s3 + $0x1c] sm:$0xf]
  %v55 = vld [vmem:[%s3 + $0x20] sm:$0xf]
  %v56 = vld [vmem:[%s3 + $0x24] sm:$0xf]
  %v57 = vld [vmem:[%s3 + $0x28] sm:$0xf]
  %v58 = vld [vmem:[%s3 + $0x2c] sm:$0xf]
  %v59 = vld [vmem:[%s3 + $0x30] sm:$0xf]
  %v60 = vld [vmem:[%s3 + $0x34] sm:$0xf]
  %v61 = vld [vmem:[%s3 + $0x38] sm:$0xf]
  %v62 = vld [vmem:[%s3 + $0x3c] sm:$0xf]
  %v63 = vld [vmem:[%s3 + $0x40] sm:$0xf]
  %v64 = vld [vmem:[%s3 + $0x44] sm:$0xf]
  %v65 = vld [vmem:[%s3 + $0x48] sm:$0xf]
  %v66 = vld [vmem:[%s3 + $0x4c] sm:$0xf]
  %v67 = vld [vmem:[%s3 + $0x50] sm:$0xf]
  %v68 = vld [vmem:[%s3 + $0x54] sm:$0xf]
  %v69 = vld [vmem:[%s3 + $0x58] sm:$0xf]
  %v70 = vld [vmem:[%s3 + $0x5c] sm:$0xf]
  %v71 = vld [vmem:[%s3 + $0x60] sm:$0xf]
  %v72 = vld [vmem:[%s3 + $0x64] sm:$0xf]
  %v73 = vld [vmem:[%s3 + $0x68] sm:$0xf]
  %v74 = vld [vmem:[%s3 + $0x6c] sm:$0xf]
  %v75 = vld [vmem:[%s3 + $0x70] sm:$0xf]
  %v76 = vld [vmem:[%s3 + $0x74] sm:$0xf]
  %v77 = vld [vmem:[%s3 + $0x78] sm:$0xf]
  %v78 = vld [vmem:[%s3 + $0x7c] sm:$0xf]
  %v79 = vld [vmem:[%s3 + $0x80] sm:$0xf]
  %v80 = vld [vmem:[%s3 + $0x84] sm:$0xf]
  %v81 = vld [vmem:[%s3 + $0x88] sm:$0xf]
  %v82 = vld [vmem:[%s3 + $0x8c] sm:$0xf]
  %v83 = vld [vmem:[%s3 + $0x90] sm:$0xf]
  %v84 = vld [vmem:[%s3 + $0x94] sm:$0xf]
  %v85 = vld [vmem:[%s3 + $0x98] sm:$0xf]
  %v86 = vld [vmem:[%s3 + $0x9c] sm:$0xf]
  %v87 = vld [vmem:[%s3 + $0xa0] sm:$0xf]
  %v88 = vld [vmem:[%s3 + $0xa4] sm:$0xf]
  %v89 = vld [vmem:[%s3 + $0xa8] sm:$0xf]
  %v90 = vld [vmem:[%s3 + $0xac] sm:$0xf]
  %v91 = vld [vmem:[%s3 + $0xb0] sm:$0xf]
  %v92 = vld [vmem:[%s3 + $0xb4] sm:$0xf]
  %v93 = vld [vmem:[%s3 + $0xb8] sm:$0xf]
  %v94 = vld [vmem:[%s3 + $0xbc] sm:$0xf]
  %v95 = vld [vmem:[%s3 + $0xc0] sm:$0xf]
  %v96 = vld [vmem:[%s3 + $0xc4] sm:$0xf]
  %v97 = vld [vmem:[%s3 + $0xc8] sm:$0xf]
  %v98 = vld [vmem:[%s3 + $0xcc] sm:$0xf]
  %v99 = vld [vmem:[%s3 + $0xd0] sm:$0xf]
  %v100 = vld [vmem:[%s3 + $0xd4] sm:$0xf]
  %v101 = vld [vmem:[%s3 + $0xd8] sm:$0xf]
  %v102 = vld [vmem:[%s3 + $0xdc] sm:$0xf]
  %v103 = vld [vmem:[%s3 + $0xe0] sm:$0xf]
  %v104 = vld [vmem:[%s3 + $0xe4] sm:$0xf]
  %v105 = vld [vmem:[%s3 + $0xe8] sm:$0xf]
  %v106 = vld [vmem:[%s3 + $0xec] sm:$0xf]
  %v107 = vld [vmem:[%s3 + $0xf0] sm:$0xf]
  %v108 = vld [vmem:[%s3 + $0xf4] sm:$0xf]
  %v109 = vld [vmem:[%s3 + $0xf8] sm:$0xf]
  %v110 = vld [vmem:[%s3 + $0xfc] sm:$0xf]
  %v111 = vld [vmem:[%s3 + $0x100] sm:$0xf]
  %v112 = vld [vmem:[%s3 + $0x104] sm:$0xf]
  %v113 = vld [vmem:[%s3 + $0x108] sm:$0xf]
  %v114 = vld [vmem:[%s3 + $0x10c] sm:$0xf]
  %v115 = vld [vmem:[%s3 + $0x110] sm:$0xf]
  %v116 = vld [vmem:[%s3 + $0x114] sm:$0xf]
  %v117 = vld [vmem:[%s3 + $0x118] sm:$0xf]
  %v118 = vld [vmem:[%s3 + $0x11c] sm:$0xf]
  %v119 = vld [vmem:[%s3 + $0x120] sm:$0xf]
  %v120 = vld [vmem:[%s3 + $0x124] sm:$0xf]
  %v121 = vld [vmem:[%s3 + $0x128] sm:$0xf]
  %v122 = vld [vmem:[%s3 + $0x12c] sm:$0xf]
  %v123 = vld [vmem:[%s3 + $0x130] sm:$0xf]
  %v124 = vld [vmem:[%s3 + $0x134] sm:$0xf]
  %v125 = vld [vmem:[%s3 + $0x138] sm:$0xf]
  %v126 = vld [vmem:[%s3 + $0x13c] sm:$0xf]
  %v127 = vld [vmem:[%s3 + $0x140] sm:$0xf]
  %v128 = vld [vmem:[%s3 + $0x144] sm:$0xf]
  %v129 = vld [vmem:[%s3 + $0x148] sm:$0xf]
  %v130 = vld [vmem:[%s3 + $0x14c] sm:$0xf]
  %v131 = vld [vmem:[%s3 + $0x150] sm:$0xf]
  %v132 = vld [vmem:[%s3 + $0x154] sm:$0xf]
  %v133 = vld [vmem:[%s3 + $0x158] sm:$0xf]
  %v134 = vld [vmem:[%s3 + $0x15c] sm:$0xf]
  %v135 = vld [vmem:[%s3 + $0x160] sm:$0xf]
  %v136 = vld [vmem:[%s3 + $0x164] sm:$0xf]
  %v137 = vld [vmem:[%s3 + $0x168] sm:$0xf]
  %v138 = vld [vmem:[%s3 + $0x16c] sm:$0xf]
  %v139 = vld [vmem:[%s3 + $0x170] sm:$0xf]
  %v140 = vld [vmem:[%s3 + $0x174] sm:$0xf]
  %v141 = vld [vmem:[%s3 + $0x178] sm:$0xf]
  %v142 = vld [vmem:[%s3 + $0x17c] sm:$0xf]
  %v143 = vld [vmem:[%s3 + $0x180] sm:$0xf]
  %v144 = vld [vmem:[%s3 + $0x184] sm:$0xf]
  %v145 = vld [vmem:[%s3 + $0x188] sm:$0xf]
  %v146 = vld [vmem:[%s3 + $0x18c] sm:$0xf]
  %v147 = vld [vmem:[%s3 + $0x190] sm:$0xf]
  %v148 = vld [vmem:[%s3 + $0x194] sm:$0xf]
  %v149 = vld [vmem:[%s3 + $0x198] sm:$0xf]
  %v150 = vld [vmem:[%s3 + $0x19c] sm:$0xf]
  %v151 = vld [vmem:[%s3 + $0x1a0] sm:$0xf]
  %v152 = vld [vmem:[%s3 + $0x1a4] sm:$0xf]
  %v153 = vld [vmem:[%s3 + $0x1a8] sm:$0xf]
  %v154 = vld [vmem:[%s3 + $0x1ac] sm:$0xf]
  %v155 = vld [vmem:[%s3 + $0x1b0] sm:$0xf]
  %v156 = vld [vmem:[%s3 + $0x1b4] sm:$0xf]
  %v157 = vld [vmem:[%s3 + $0x1b8] sm:$0xf]
  %v158 = vld [vmem:[%s3 + $0x1bc] sm:$0xf]
  %v159 = vld [vmem:[%s3 + $0x1c0] sm:$0xf]
  %v160 = vld [vmem:[%s3 + $0x1c4] sm:$0xf]
  %v161 = vld [vmem:[%s3 + $0x1c8] sm:$0xf]
  %v162 = vld [vmem:[%s3 + $0x1cc] sm:$0xf]
  %v163 = vld [vmem:[%s3 + $0x1d0] sm:$0xf]
  %v164 = vld [vmem:[%s3 + $0x1d4] sm:$0xf]
  %v165 = vld [vmem:[%s3 + $0x1d8] sm:$0xf]
  %v166 = vld [vmem:[%s3 + $0x1dc] sm:$0xf]
  %v167 = vld [vmem:[%s3 + $0x1e0] sm:$0xf]
  %v168 = vld [vmem:[%s3 + $0x1e4] sm:$0xf]
  %v169 = vld [vmem:[%s3 + $0x1e8] sm:$0xf]
  %v170 = vld [vmem:[%s3 + $0x1ec] sm:$0xf]
  %v171 = vld [vmem:[%s3 + $0x1f0] sm:$0xf]
  %v172 = vld [vmem:[%s3 + $0x1f4] sm:$0xf]
  %v173 = vld [vmem:[%s3 + $0x1f8] sm:$0xf]
  %v174 = vld [vmem:[%s3 + $0x1fc] sm:$0xf]
  %v175 = vld [vmem:[%s3 + $0x200] sm:$0xf]
  %v176 = vld [vmem:[%s3 + $0x204] sm:$0xf]
  %v177 = vld [vmem:[%s3 + $0x208] sm:$0xf]
  %v178 = vld [vmem:[%s3 + $0x20c] sm:$0xf]
  %v179 = vld [vmem:[%s3 + $0x210] sm:$0xf]
  %v180 = vld [vmem:[%s3 + $0x214] sm:$0xf]
  %v181 = vld [vmem:[%s3 + $0x218] sm:$0xf]
  %v182 = vld [vmem:[%s3 + $0x21c] sm:$0xf]
  %v183 = vld [vmem:[%s3 + $0x220] sm:$0xf]
  %v184 = vld [vmem:[%s3 + $0x224] sm:$0xf]
  %v185 = vld [vmem:[%s3 + $0x228] sm:$0xf]
  %v186 = vld [vmem:[%s3 + $0x22c] sm:$0xf]
  %v187 = vld [vmem:[%s3 + $0x230] sm:$0xf]
  %v188 = vld [vmem:[%s3 + $0x234] sm:$0xf]
  %v189 = vld [vmem:[%s3 + $0x238] sm:$0xf]
  %v190 = vld [vmem:[%s3 + $0x23c] sm:$0xf]
  %v191 = vld [vmem:[%s3 + $0x240] sm:$0xf]
  %v192 = vld [vmem:[%s3 + $0x244] sm:$0xf]
  %v193 = vld [vmem:[%s3 + $0x248] sm:$0xf]
  %v194 = vld [vmem:[%s3 + $0x24c] sm:$0xf]
  %v195 = vld [vmem:[%s3 + $0x250] sm:$0xf]
  %v196 = vld [vmem:[%s3 + $0x254] sm:$0xf]
  %v197 = vld [vmem:[%s3 + $0x258] sm:$0xf]
  %v198 = vld [vmem:[%s3 + $0x25c] sm:$0xf]
  %v199 = vld [vmem:[%s3 + $0x260] sm:$0xf]
  %v200 = vld [vmem:[%s3 + $0x264] sm:$0xf]
  %v201 = vld [vmem:[%s3 + $0x268] sm:$0xf]
  %v202 = vld [vmem:[%s3 + $0x26c] sm:$0xf]
  %v203 = vld [vmem:[%s3 + $0x270] sm:$0xf]
  %v204 = vld [vmem:[%s3 + $0x274] sm:$0xf]
  %v205 = vld [vmem:[%s3 + $0x278] sm:$0xf]
  %v206 = vld [vmem:[%s3 + $0x27c] sm:$0xf]
  %v207 = vld [vmem:[%s3 + $0x280] sm:$0xf]
  %v208 = vld [vmem:[%s3 + $0x284] sm:$0xf]
  %v209 = vld [vmem:[%s3 + $0x288] sm:$0xf]
  %v210 = vld [vmem:[%s3 + $0x28c] sm:$0xf]
  %v211 = vld [vmem:[%s3 + $0x290] sm:$0xf]
  %v212 = vld [vmem:[%s3 + $0x294] sm:$0xf]
  %v213 = vld [vmem:[%s3 + $0x298] sm:$0xf]
  %v214 = vld [vmem:[%s3 + $0x29c] sm:$0xf]
  %v215 = vld [vmem:[%s3 + $0x2a0] sm:$0xf]
  %v216 = vld [vmem:[%s3 + $0x2a4] sm:$0xf]
  %v217 = vld [vmem:[%s3 + $0x2a8] sm:$0xf]
  %v218 = vld [vmem:[%s3 + $0x2ac] sm:$0xf]
  %v219 = vld [vmem:[%s3 + $0x2b0] sm:$0xf]
  %v220 = vld [vmem:[%s3 + $0x2b4] sm:$0xf]
  %v221 = vld [vmem:[%s3 + $0x2b8] sm:$0xf]
  %v222 = vld [vmem:[%s3 + $0x2bc] sm:$0xf]
  %v223 = vld [vmem:[%s3 + $0x2c0] sm:$0xf]
  %v224 = vld [vmem:[%s3 + $0x2c4] sm:$0xf]
  %v225 = vld [vmem:[%s3 + $0x2c8] sm:$0xf]
  %v226 = vld [vmem:[%s3 + $0x2cc] sm:$0xf]
  %v227 = vld [vmem:[%s3 + $0x2d0] sm:$0xf]
  %v228 = vld [vmem:[%s3 + $0x2d4] sm:$0xf]
  %v229 = vld [vmem:[%s3 + $0x2d8] sm:$0xf]
  %v230 = vld [vmem:[%s3 + $0x2dc] sm:$0xf]
  %v231 = vld [vmem:[%s3 + $0x2e0] sm:$0xf]
  %v232 = vld [vmem:[%s3 + $0x2e4] sm:$0xf]
  %v233 = vld [vmem:[%s3 + $0x2e8] sm:$0xf]
  %v234 = vld [vmem:[%s3 + $0x2ec] sm:$0xf]
  %v235 = vld [vmem:[%s3 + $0x2f0] sm:$0xf]
  %v236 = vld [vmem:[%s3 + $0x2f4] sm:$0xf]
  %v237 = vld [vmem:[%s3 + $0x2f8] sm:$0xf]
  %v238 = vld [vmem:[%s3 + $0x2fc] sm:$0xf]
  %v239 = vld [vmem:[%s3 + $0x300] sm:$0xf]
  %v240 = vld [vmem:[%s3 + $0x304] sm:$0xf]
  %v241 = vld [vmem:[%s3 + $0x308] sm:$0xf]
  %v242 = vld [vmem:[%s3 + $0x30c] sm:$0xf]
  %v243 = vld [vmem:[%s3 + $0x310] sm:$0xf]
  %v244 = vld [vmem:[%s3 + $0x314] sm:$0xf]
  %v245 = vld [vmem:[%s3 + $0x318] sm:$0xf]
  %v246 = vld [vmem:[%s3 + $0x31c] sm:$0xf]
  %v247 = vld [vmem:[%s3 + $0x320] sm:$0xf]
  %v248 = vld [vmem:[%s3 + $0x324] sm:$0xf]
  %v249 = vld [vmem:[%s3 + $0x328] sm:$0xf]
  %v250 = vld [vmem:[%s3 + $0x32c] sm:$0xf]
  %v251 = vld [vmem:[%s3 + $0x330] sm:$0xf]
  %v252 = vld [vmem:[%s3 + $0x334] sm:$0xf]
  %v253 = vld [vmem:[%s3 + $0x338] sm:$0xf]
  %v254 = vld [vmem:[%s3 + $0x33c] sm:$0xf]
  %v255 = vld [vmem:[%s3 + $0x340] sm:$0xf]
  %v256 = vld [vmem:[%s3 + $0x344] sm:$0xf]
  %v257 = vld [vmem:[%s3 + $0x348] sm:$0xf]
  %v258 = vld [vmem:[%s3 + $0x34c] sm:$0xf]
  %v259 = vld [vmem:[%s3 + $0x350] sm:$0xf]
  %v260 = vld [vmem:[%s3 + $0x354] sm:$0xf]
  %v261 = vld [vmem:[%s3 + $0x358] sm:$0xf]
  %v262 = vld [vmem:[%s3 + $0x35c] sm:$0xf]
  %v263 = vld [vmem:[%s3 + $0x360] sm:$0xf]
  %v264 = vld [vmem:[%s3 + $0x364] sm:$0xf]
  %v265 = vld [vmem:[%s3 + $0x368] sm:$0xf]
  %v266 = vld [vmem:[%s3 + $0x36c] sm:$0xf]
  %v267 = vld [vmem:[%s3 + $0x370] sm:$0xf]
  %v268 = vld [vmem:[%s3 + $0x374] sm:$0xf]
  %v269 = vld [vmem:[%s3 + $0x378] sm:$0xf]
  %v270 = vld [vmem:[%s3 + $0x37c] sm:$0xf]
  %v271 = vld [vmem:[%s3 + $0x380] sm:$0xf]
  %v272 = vld [vmem:[%s3 + $0x384] sm:$0xf]
  %v273 = vld [vmem:[%s3 + $0x388] sm:$0xf]
  %v274 = vld [vmem:[%s3 + $0x38c] sm:$0xf]
  %v275 = vld [vmem:[%s3 + $0x390] sm:$0xf]
  %v276 = vld [vmem:[%s3 + $0x394] sm:$0xf]
  %v277 = vld [vmem:[%s3 + $0x398] sm:$0xf]
  %v278 = vld [vmem:[%s3 + $0x39c] sm:$0xf]
  %v279 = vld [vmem:[%s3 + $0x3a0] sm:$0xf]
  %v280 = vld [vmem:[%s3 + $0x3a4] sm:$0xf]
  %v281 = vld [vmem:[%s3 + $0x3a8] sm:$0xf]
  %v282 = vld [vmem:[%s3 + $0x3ac] sm:$0xf]
  %v283 = vld [vmem:[%s3 + $0x3b0] sm:$0xf]
  %v284 = vld [vmem:[%s3 + $0x3b4] sm:$0xf]
  %v285 = vld [vmem:[%s3 + $0x3b8] sm:$0xf]
  %v286 = vld [vmem:[%s3 + $0x3bc] sm:$0xf]
  %v287 = vld [vmem:[%s3 + $0x3c0] sm:$0xf]
  %v288 = vld [vmem:[%s3 + $0x3c4] sm:$0xf]
  %v289 = vld [vmem:[%s3 + $0x3c8] sm:$0xf]
  %v290 = vld [vmem:[%s3 + $0x3cc] sm:$0xf]
  %v291 = vld [vmem:[%s3 + $0x3d0] sm:$0xf]
  %v292 = vld [vmem:[%s3 + $0x3d4] sm:$0xf]
  %v293 = vld [vmem:[%s3 + $0x3d8] sm:$0xf]
  %v294 = vld [vmem:[%s3 + $0x3dc] sm:$0xf]
  %v295 = vld [vmem:[%s3 + $0x3e0] sm:$0xf]
  %v296 = vld [vmem:[%s3 + $0x3e4] sm:$0xf]
  %v297 = vld [vmem:[%s6] sm:$0x1]
  %v298 = vlaneseq
  %v299 = vshrl.u32 %v298, 7
  %v300 = vsub.s32 0, %v299
  %v301 = vrot.slane %v297, %v300
  %v318 = vunpack.c.l.b16 %v31
  %v319 = vunpack.c.h.b16 %v31
  %v320 = vunpack.c.l.b16 %v32
  %v321 = vunpack.c.h.b16 %v32
  %v322 = vunpack.c.l.b16 %v33
  %v323 = vunpack.c.h.b16 %v33
  %v324 = vunpack.c.l.b16 %v34
  %v325 = vunpack.c.h.b16 %v34
  %v326 = vunpack.c.l.b16 %v35
  %v327 = vunpack.c.h.b16 %v35
  %v328 = vunpack.c.l.b16 %v36
  %v329 = vunpack.c.h.b16 %v36
  %v330 = vunpack.c.l.b16 %v37
  %v331 = vunpack.c.h.b16 %v37
  %v332 = vunpack.c.l.b16 %v38
  %v333 = vunpack.c.h.b16 %v38
  %v334 = vunpack.c.l.b16 %v39
  %v335 = vunpack.c.h.b16 %v39
  %v336 = vunpack.c.l.b16 %v40
  %v337 = vunpack.c.h.b16 %v40
  %v338 = vunpack.c.l.b16 %v41
  %v339 = vunpack.c.h.b16 %v41
  %v340 = vunpack.c.l.b16 %v42
  %v341 = vunpack.c.h.b16 %v42
  %v342 = vunpack.c.l.b16 %v43
  %v343 = vunpack.c.h.b16 %v43
  %v344 = vunpack.c.l.b16 %v44
  %v345 = vunpack.c.h.b16 %v44
  %v346 = vunpack.c.l.b16 %v45
  %v347 = vunpack.c.h.b16 %v45
  %v348 = vunpack.c.l.b16 %v46
  %v349 = vunpack.c.h.b16 %v46
  %v350 = vpack.c.b16 %v334, %v318
  %v351 = vpack.c.b16 %v335, %v319
  %v352 = vpack.c.b16 %v336, %v320
  %v353 = vpack.c.b16 %v337, %v321
  %v354 = vpack.c.b16 %v338, %v322
  %v355 = vpack.c.b16 %v339, %v323
  %v356 = vpack.c.b16 %v340, %v324
  %v357 = vpack.c.b16 %v341, %v325
  %v358 = vpack.c.b16 %v342, %v326
  %v359 = vpack.c.b16 %v343, %v327
  %v360 = vpack.c.b16 %v344, %v328
  %v361 = vpack.c.b16 %v345, %v329
  %v362 = vpack.c.b16 %v346, %v330
  %v363 = vpack.c.b16 %v347, %v331
  %v364 = vpack.c.b16 %v348, %v332
  %v365 = vpack.c.b16 %v349, %v333
  %v631 = vunpack.c.l.b16 %v47
  %v632 = vunpack.c.l.b16 %v48
  %v633 = vunpack.c.l.b16 %v49
  %v634 = vunpack.c.l.b16 %v50
  %v635 = vunpack.c.l.b16 %v51
  %v636 = vunpack.c.l.b16 %v52
  %v637 = vunpack.c.l.b16 %v53
  %v638 = vunpack.c.l.b16 %v54
  %v639 = vunpack.c.l.b16 %v55
  %v640 = vunpack.c.l.b16 %v56
  %v641 = vunpack.c.l.b16 %v57
  %v642 = vunpack.c.l.b16 %v58
  %v643 = vunpack.c.l.b16 %v59
  %v644 = vunpack.c.l.b16 %v60
  %v645 = vunpack.c.l.b16 %v61
  %v646 = vunpack.c.l.b16 %v62
  %v647 = vunpack.c.l.b16 %v63
  %v648 = vunpack.c.l.b16 %v64
  %v649 = vunpack.c.l.b16 %v65
  %v650 = vunpack.c.l.b16 %v66
  %v651 = vunpack.c.l.b16 %v67
  %v652 = vunpack.c.l.b16 %v68
  %v653 = vunpack.c.l.b16 %v69
  %v654 = vunpack.c.l.b16 %v70
  %v655 = vunpack.c.l.b16 %v71
  %v656 = vunpack.c.l.b16 %v72
  %v657 = vunpack.c.l.b16 %v73
  %v658 = vunpack.c.l.b16 %v74
  %v659 = vunpack.c.l.b16 %v75
  %v660 = vunpack.c.l.b16 %v76
  %v661 = vunpack.c.l.b16 %v77
  %v662 = vunpack.c.l.b16 %v78
  %v663 = vunpack.c.l.b16 %v79
  %v664 = vunpack.c.l.b16 %v80
  %v665 = vunpack.c.l.b16 %v81
  %v666 = vunpack.c.l.b16 %v82
  %v667 = vunpack.c.l.b16 %v83
  %v668 = vunpack.c.l.b16 %v84
  %v669 = vunpack.c.l.b16 %v85
  %v670 = vunpack.c.l.b16 %v86
  %v671 = vunpack.c.l.b16 %v87
  %v672 = vunpack.c.l.b16 %v88
  %v673 = vunpack.c.l.b16 %v89
  %v674 = vunpack.c.l.b16 %v90
  %v675 = vunpack.c.l.b16 %v91
  %v676 = vunpack.c.l.b16 %v92
  %v677 = vunpack.c.l.b16 %v93
  %v678 = vunpack.c.l.b16 %v94
  %v679 = vunpack.c.l.b16 %v95
  %v680 = vunpack.c.l.b16 %v96
  %v681 = vunpack.c.l.b16 %v97
  %v682 = vunpack.c.l.b16 %v98
  %v683 = vunpack.c.l.b16 %v99
  %v684 = vunpack.c.l.b16 %v100
  %v685 = vunpack.c.l.b16 %v101
  %v686 = vunpack.c.l.b16 %v102
  %v687 = vunpack.c.l.b16 %v103
  %v688 = vunpack.c.l.b16 %v104
  %v689 = vunpack.c.l.b16 %v105
  %v690 = vunpack.c.l.b16 %v106
  %v691 = vunpack.c.l.b16 %v107
  %v692 = vunpack.c.l.b16 %v108
  %v693 = vunpack.c.l.b16 %v109
  %v694 = vunpack.c.l.b16 %v110
  %v695 = vunpack.c.l.b16 %v111
  %v696 = vunpack.c.l.b16 %v112
  %v697 = vunpack.c.l.b16 %v113
  %v698 = vunpack.c.l.b16 %v114
  %v699 = vunpack.c.l.b16 %v115
  %v700 = vunpack.c.l.b16 %v116
  %v701 = vunpack.c.l.b16 %v117
  %v702 = vunpack.c.l.b16 %v118
  %v703 = vunpack.c.l.b16 %v119
  %v704 = vunpack.c.l.b16 %v120
  %v705 = vunpack.c.l.b16 %v121
  %v706 = vunpack.c.l.b16 %v122
  %v707 = vunpack.c.l.b16 %v123
  %v708 = vunpack.c.l.b16 %v124
  %v709 = vunpack.c.l.b16 %v125
  %v710 = vunpack.c.l.b16 %v126
  %v711 = vunpack.c.l.b16 %v127
  %v712 = vunpack.c.l.b16 %v128
  %v713 = vunpack.c.l.b16 %v129
  %v714 = vunpack.c.l.b16 %v130
  %v715 = vunpack.c.l.b16 %v131
  %v716 = vunpack.c.l.b16 %v132
  %v717 = vunpack.c.l.b16 %v133
  %v718 = vunpack.c.l.b16 %v134
  %v719 = vunpack.c.l.b16 %v135
  %v720 = vunpack.c.l.b16 %v136
  %v721 = vunpack.c.l.b16 %v137
  %v722 = vunpack.c.l.b16 %v138
  %v723 = vunpack.c.l.b16 %v139
  %v724 = vunpack.c.l.b16 %v140
  %v725 = vunpack.c.l.b16 %v141
  %v726 = vunpack.c.l.b16 %v142
  %v727 = vunpack.c.l.b16 %v143
  %v728 = vunpack.c.l.b16 %v144
  %v729 = vunpack.c.l.b16 %v145
  %v730 = vunpack.c.l.b16 %v146
  %v731 = vunpack.c.l.b16 %v147
  %v732 = vunpack.c.l.b16 %v148
  %v733 = vunpack.c.l.b16 %v149
  %v734 = vunpack.c.l.b16 %v150
  %v735 = vunpack.c.l.b16 %v151
  %v736 = vunpack.c.l.b16 %v152
  %v737 = vunpack.c.l.b16 %v153
  %v738 = vunpack.c.l.b16 %v154
  %v739 = vunpack.c.l.b16 %v155
  %v740 = vunpack.c.l.b16 %v156
  %v741 = vunpack.c.l.b16 %v157
  %v742 = vunpack.c.l.b16 %v158
  %v743 = vunpack.c.l.b16 %v159
  %v744 = vunpack.c.l.b16 %v160
  %v745 = vunpack.c.l.b16 %v161
  %v746 = vunpack.c.l.b16 %v162
  %v747 = vunpack.c.l.b16 %v163
  %v748 = vunpack.c.l.b16 %v164
  %v749 = vunpack.c.l.b16 %v165
  %v750 = vunpack.c.l.b16 %v166
  %v751 = vunpack.c.l.b16 %v167
  %v752 = vunpack.c.l.b16 %v168
  %v753 = vunpack.c.l.b16 %v169
  %v754 = vunpack.c.l.b16 %v170
  %v755 = vunpack.c.l.b16 %v171
  %v756 = vunpack.c.l.b16 %v172
  %v757 = vunpack.c.l.b16 %v173
  %v758 = vunpack.c.l.b16 %v174
  %v759 = vunpack.c.l.b16 %v175
  %v760 = vunpack.c.l.b16 %v176
  %v761 = vunpack.c.l.b16 %v177
  %v762 = vunpack.c.l.b16 %v178
  %v763 = vunpack.c.l.b16 %v179
  %v764 = vunpack.c.l.b16 %v180
  %v765 = vunpack.c.l.b16 %v181
  %v766 = vunpack.c.l.b16 %v182
  %v767 = vunpack.c.l.b16 %v183
  %v768 = vunpack.c.l.b16 %v184
  %v769 = vunpack.c.l.b16 %v185
  %v770 = vunpack.c.l.b16 %v186
  %v771 = vunpack.c.l.b16 %v187
  %v772 = vunpack.c.l.b16 %v188
  %v773 = vunpack.c.l.b16 %v189
  %v774 = vunpack.c.l.b16 %v190
  %v775 = vunpack.c.l.b16 %v191
  %v776 = vunpack.c.l.b16 %v192
  %v777 = vunpack.c.l.b16 %v193
  %v778 = vunpack.c.l.b16 %v194
  %v779 = vunpack.c.l.b16 %v195
  %v780 = vunpack.c.l.b16 %v196
  %v781 = vunpack.c.l.b16 %v197
  %v782 = vunpack.c.l.b16 %v198
  %v783 = vunpack.c.l.b16 %v199
  %v784 = vunpack.c.l.b16 %v200
  %v785 = vunpack.c.l.b16 %v201
  %v786 = vunpack.c.l.b16 %v202
  %v787 = vunpack.c.l.b16 %v203
  %v788 = vunpack.c.l.b16 %v204
  %v789 = vunpack.c.l.b16 %v205
  %v790 = vunpack.c.l.b16 %v206
  %v791 = vunpack.c.l.b16 %v207
  %v792 = vunpack.c.l.b16 %v208
  %v793 = vunpack.c.l.b16 %v209
  %v794 = vunpack.c.l.b16 %v210
  %v795 = vunpack.c.l.b16 %v211
  %v796 = vunpack.c.l.b16 %v212
  %v797 = vunpack.c.l.b16 %v213
  %v798 = vunpack.c.l.b16 %v214
  %v799 = vunpack.c.l.b16 %v215
  %v800 = vunpack.c.l.b16 %v216
  %v801 = vunpack.c.l.b16 %v217
  %v802 = vunpack.c.l.b16 %v218
  %v803 = vunpack.c.l.b16 %v219
  %v804 = vunpack.c.l.b16 %v220
  %v805 = vunpack.c.l.b16 %v221
  %v806 = vunpack.c.l.b16 %v222
  %v807 = vunpack.c.l.b16 %v223
  %v808 = vunpack.c.l.b16 %v224
  %v809 = vunpack.c.l.b16 %v225
  %v810 = vunpack.c.l.b16 %v226
  %v811 = vunpack.c.l.b16 %v227
  %v812 = vunpack.c.l.b16 %v228
  %v813 = vunpack.c.l.b16 %v229
  %v814 = vunpack.c.l.b16 %v230
  %v815 = vunpack.c.l.b16 %v231
  %v816 = vunpack.c.l.b16 %v232
  %v817 = vunpack.c.l.b16 %v233
  %v818 = vunpack.c.l.b16 %v234
  %v819 = vunpack.c.l.b16 %v235
  %v820 = vunpack.c.l.b16 %v236
  %v821 = vunpack.c.l.b16 %v237
  %v822 = vunpack.c.l.b16 %v238
  %v823 = vunpack.c.l.b16 %v239
  %v824 = vunpack.c.l.b16 %v240
  %v825 = vunpack.c.l.b16 %v241
  %v826 = vunpack.c.l.b16 %v242
  %v827 = vunpack.c.l.b16 %v243
  %v828 = vunpack.c.l.b16 %v244
  %v829 = vunpack.c.l.b16 %v245
  %v830 = vunpack.c.l.b16 %v246
  %v831 = vunpack.c.l.b16 %v247
  %v832 = vunpack.c.l.b16 %v248
  %v833 = vunpack.c.l.b16 %v249
  %v834 = vunpack.c.l.b16 %v250
  %v835 = vunpack.c.l.b16 %v251
  %v836 = vunpack.c.l.b16 %v252
  %v837 = vunpack.c.l.b16 %v253
  %v838 = vunpack.c.l.b16 %v254
  %v839 = vunpack.c.l.b16 %v255
  %v840 = vunpack.c.l.b16 %v256
  %v841 = vunpack.c.l.b16 %v257
  %v842 = vunpack.c.l.b16 %v258
  %v843 = vunpack.c.l.b16 %v259
  %v844 = vunpack.c.l.b16 %v260
  %v845 = vunpack.c.l.b16 %v261
  %v846 = vunpack.c.l.b16 %v262
  %v847 = vunpack.c.l.b16 %v263
  %v848 = vunpack.c.l.b16 %v264
  %v849 = vunpack.c.l.b16 %v265
  %v850 = vunpack.c.l.b16 %v266
  %v851 = vunpack.c.l.b16 %v267
  %v852 = vunpack.c.l.b16 %v268
  %v853 = vunpack.c.l.b16 %v269
  %v854 = vunpack.c.l.b16 %v270
  %v855 = vunpack.c.l.b16 %v271
  %v856 = vunpack.c.l.b16 %v272
  %v857 = vunpack.c.l.b16 %v273
  %v858 = vunpack.c.l.b16 %v274
  %v859 = vunpack.c.l.b16 %v275
  %v860 = vunpack.c.l.b16 %v276
  %v861 = vunpack.c.l.b16 %v277
  %v862 = vunpack.c.l.b16 %v278
  %v863 = vunpack.c.l.b16 %v279
  %v864 = vunpack.c.l.b16 %v280
  %v865 = vunpack.c.l.b16 %v281
  %v866 = vunpack.c.l.b16 %v282
  %v867 = vunpack.c.l.b16 %v283
  %v868 = vunpack.c.l.b16 %v284
  %v869 = vunpack.c.l.b16 %v285
  %v870 = vunpack.c.l.b16 %v286
  %v871 = vunpack.c.l.b16 %v287
  %v872 = vunpack.c.l.b16 %v288
  %v873 = vunpack.c.l.b16 %v289
  %v874 = vunpack.c.l.b16 %v290
  %v875 = vunpack.c.l.b16 %v291
  %v876 = vunpack.c.l.b16 %v292
  %v877 = vunpack.c.l.b16 %v293
  %v878 = vunpack.c.l.b16 %v294
  %v879 = vunpack.c.l.b16 %v295
  %v880 = vunpack.c.l.b16 %v296
  %v881 = vpack.c.b16 %v632, %v631
  %v882 = vpack.c.b16 %v634, %v633
  %v883 = vpack.c.b16 %v636, %v635
  %v884 = vpack.c.b16 %v638, %v637
  %v885 = vpack.c.b16 %v640, %v639
  %v886 = vpack.c.b16 %v642, %v641
  %v887 = vpack.c.b16 %v644, %v643
  %v888 = vpack.c.b16 %v646, %v645
  %v889 = vpack.c.b16 %v648, %v647
  %v890 = vpack.c.b16 %v650, %v649
  %v891 = vpack.c.b16 %v652, %v651
  %v892 = vpack.c.b16 %v654, %v653
  %v893 = vpack.c.b16 %v656, %v655
  %v894 = vpack.c.b16 %v658, %v657
  %v895 = vpack.c.b16 %v660, %v659
  %v896 = vpack.c.b16 %v662, %v661
  %v897 = vpack.c.b16 %v664, %v663
  %v898 = vpack.c.b16 %v666, %v665
  %v899 = vpack.c.b16 %v668, %v667
  %v900 = vpack.c.b16 %v670, %v669
  %v901 = vpack.c.b16 %v672, %v671
  %v902 = vpack.c.b16 %v674, %v673
  %v903 = vpack.c.b16 %v676, %v675
  %v904 = vpack.c.b16 %v678, %v677
  %v905 = vpack.c.b16 %v680, %v679
  %v906 = vpack.c.b16 %v682, %v681
  %v907 = vpack.c.b16 %v684, %v683
  %v908 = vpack.c.b16 %v686, %v685
  %v909 = vpack.c.b16 %v688, %v687
  %v910 = vpack.c.b16 %v690, %v689
  %v911 = vpack.c.b16 %v692, %v691
  %v912 = vpack.c.b16 %v694, %v693
  %v913 = vpack.c.b16 %v696, %v695
  %v914 = vpack.c.b16 %v698, %v697
  %v915 = vpack.c.b16 %v700, %v699
  %v916 = vpack.c.b16 %v702, %v701
  %v917 = vpack.c.b16 %v704, %v703
  %v918 = vpack.c.b16 %v706, %v705
  %v919 = vpack.c.b16 %v708, %v707
  %v920 = vpack.c.b16 %v710, %v709
  %v921 = vpack.c.b16 %v712, %v711
  %v922 = vpack.c.b16 %v714, %v713
  %v923 = vpack.c.b16 %v716, %v715
  %v924 = vpack.c.b16 %v718, %v717
  %v925 = vpack.c.b16 %v720, %v719
  %v926 = vpack.c.b16 %v722, %v721
  %v927 = vpack.c.b16 %v724, %v723
  %v928 = vpack.c.b16 %v726, %v725
  %v929 = vpack.c.b16 %v728, %v727
  %v930 = vpack.c.b16 %v730, %v729
  %v931 = vpack.c.b16 %v732, %v731
  %v932 = vpack.c.b16 %v734, %v733
  %v933 = vpack.c.b16 %v736, %v735
  %v934 = vpack.c.b16 %v738, %v737
  %v935 = vpack.c.b16 %v740, %v739
  %v936 = vpack.c.b16 %v742, %v741
  %v937 = vpack.c.b16 %v744, %v743
  %v938 = vpack.c.b16 %v746, %v745
  %v939 = vpack.c.b16 %v748, %v747
  %v940 = vpack.c.b16 %v750, %v749
  %v941 = vpack.c.b16 %v752, %v751
  %v942 = vpack.c.b16 %v754, %v753
  %v943 = vpack.c.b16 %v756, %v755
  %v944 = vpack.c.b16 %v758, %v757
  %v945 = vpack.c.b16 %v760, %v759
  %v946 = vpack.c.b16 %v762, %v761
  %v947 = vpack.c.b16 %v764, %v763
  %v948 = vpack.c.b16 %v766, %v765
  %v949 = vpack.c.b16 %v768, %v767
  %v950 = vpack.c.b16 %v770, %v769
  %v951 = vpack.c.b16 %v772, %v771
  %v952 = vpack.c.b16 %v774, %v773
  %v953 = vpack.c.b16 %v776, %v775
  %v954 = vpack.c.b16 %v778, %v777
  %v955 = vpack.c.b16 %v780, %v779
  %v956 = vpack.c.b16 %v782, %v781
  %v957 = vpack.c.b16 %v784, %v783
  %v958 = vpack.c.b16 %v786, %v785
  %v959 = vpack.c.b16 %v788, %v787
  %v960 = vpack.c.b16 %v790, %v789
  %v961 = vpack.c.b16 %v792, %v791
  %v962 = vpack.c.b16 %v794, %v793
  %v963 = vpack.c.b16 %v796, %v795
  %v964 = vpack.c.b16 %v798, %v797
  %v965 = vpack.c.b16 %v800, %v799
  %v966 = vpack.c.b16 %v802, %v801
  %v967 = vpack.c.b16 %v804, %v803
  %v968 = vpack.c.b16 %v806, %v805
  %v969 = vpack.c.b16 %v808, %v807
  %v970 = vpack.c.b16 %v810, %v809
  %v971 = vpack.c.b16 %v812, %v811
  %v972 = vpack.c.b16 %v814, %v813
  %v973 = vpack.c.b16 %v816, %v815
  %v974 = vpack.c.b16 %v818, %v817
  %v975 = vpack.c.b16 %v820, %v819
  %v976 = vpack.c.b16 %v822, %v821
  %v977 = vpack.c.b16 %v824, %v823
  %v978 = vpack.c.b16 %v826, %v825
  %v979 = vpack.c.b16 %v828, %v827
  %v980 = vpack.c.b16 %v830, %v829
  %v981 = vpack.c.b16 %v832, %v831
  %v982 = vpack.c.b16 %v834, %v833
  %v983 = vpack.c.b16 %v836, %v835
  %v984 = vpack.c.b16 %v838, %v837
  %v985 = vpack.c.b16 %v840, %v839
  %v986 = vpack.c.b16 %v842, %v841
  %v987 = vpack.c.b16 %v844, %v843
  %v988 = vpack.c.b16 %v846, %v845
  %v989 = vpack.c.b16 %v848, %v847
  %v990 = vpack.c.b16 %v850, %v849
  %v991 = vpack.c.b16 %v852, %v851
  %v992 = vpack.c.b16 %v854, %v853
  %v993 = vpack.c.b16 %v856, %v855
  %v994 = vpack.c.b16 %v858, %v857
  %v995 = vpack.c.b16 %v860, %v859
  %v996 = vpack.c.b16 %v862, %v861
  %v997 = vpack.c.b16 %v864, %v863
  %v998 = vpack.c.b16 %v866, %v865
  %v999 = vpack.c.b16 %v868, %v867
  %v1000 = vpack.c.b16 %v870, %v869
  %v1001 = vpack.c.b16 %v872, %v871
  %v1002 = vpack.c.b16 %v874, %v873
  %v1003 = vpack.c.b16 %v876, %v875
  %v1004 = vpack.c.b16 %v878, %v877
  %v1005 = vpack.c.b16 %v880, %v879
  %vm1131 = vcmask 654336
  %v1133 = vsel %vm1131, %v365, 0
  %1135 = vmatprep.subr.bf16.mxu0 0
  %1136 = vmatpush1.bf16.msra.mxu0 %v881
  %1137 = vmatprep.subr.bf16.mxu0 0
  %1138 = vmatpush1.bf16.msra.mxu0 %v882
  %1139 = vmatprep.subr.bf16.mxu0 0
  %1140 = vmatpush1.bf16.msra.mxu0 %v883
  %1141 = vmatprep.subr.bf16.mxu0 0
  %1142 = vmatpush1.bf16.msra.mxu0 %v884
  %1143 = vmatprep.subr.bf16.mxu0 0
  %1144 = vmatpush1.bf16.msra.mxu0 %v885
  %1145 = vmatprep.subr.bf16.mxu0 0
  %1146 = vmatpush1.bf16.msra.mxu0 %v886
  %1147 = vmatprep.subr.bf16.mxu0 0
  %1148 = vmatpush1.bf16.msra.mxu0 %v887
  %1149 = vmatprep.subr.bf16.mxu0 0
  %1150 = vmatpush1.bf16.msra.mxu0 %v888
  %1151 = vmatprep.subr.bf16.mxu0 0
  %1152 = vmatpush1.bf16.msra.mxu0 %v889
  %1153 = vmatprep.subr.bf16.mxu0 0
  %1154 = vmatpush1.bf16.msra.mxu0 %v890
  %1155 = vmatprep.subr.bf16.mxu0 0
  %1156 = vmatpush1.bf16.msra.mxu0 %v891
  %1157 = vmatprep.subr.bf16.mxu0 0
  %1158 = vmatpush1.bf16.msra.mxu0 %v892
  %1159 = vmatprep.subr.bf16.mxu0 0
  %1160 = vmatpush1.bf16.msra.mxu0 %v893
  %1161 = vmatprep.subr.bf16.mxu0 0
  %1162 = vmatpush1.bf16.msra.mxu0 %v894
  %1163 = vmatprep.subr.bf16.mxu0 0
  %1164 = vmatpush1.bf16.msra.mxu0 %v895
  %1165 = vmatprep.subr.bf16.mxu0 0
  %1166 = vmatpush1.bf16.msra.mxu0 %v896
  %1167 = vmatprep.mubr.bf16.mxu0 %v351
  %1168 = vmatmul.mubr.bf16.gmra.mrb[0].mxu0 %v350
  %v1169 = vpop.f32.mrb[0].mxu0
  %v1170 = vadd.f32 %v301, %v1169
  %v1171 = vpop.f32.mrb[0].mxu0
  %v1172 = vpop.f32.mrb[0].mxu0
  %v1173 = vadd.f32 %v301, %v1172
  %v1174 = vpop.f32.mrb[0].mxu0
  %1175 = vdwg.mxu0
  %1176 = vmatprep.subr.bf16.mxu0 0
  %1177 = vmatpush1.bf16.msra.mxu0 %v897
  %1178 = vmatprep.subr.bf16.mxu0 0
  %1179 = vmatpush1.bf16.msra.mxu0 %v898
  %1180 = vmatprep.subr.bf16.mxu0 0
  %1181 = vmatpush1.bf16.msra.mxu0 %v899
  %1182 = vmatprep.subr.bf16.mxu0 0
  %1183 = vmatpush1.bf16.msra.mxu0 %v900
  %1184 = vmatprep.subr.bf16.mxu0 0
  %1185 = vmatpush1.bf16.msra.mxu0 %v901
  %1186 = vmatprep.subr.bf16.mxu0 0
  %1187 = vmatpush1.bf16.msra.mxu0 %v902
  %1188 = vmatprep.subr.bf16.mxu0 0
  %1189 = vmatpush1.bf16.msra.mxu0 %v903
  %1190 = vmatprep.subr.bf16.mxu0 0
  %1191 = vmatpush1.bf16.msra.mxu0 %v904
  %1192 = vmatprep.subr.bf16.mxu0 0
  %1193 = vmatpush1.bf16.msra.mxu0 %v905
  %1194 = vmatprep.subr.bf16.mxu0 0
  %1195 = vmatpush1.bf16.msra.mxu0 %v906
  %1196 = vmatprep.subr.bf16.mxu0 0
  %1197 = vmatpush1.bf16.msra.mxu0 %v907
  %1198 = vmatprep.subr.bf16.mxu0 0
  %1199 = vmatpush1.bf16.msra.mxu0 %v908
  %1200 = vmatprep.subr.bf16.mxu0 0
  %1201 = vmatpush1.bf16.msra.mxu0 %v909
  %1202 = vmatprep.subr.bf16.mxu0 0
  %1203 = vmatpush1.bf16.msra.mxu0 %v910
  %1204 = vmatprep.subr.bf16.mxu0 0
  %1205 = vmatpush1.bf16.msra.mxu0 %v911
  %1206 = vmatprep.subr.bf16.mxu0 0
  %1207 = vmatpush1.bf16.msra.mxu0 %v912
  %1208 = vmatprep.mubr.bf16.mxu0 %v353
  %1209 = vmatmul.mubr.bf16.gmra.mrb[0].mxu0 %v352
  %v1210 = vpop.f32.mrb[0].mxu0
  %v1211 = vadd.f32 %v1170, %v1210
  %v1212 = vpop.f32.mrb[0].mxu0
  %v1213 = vpop.f32.mrb[0].mxu0
  %v1214 = vadd.f32 %v1173, %v1213
  %v1215 = vpop.f32.mrb[0].mxu0
  %1216 = vdwg.mxu0
  %1217 = vmatprep.subr.bf16.mxu0 0
  %1218 = vmatpush1.bf16.msra.mxu0 %v913
  %1219 = vmatprep.subr.bf16.mxu0 0
  %1220 = vmatpush1.bf16.msra.mxu0 %v914
  %1221 = vmatprep.subr.bf16.mxu0 0
  %1222 = vmatpush1.bf16.msra.mxu0 %v915
  %1223 = vmatprep.subr.bf16.mxu0 0
  %1224 = vmatpush1.bf16.msra.mxu0 %v916
  %1225 = vmatprep.subr.bf16.mxu0 0
  %1226 = vmatpush1.bf16.msra.mxu0 %v917
  %1227 = vmatprep.subr.bf16.mxu0 0
  %1228 = vmatpush1.bf16.msra.mxu0 %v918
  %1229 = vmatprep.subr.bf16.mxu0 0
  %1230 = vmatpush1.bf16.msra.mxu0 %v919
  %1231 = vmatprep.subr.bf16.mxu0 0
  %1232 = vmatpush1.bf16.msra.mxu0 %v920
  %1233 = vmatprep.subr.bf16.mxu0 0
  %1234 = vmatpush1.bf16.msra.mxu0 %v921
  %1235 = vmatprep.subr.bf16.mxu0 0
  %1236 = vmatpush1.bf16.msra.mxu0 %v922
  %1237 = vmatprep.subr.bf16.mxu0 0
  %1238 = vmatpush1.bf16.msra.mxu0 %v923
  %1239 = vmatprep.subr.bf16.mxu0 0
  %1240 = vmatpush1.bf16.msra.mxu0 %v924
  %1241 = vmatprep.subr.bf16.mxu0 0
  %1242 = vmatpush1.bf16.msra.mxu0 %v925
  %1243 = vmatprep.subr.bf16.mxu0 0
  %1244 = vmatpush1.bf16.msra.mxu0 %v926
  %1245 = vmatprep.subr.bf16.mxu0 0
  %1246 = vmatpush1.bf16.msra.mxu0 %v927
  %1247 = vmatprep.subr.bf16.mxu0 0
  %1248 = vmatpush1.bf16.msra.mxu0 %v928
  %1249 = vmatprep.mubr.bf16.mxu0 %v355
  %1250 = vmatmul.mubr.bf16.gmra.mrb[0].mxu0 %v354
  %v1251 = vpop.f32.mrb[0].mxu0
  %v1252 = vadd.f32 %v1211, %v1251
  %v1253 = vpop.f32.mrb[0].mxu0
  %v1254 = vpop.f32.mrb[0].mxu0
  %v1255 = vadd.f32 %v1214, %v1254
  %v1256 = vpop.f32.mrb[0].mxu0
  %1257 = vdwg.mxu0
  %1258 = vmatprep.subr.bf16.mxu0 0
  %1259 = vmatpush1.bf16.msra.mxu0 %v929
  %1260 = vmatprep.subr.bf16.mxu0 0
  %1261 = vmatpush1.bf16.msra.mxu0 %v930
  %1262 = vmatprep.subr.bf16.mxu0 0
  %1263 = vmatpush1.bf16.msra.mxu0 %v931
  %1264 = vmatprep.subr.bf16.mxu0 0
  %1265 = vmatpush1.bf16.msra.mxu0 %v932
  %1266 = vmatprep.subr.bf16.mxu0 0
  %1267 = vmatpush1.bf16.msra.mxu0 %v933
  %1268 = vmatprep.subr.bf16.mxu0 0
  %1269 = vmatpush1.bf16.msra.mxu0 %v934
  %1270 = vmatprep.subr.bf16.mxu0 0
  %1271 = vmatpush1.bf16.msra.mxu0 %v935
  %1272 = vmatprep.subr.bf16.mxu0 0
  %1273 = vmatpush1.bf16.msra.mxu0 %v936
  %1274 = vmatprep.subr.bf16.mxu0 0
  %1275 = vmatpush1.bf16.msra.mxu0 %v937
  %1276 = vmatprep.subr.bf16.mxu0 0
  %1277 = vmatpush1.bf16.msra.mxu0 %v938
  %1278 = vmatprep.subr.bf16.mxu0 0
  %1279 = vmatpush1.bf16.msra.mxu0 %v939
  %1280 = vmatprep.subr.bf16.mxu0 0
  %1281 = vmatpush1.bf16.msra.mxu0 %v940
  %1282 = vmatprep.subr.bf16.mxu0 0
  %1283 = vmatpush1.bf16.msra.mxu0 %v941
  %1284 = vmatprep.subr.bf16.mxu0 0
  %1285 = vmatpush1.bf16.msra.mxu0 %v942
  %1286 = vmatprep.subr.bf16.mxu0 0
  %1287 = vmatpush1.bf16.msra.mxu0 %v943
  %1288 = vmatprep.subr.bf16.mxu0 0
  %1289 = vmatpush1.bf16.msra.mxu0 %v944
  %1290 = vmatprep.mubr.bf16.mxu0 %v357
  %1291 = vmatmul.mubr.bf16.gmra.mrb[0].mxu0 %v356
  %v1292 = vpop.f32.mrb[0].mxu0
  %v1293 = vadd.f32 %v1252, %v1292
  %v1294 = vpop.f32.mrb[0].mxu0
  %v1295 = vpop.f32.mrb[0].mxu0
  %v1296 = vadd.f32 %v1255, %v1295
  %v1297 = vpop.f32.mrb[0].mxu0
  %1298 = vdwg.mxu0
  %1299 = vmatprep.subr.bf16.mxu0 0
  %1300 = vmatpush1.bf16.msra.mxu0 %v945
  %1301 = vmatprep.subr.bf16.mxu0 0
  %1302 = vmatpush1.bf16.msra.mxu0 %v946
  %1303 = vmatprep.subr.bf16.mxu0 0
  %1304 = vmatpush1.bf16.msra.mxu0 %v947
  %1305 = vmatprep.subr.bf16.mxu0 0
  %1306 = vmatpush1.bf16.msra.mxu0 %v948
  %1307 = vmatprep.subr.bf16.mxu0 0
  %1308 = vmatpush1.bf16.msra.mxu0 %v949
  %1309 = vmatprep.subr.bf16.mxu0 0
  %1310 = vmatpush1.bf16.msra.mxu0 %v950
  %1311 = vmatprep.subr.bf16.mxu0 0
  %1312 = vmatpush1.bf16.msra.mxu0 %v951
  %1313 = vmatprep.subr.bf16.mxu0 0
  %1314 = vmatpush1.bf16.msra.mxu0 %v952
  %1315 = vmatprep.subr.bf16.mxu0 0
  %1316 = vmatpush1.bf16.msra.mxu0 %v953
  %1317 = vmatprep.subr.bf16.mxu0 0
  %1318 = vmatpush1.bf16.msra.mxu0 %v954
  %1319 = vmatprep.subr.bf16.mxu0 0
  %1320 = vmatpush1.bf16.msra.mxu0 %v955
  %1321 = vmatprep.subr.bf16.mxu0 0
  %1322 = vmatpush1.bf16.msra.mxu0 %v956
  %1323 = vmatprep.subr.bf16.mxu0 0
  %1324 = vmatpush1.bf16.msra.mxu0 %v957
  %1325 = vmatprep.subr.bf16.mxu0 0
  %1326 = vmatpush1.bf16.msra.mxu0 %v958
  %1327 = vmatprep.subr.bf16.mxu0 0
  %1328 = vmatpush1.bf16.msra.mxu0 %v959
  %1329 = vmatprep.subr.bf16.mxu0 0
  %1330 = vmatpush1.bf16.msra.mxu0 %v960
  %1331 = vmatprep.mubr.bf16.mxu0 %v359
  %1332 = vmatmul.mubr.bf16.gmra.mrb[0].mxu0 %v358
  %v1333 = vpop.f32.mrb[0].mxu0
  %v1334 = vadd.f32 %v1293, %v1333
  %v1335 = vpop.f32.mrb[0].mxu0
  %v1336 = vpop.f32.mrb[0].mxu0
  %v1337 = vadd.f32 %v1296, %v1336
  %v1338 = vpop.f32.mrb[0].mxu0
  %1339 = vdwg.mxu0
  %1340 = vmatprep.subr.bf16.mxu0 0
  %1341 = vmatpush1.bf16.msra.mxu0 %v961
  %1342 = vmatprep.subr.bf16.mxu0 0
  %1343 = vmatpush1.bf16.msra.mxu0 %v962
  %1344 = vmatprep.subr.bf16.mxu0 0
  %1345 = vmatpush1.bf16.msra.mxu0 %v963
  %1346 = vmatprep.subr.bf16.mxu0 0
  %1347 = vmatpush1.bf16.msra.mxu0 %v964
  %1348 = vmatprep.subr.bf16.mxu0 0
  %1349 = vmatpush1.bf16.msra.mxu0 %v965
  %1350 = vmatprep.subr.bf16.mxu0 0
  %1351 = vmatpush1.bf16.msra.mxu0 %v966
  %1352 = vmatprep.subr.bf16.mxu0 0
  %1353 = vmatpush1.bf16.msra.mxu0 %v967
  %1354 = vmatprep.subr.bf16.mxu0 0
  %1355 = vmatpush1.bf16.msra.mxu0 %v968
  %1356 = vmatprep.subr.bf16.mxu0 0
  %1357 = vmatpush1.bf16.msra.mxu0 %v969
  %1358 = vmatprep.subr.bf16.mxu0 0
  %1359 = vmatpush1.bf16.msra.mxu0 %v970
  %1360 = vmatprep.subr.bf16.mxu0 0
  %1361 = vmatpush1.bf16.msra.mxu0 %v971
  %1362 = vmatprep.subr.bf16.mxu0 0
  %1363 = vmatpush1.bf16.msra.mxu0 %v972
  %1364 = vmatprep.subr.bf16.mxu0 0
  %1365 = vmatpush1.bf16.msra.mxu0 %v973
  %1366 = vmatprep.subr.bf16.mxu0 0
  %1367 = vmatpush1.bf16.msra.mxu0 %v974
  %1368 = vmatprep.subr.bf16.mxu0 0
  %1369 = vmatpush1.bf16.msra.mxu0 %v975
  %1370 = vmatprep.subr.bf16.mxu0 0
  %1371 = vmatpush1.bf16.msra.mxu0 %v976
  %1372 = vmatprep.mubr.bf16.mxu0 %v361
  %1373 = vmatmul.mubr.bf16.gmra.mrb[0].mxu0 %v360
  %v1374 = vpop.f32.mrb[0].mxu0
  %v1375 = vadd.f32 %v1334, %v1374
  %v1376 = vpop.f32.mrb[0].mxu0
  %v1377 = vpop.f32.mrb[0].mxu0
  %v1378 = vadd.f32 %v1337, %v1377
  %v1379 = vpop.f32.mrb[0].mxu0
  %1380 = vdwg.mxu0
  %1381 = vmatprep.subr.bf16.mxu0 0
  %1382 = vmatpush1.bf16.msra.mxu0 %v977
  %1383 = vmatprep.subr.bf16.mxu0 0
  %1384 = vmatpush1.bf16.msra.mxu0 %v978
  %1385 = vmatprep.subr.bf16.mxu0 0
  %1386 = vmatpush1.bf16.msra.mxu0 %v979
  %1387 = vmatprep.subr.bf16.mxu0 0
  %1388 = vmatpush1.bf16.msra.mxu0 %v980
  %1389 = vmatprep.subr.bf16.mxu0 0
  %1390 = vmatpush1.bf16.msra.mxu0 %v981
  %1391 = vmatprep.subr.bf16.mxu0 0
  %1392 = vmatpush1.bf16.msra.mxu0 %v982
  %1393 = vmatprep.subr.bf16.mxu0 0
  %1394 = vmatpush1.bf16.msra.mxu0 %v983
  %1395 = vmatprep.subr.bf16.mxu0 0
  %1396 = vmatpush1.bf16.msra.mxu0 %v984
  %1397 = vmatprep.subr.bf16.mxu0 0
  %1398 = vmatpush1.bf16.msra.mxu0 %v985
  %1399 = vmatprep.subr.bf16.mxu0 0
  %1400 = vmatpush1.bf16.msra.mxu0 %v986
  %1401 = vmatprep.subr.bf16.mxu0 0
  %1402 = vmatpush1.bf16.msra.mxu0 %v987
  %1403 = vmatprep.subr.bf16.mxu0 0
  %1404 = vmatpush1.bf16.msra.mxu0 %v988
  %1405 = vmatprep.subr.bf16.mxu0 0
  %1406 = vmatpush1.bf16.msra.mxu0 %v989
  %1407 = vmatprep.subr.bf16.mxu0 0
  %1408 = vmatpush1.bf16.msra.mxu0 %v990
  %1409 = vmatprep.subr.bf16.mxu0 0
  %1410 = vmatpush1.bf16.msra.mxu0 %v991
  %1411 = vmatprep.subr.bf16.mxu0 0
  %1412 = vmatpush1.bf16.msra.mxu0 %v992
  %1413 = vmatprep.mubr.bf16.mxu0 %v363
  %1414 = vmatmul.mubr.bf16.gmra.mrb[0].mxu0 %v362
  %v1415 = vpop.f32.mrb[0].mxu0
  %v1416 = vadd.f32 %v1375, %v1415
  %v1417 = vpop.f32.mrb[0].mxu0
  %v1418 = vpop.f32.mrb[0].mxu0
  %v1419 = vadd.f32 %v1378, %v1418
  %v1420 = vpop.f32.mrb[0].mxu0
  %1421 = vdwg.mxu0
  %1422 = vmatprep.subr.bf16.mxu0 0
  %1423 = vmatpush1.bf16.msra.mxu0 %v993
  %1424 = vmatprep.subr.bf16.mxu0 0
  %1425 = vmatpush1.bf16.msra.mxu0 %v994
  %1426 = vmatprep.subr.bf16.mxu0 0
  %1427 = vmatpush1.bf16.msra.mxu0 %v995
  %1428 = vmatprep.subr.bf16.mxu0 0
  %1429 = vmatpush1.bf16.msra.mxu0 %v996
  %1430 = vmatprep.subr.bf16.mxu0 0
  %1431 = vmatpush1.bf16.msra.mxu0 %v997
  %1432 = vmatprep.subr.bf16.mxu0 0
  %1433 = vmatpush1.bf16.msra.mxu0 %v998
  %1434 = vmatprep.subr.bf16.mxu0 0
  %1435 = vmatpush1.bf16.msra.mxu0 %v999
  %1436 = vmatprep.subr.bf16.mxu0 0
  %1437 = vmatpush1.bf16.msra.mxu0 %v1000
  %1438 = vmatprep.subr.bf16.mxu0 0
  %1439 = vmatpush1.bf16.msra.mxu0 %v1001
  %1440 = vmatprep.subr.bf16.mxu0 0
  %1441 = vmatpush1.bf16.msra.mxu0 %v1002
  %1442 = vmatprep.subr.bf16.mxu0 0
  %1443 = vmatpush1.bf16.msra.mxu0 %v1003
  %1444 = vmatprep.subr.bf16.mxu0 0
  %1445 = vmatpush1.bf16.msra.mxu0 %v1004
  %1446 = vmatprep.subr.bf16.mxu0 0
  %1447 = vmatpush1.bf16.msra.mxu0 %v1005
  %1448 = vmatprep.subr.bf16.mxu0 0
  %1449 = vmatpush1.bf16.msra.mxu0 0
  %1450 = vmatprep.subr.bf16.mxu0 0
  %1451 = vmatpush1.bf16.msra.mxu0 0
  %1452 = vmatprep.subr.bf16.mxu0 0
  %1453 = vmatpush1.bf16.msra.mxu0 0
  %1454 = vmatprep.mubr.bf16.mxu0 %v1133
  %1455 = vmatmul.mubr.bf16.gmra.mrb[0].mxu0 %v364
  %v1456 = vpop.f32.mrb[0].mxu0
  %v1457 = vadd.f32 %v1416, %v1456
  %v1458 = vpop.f32.mrb[0].mxu0
  %v1459 = vpop.f32.mrb[0].mxu0
  %v1460 = vadd.f32 %v1419, %v1459
  %v1461 = vpop.f32.mrb[0].mxu0
  %1462 = vdwg.mxu0
  %s1463 = scalar_lea.vmem %s3, 1000
  %v1464 = vld [vmem:[%s1463] sm:$0xf]
  %v1465 = vld [vmem:[%s1463 + $0x4] sm:$0xf]
  %v1466 = vld [vmem:[%s1463 + $0x8] sm:$0xf]
  %v1467 = vld [vmem:[%s1463 + $0xc] sm:$0xf]
  %v1468 = vld [vmem:[%s1463 + $0x10] sm:$0xf]
  %v1469 = vld [vmem:[%s1463 + $0x14] sm:$0xf]
  %v1470 = vld [vmem:[%s1463 + $0x18] sm:$0xf]
  %v1471 = vld [vmem:[%s1463 + $0x1c] sm:$0xf]
  %v1472 = vld [vmem:[%s1463 + $0x20] sm:$0xf]
  %v1473 = vld [vmem:[%s1463 + $0x24] sm:$0xf]
  %v1474 = vld [vmem:[%s1463 + $0x28] sm:$0xf]
  %v1475 = vld [vmem:[%s1463 + $0x2c] sm:$0xf]
  %v1476 = vld [vmem:[%s1463 + $0x30] sm:$0xf]
  %v1477 = vld [vmem:[%s1463 + $0x34] sm:$0xf]
  %v1478 = vld [vmem:[%s1463 + $0x38] sm:$0xf]
  %v1479 = vld [vmem:[%s1463 + $0x3c] sm:$0xf]
  %v1480 = vld [vmem:[%s1463 + $0x40] sm:$0xf]
  %v1481 = vld [vmem:[%s1463 + $0x44] sm:$0xf]
  %v1482 = vld [vmem:[%s1463 + $0x48] sm:$0xf]
  %v1483 = vld [vmem:[%s1463 + $0x4c] sm:$0xf]
  %v1484 = vld [vmem:[%s1463 + $0x50] sm:$0xf]
  %v1485 = vld [vmem:[%s1463 + $0x54] sm:$0xf]
  %v1486 = vld [vmem:[%s1463 + $0x58] sm:$0xf]
  %v1487 = vld [vmem:[%s1463 + $0x5c] sm:$0xf]
  %v1488 = vld [vmem:[%s1463 + $0x60] sm:$0xf]
  %v1489 = vld [vmem:[%s1463 + $0x64] sm:$0xf]
  %v1490 = vld [vmem:[%s1463 + $0x68] sm:$0xf]
  %v1491 = vld [vmem:[%s1463 + $0x6c] sm:$0xf]
  %v1492 = vld [vmem:[%s1463 + $0x70] sm:$0xf]
  %v1493 = vld [vmem:[%s1463 + $0x74] sm:$0xf]
  %v1494 = vld [vmem:[%s1463 + $0x78] sm:$0xf]
  %v1495 = vld [vmem:[%s1463 + $0x7c] sm:$0xf]
  %v1496 = vld [vmem:[%s1463 + $0x80] sm:$0xf]
  %v1497 = vld [vmem:[%s1463 + $0x84] sm:$0xf]
  %v1498 = vld [vmem:[%s1463 + $0x88] sm:$0xf]
  %v1499 = vld [vmem:[%s1463 + $0x8c] sm:$0xf]
  %v1500 = vld [vmem:[%s1463 + $0x90] sm:$0xf]
  %v1501 = vld [vmem:[%s1463 + $0x94] sm:$0xf]
  %v1502 = vld [vmem:[%s1463 + $0x98] sm:$0xf]
  %v1503 = vld [vmem:[%s1463 + $0x9c] sm:$0xf]
  %v1504 = vld [vmem:[%s1463 + $0xa0] sm:$0xf]
  %v1505 = vld [vmem:[%s1463 + $0xa4] sm:$0xf]
  %v1506 = vld [vmem:[%s1463 + $0xa8] sm:$0xf]
  %v1507 = vld [vmem:[%s1463 + $0xac] sm:$0xf]
  %v1508 = vld [vmem:[%s1463 + $0xb0] sm:$0xf]
  %v1509 = vld [vmem:[%s1463 + $0xb4] sm:$0xf]
  %v1510 = vld [vmem:[%s1463 + $0xb8] sm:$0xf]
  %v1511 = vld [vmem:[%s1463 + $0xbc] sm:$0xf]
  %v1512 = vld [vmem:[%s1463 + $0xc0] sm:$0xf]
  %v1513 = vld [vmem:[%s1463 + $0xc4] sm:$0xf]
  %v1514 = vld [vmem:[%s1463 + $0xc8] sm:$0xf]
  %v1515 = vld [vmem:[%s1463 + $0xcc] sm:$0xf]
  %v1516 = vld [vmem:[%s1463 + $0xd0] sm:$0xf]
  %v1517 = vld [vmem:[%s1463 + $0xd4] sm:$0xf]
  %v1518 = vld [vmem:[%s1463 + $0xd8] sm:$0xf]
  %v1519 = vld [vmem:[%s1463 + $0xdc] sm:$0xf]
  %v1520 = vld [vmem:[%s1463 + $0xe0] sm:$0xf]
  %v1521 = vld [vmem:[%s1463 + $0xe4] sm:$0xf]
  %v1522 = vld [vmem:[%s1463 + $0xe8] sm:$0xf]
  %v1523 = vld [vmem:[%s1463 + $0xec] sm:$0xf]
  %v1524 = vld [vmem:[%s1463 + $0xf0] sm:$0xf]
  %v1525 = vld [vmem:[%s1463 + $0xf4] sm:$0xf]
  %v1526 = vld [vmem:[%s1463 + $0xf8] sm:$0xf]
  %v1527 = vld [vmem:[%s1463 + $0xfc] sm:$0xf]
  %v1528 = vld [vmem:[%s1463 + $0x100] sm:$0xf]
  %v1529 = vld [vmem:[%s1463 + $0x104] sm:$0xf]
  %v1530 = vld [vmem:[%s1463 + $0x108] sm:$0xf]
  %v1531 = vld [vmem:[%s1463 + $0x10c] sm:$0xf]
  %v1532 = vld [vmem:[%s1463 + $0x110] sm:$0xf]
  %v1533 = vld [vmem:[%s1463 + $0x114] sm:$0xf]
  %v1534 = vld [vmem:[%s1463 + $0x118] sm:$0xf]
  %v1535 = vld [vmem:[%s1463 + $0x11c] sm:$0xf]
  %v1536 = vld [vmem:[%s1463 + $0x120] sm:$0xf]
  %v1537 = vld [vmem:[%s1463 + $0x124] sm:$0xf]
  %v1538 = vld [vmem:[%s1463 + $0x128] sm:$0xf]
  %v1539 = vld [vmem:[%s1463 + $0x12c] sm:$0xf]
  %v1540 = vld [vmem:[%s1463 + $0x130] sm:$0xf]
  %v1541 = vld [vmem:[%s1463 + $0x134] sm:$0xf]
  %v1542 = vld [vmem:[%s1463 + $0x138] sm:$0xf]
  %v1543 = vld [vmem:[%s1463 + $0x13c] sm:$0xf]
  %v1544 = vld [vmem:[%s1463 + $0x140] sm:$0xf]
  %v1545 = vld [vmem:[%s1463 + $0x144] sm:$0xf]
  %v1546 = vld [vmem:[%s1463 + $0x148] sm:$0xf]
  %v1547 = vld [vmem:[%s1463 + $0x14c] sm:$0xf]
  %v1548 = vld [vmem:[%s1463 + $0x150] sm:$0xf]
  %v1549 = vld [vmem:[%s1463 + $0x154] sm:$0xf]
  %v1550 = vld [vmem:[%s1463 + $0x158] sm:$0xf]
  %v1551 = vld [vmem:[%s1463 + $0x15c] sm:$0xf]
  %v1552 = vld [vmem:[%s1463 + $0x160] sm:$0xf]
  %v1553 = vld [vmem:[%s1463 + $0x164] sm:$0xf]
  %v1554 = vld [vmem:[%s1463 + $0x168] sm:$0xf]
  %v1555 = vld [vmem:[%s1463 + $0x16c] sm:$0xf]
  %v1556 = vld [vmem:[%s1463 + $0x170] sm:$0xf]
  %v1557 = vld [vmem:[%s1463 + $0x174] sm:$0xf]
  %v1558 = vld [vmem:[%s1463 + $0x178] sm:$0xf]
  %v1559 = vld [vmem:[%s1463 + $0x17c] sm:$0xf]
  %v1560 = vld [vmem:[%s1463 + $0x180] sm:$0xf]
  %v1561 = vld [vmem:[%s1463 + $0x184] sm:$0xf]
  %v1562 = vld [vmem:[%s1463 + $0x188] sm:$0xf]
  %v1563 = vld [vmem:[%s1463 + $0x18c] sm:$0xf]
  %v1564 = vld [vmem:[%s1463 + $0x190] sm:$0xf]
  %v1565 = vld [vmem:[%s1463 + $0x194] sm:$0xf]
  %v1566 = vld [vmem:[%s1463 + $0x198] sm:$0xf]
  %v1567 = vld [vmem:[%s1463 + $0x19c] sm:$0xf]
  %v1568 = vld [vmem:[%s1463 + $0x1a0] sm:$0xf]
  %v1569 = vld [vmem:[%s1463 + $0x1a4] sm:$0xf]
  %v1570 = vld [vmem:[%s1463 + $0x1a8] sm:$0xf]
  %v1571 = vld [vmem:[%s1463 + $0x1ac] sm:$0xf]
  %v1572 = vld [vmem:[%s1463 + $0x1b0] sm:$0xf]
  %v1573 = vld [vmem:[%s1463 + $0x1b4] sm:$0xf]
  %v1574 = vld [vmem:[%s1463 + $0x1b8] sm:$0xf]
  %v1575 = vld [vmem:[%s1463 + $0x1bc] sm:$0xf]
  %v1576 = vld [vmem:[%s1463 + $0x1c0] sm:$0xf]
  %v1577 = vld [vmem:[%s1463 + $0x1c4] sm:$0xf]
  %v1578 = vld [vmem:[%s1463 + $0x1c8] sm:$0xf]
  %v1579 = vld [vmem:[%s1463 + $0x1cc] sm:$0xf]
  %v1580 = vld [vmem:[%s1463 + $0x1d0] sm:$0xf]
  %v1581 = vld [vmem:[%s1463 + $0x1d4] sm:$0xf]
  %v1582 = vld [vmem:[%s1463 + $0x1d8] sm:$0xf]
  %v1583 = vld [vmem:[%s1463 + $0x1dc] sm:$0xf]
  %v1584 = vld [vmem:[%s1463 + $0x1e0] sm:$0xf]
  %v1585 = vld [vmem:[%s1463 + $0x1e4] sm:$0xf]
  %v1586 = vld [vmem:[%s1463 + $0x1e8] sm:$0xf]
  %v1587 = vld [vmem:[%s1463 + $0x1ec] sm:$0xf]
  %v1588 = vld [vmem:[%s1463 + $0x1f0] sm:$0xf]
  %v1589 = vld [vmem:[%s1463 + $0x1f4] sm:$0xf]
  %v1590 = vld [vmem:[%s1463 + $0x1f8] sm:$0xf]
  %v1591 = vld [vmem:[%s1463 + $0x1fc] sm:$0xf]
  %v1592 = vld [vmem:[%s1463 + $0x200] sm:$0xf]
  %v1593 = vld [vmem:[%s1463 + $0x204] sm:$0xf]
  %v1594 = vld [vmem:[%s1463 + $0x208] sm:$0xf]
  %v1595 = vld [vmem:[%s1463 + $0x20c] sm:$0xf]
  %v1596 = vld [vmem:[%s1463 + $0x210] sm:$0xf]
  %v1597 = vld [vmem:[%s1463 + $0x214] sm:$0xf]
  %v1598 = vld [vmem:[%s1463 + $0x218] sm:$0xf]
  %v1599 = vld [vmem:[%s1463 + $0x21c] sm:$0xf]
  %v1600 = vld [vmem:[%s1463 + $0x220] sm:$0xf]
  %v1601 = vld [vmem:[%s1463 + $0x224] sm:$0xf]
  %v1602 = vld [vmem:[%s1463 + $0x228] sm:$0xf]
  %v1603 = vld [vmem:[%s1463 + $0x22c] sm:$0xf]
  %v1604 = vld [vmem:[%s1463 + $0x230] sm:$0xf]
  %v1605 = vld [vmem:[%s1463 + $0x234] sm:$0xf]
  %v1606 = vld [vmem:[%s1463 + $0x238] sm:$0xf]
  %v1607 = vld [vmem:[%s1463 + $0x23c] sm:$0xf]
  %v1608 = vld [vmem:[%s1463 + $0x240] sm:$0xf]
  %v1609 = vld [vmem:[%s1463 + $0x244] sm:$0xf]
  %v1610 = vld [vmem:[%s1463 + $0x248] sm:$0xf]
  %v1611 = vld [vmem:[%s1463 + $0x24c] sm:$0xf]
  %v1612 = vld [vmem:[%s1463 + $0x250] sm:$0xf]
  %v1613 = vld [vmem:[%s1463 + $0x254] sm:$0xf]
  %v1614 = vld [vmem:[%s1463 + $0x258] sm:$0xf]
  %v1615 = vld [vmem:[%s1463 + $0x25c] sm:$0xf]
  %v1616 = vld [vmem:[%s1463 + $0x260] sm:$0xf]
  %v1617 = vld [vmem:[%s1463 + $0x264] sm:$0xf]
  %v1618 = vld [vmem:[%s1463 + $0x268] sm:$0xf]
  %v1619 = vld [vmem:[%s1463 + $0x26c] sm:$0xf]
  %v1620 = vld [vmem:[%s1463 + $0x270] sm:$0xf]
  %v1621 = vld [vmem:[%s1463 + $0x274] sm:$0xf]
  %v1622 = vld [vmem:[%s1463 + $0x278] sm:$0xf]
  %v1623 = vld [vmem:[%s1463 + $0x27c] sm:$0xf]
  %v1624 = vld [vmem:[%s1463 + $0x280] sm:$0xf]
  %v1625 = vld [vmem:[%s1463 + $0x284] sm:$0xf]
  %v1626 = vld [vmem:[%s1463 + $0x288] sm:$0xf]
  %v1627 = vld [vmem:[%s1463 + $0x28c] sm:$0xf]
  %v1628 = vld [vmem:[%s1463 + $0x290] sm:$0xf]
  %v1629 = vld [vmem:[%s1463 + $0x294] sm:$0xf]
  %v1630 = vld [vmem:[%s1463 + $0x298] sm:$0xf]
  %v1631 = vld [vmem:[%s1463 + $0x29c] sm:$0xf]
  %v1632 = vld [vmem:[%s1463 + $0x2a0] sm:$0xf]
  %v1633 = vld [vmem:[%s1463 + $0x2a4] sm:$0xf]
  %v1634 = vld [vmem:[%s1463 + $0x2a8] sm:$0xf]
  %v1635 = vld [vmem:[%s1463 + $0x2ac] sm:$0xf]
  %v1636 = vld [vmem:[%s1463 + $0x2b0] sm:$0xf]
  %v1637 = vld [vmem:[%s1463 + $0x2b4] sm:$0xf]
  %v1638 = vld [vmem:[%s1463 + $0x2b8] sm:$0xf]
  %v1639 = vld [vmem:[%s1463 + $0x2bc] sm:$0xf]
  %v1640 = vld [vmem:[%s1463 + $0x2c0] sm:$0xf]
  %v1641 = vld [vmem:[%s1463 + $0x2c4] sm:$0xf]
  %v1642 = vld [vmem:[%s1463 + $0x2c8] sm:$0xf]
  %v1643 = vld [vmem:[%s1463 + $0x2cc] sm:$0xf]
  %v1644 = vld [vmem:[%s1463 + $0x2d0] sm:$0xf]
  %v1645 = vld [vmem:[%s1463 + $0x2d4] sm:$0xf]
  %v1646 = vld [vmem:[%s1463 + $0x2d8] sm:$0xf]
  %v1647 = vld [vmem:[%s1463 + $0x2dc] sm:$0xf]
  %v1648 = vld [vmem:[%s1463 + $0x2e0] sm:$0xf]
  %v1649 = vld [vmem:[%s1463 + $0x2e4] sm:$0xf]
  %v1650 = vld [vmem:[%s1463 + $0x2e8] sm:$0xf]
  %v1651 = vld [vmem:[%s1463 + $0x2ec] sm:$0xf]
  %v1652 = vld [vmem:[%s1463 + $0x2f0] sm:$0xf]
  %v1653 = vld [vmem:[%s1463 + $0x2f4] sm:$0xf]
  %v1654 = vld [vmem:[%s1463 + $0x2f8] sm:$0xf]
  %v1655 = vld [vmem:[%s1463 + $0x2fc] sm:$0xf]
  %v1656 = vld [vmem:[%s1463 + $0x300] sm:$0xf]
  %v1657 = vld [vmem:[%s1463 + $0x304] sm:$0xf]
  %v1658 = vld [vmem:[%s1463 + $0x308] sm:$0xf]
  %v1659 = vld [vmem:[%s1463 + $0x30c] sm:$0xf]
  %v1660 = vld [vmem:[%s1463 + $0x310] sm:$0xf]
  %v1661 = vld [vmem:[%s1463 + $0x314] sm:$0xf]
  %v1662 = vld [vmem:[%s1463 + $0x318] sm:$0xf]
  %v1663 = vld [vmem:[%s1463 + $0x31c] sm:$0xf]
  %v1664 = vld [vmem:[%s1463 + $0x320] sm:$0xf]
  %v1665 = vld [vmem:[%s1463 + $0x324] sm:$0xf]
  %v1666 = vld [vmem:[%s1463 + $0x328] sm:$0xf]
  %v1667 = vld [vmem:[%s1463 + $0x32c] sm:$0xf]
  %v1668 = vld [vmem:[%s1463 + $0x330] sm:$0xf]
  %v1669 = vld [vmem:[%s1463 + $0x334] sm:$0xf]
  %v1670 = vld [vmem:[%s1463 + $0x338] sm:$0xf]
  %v1671 = vld [vmem:[%s1463 + $0x33c] sm:$0xf]
  %v1672 = vld [vmem:[%s1463 + $0x340] sm:$0xf]
  %v1673 = vld [vmem:[%s1463 + $0x344] sm:$0xf]
  %v1674 = vld [vmem:[%s1463 + $0x348] sm:$0xf]
  %v1675 = vld [vmem:[%s1463 + $0x34c] sm:$0xf]
  %v1676 = vld [vmem:[%s1463 + $0x350] sm:$0xf]
  %v1677 = vld [vmem:[%s1463 + $0x354] sm:$0xf]
  %v1678 = vld [vmem:[%s1463 + $0x358] sm:$0xf]
  %v1679 = vld [vmem:[%s1463 + $0x35c] sm:$0xf]
  %v1680 = vld [vmem:[%s1463 + $0x360] sm:$0xf]
  %v1681 = vld [vmem:[%s1463 + $0x364] sm:$0xf]
  %v1682 = vld [vmem:[%s1463 + $0x368] sm:$0xf]
  %v1683 = vld [vmem:[%s1463 + $0x36c] sm:$0xf]
  %v1684 = vld [vmem:[%s1463 + $0x370] sm:$0xf]
  %v1685 = vld [vmem:[%s1463 + $0x374] sm:$0xf]
  %v1686 = vld [vmem:[%s1463 + $0x378] sm:$0xf]
  %v1687 = vld [vmem:[%s1463 + $0x37c] sm:$0xf]
  %v1688 = vld [vmem:[%s1463 + $0x380] sm:$0xf]
  %v1689 = vld [vmem:[%s1463 + $0x384] sm:$0xf]
  %v1690 = vld [vmem:[%s1463 + $0x388] sm:$0xf]
  %v1691 = vld [vmem:[%s1463 + $0x38c] sm:$0xf]
  %v1692 = vld [vmem:[%s1463 + $0x390] sm:$0xf]
  %v1693 = vld [vmem:[%s1463 + $0x394] sm:$0xf]
  %v1694 = vld [vmem:[%s1463 + $0x398] sm:$0xf]
  %v1695 = vld [vmem:[%s1463 + $0x39c] sm:$0xf]
  %v1696 = vld [vmem:[%s1463 + $0x3a0] sm:$0xf]
  %v1697 = vld [vmem:[%s1463 + $0x3a4] sm:$0xf]
  %v1698 = vld [vmem:[%s1463 + $0x3a8] sm:$0xf]
  %v1699 = vld [vmem:[%s1463 + $0x3ac] sm:$0xf]
  %v1700 = vld [vmem:[%s1463 + $0x3b0] sm:$0xf]
  %v1701 = vld [vmem:[%s1463 + $0x3b4] sm:$0xf]
  %v1702 = vld [vmem:[%s1463 + $0x3b8] sm:$0xf]
  %v1703 = vld [vmem:[%s1463 + $0x3bc] sm:$0xf]
  %v1704 = vld [vmem:[%s1463 + $0x3c0] sm:$0xf]
  %v1705 = vld [vmem:[%s1463 + $0x3c4] sm:$0xf]
  %v1706 = vld [vmem:[%s1463 + $0x3c8] sm:$0xf]
  %v1707 = vld [vmem:[%s1463 + $0x3cc] sm:$0xf]
  %v1708 = vld [vmem:[%s1463 + $0x3d0] sm:$0xf]
  %v1709 = vld [vmem:[%s1463 + $0x3d4] sm:$0xf]
  %v1710 = vld [vmem:[%s1463 + $0x3d8] sm:$0xf]
  %v1711 = vld [vmem:[%s1463 + $0x3dc] sm:$0xf]
  %v1712 = vld [vmem:[%s1463 + $0x3e0] sm:$0xf]
  %v1713 = vld [vmem:[%s1463 + $0x3e4] sm:$0xf]
  %v1714 = vld [vmem:[%s6 + $0x1] sm:$0x1]
  %v1715 = vlaneseq
  %v1716 = vshrl.u32 %v1715, 7
  %v1717 = vsub.s32 0, %v1716
  %v1718 = vrot.slane %v1714, %v1717
  %v1969 = vunpack.c.l.b16 %v1464
  %v1970 = vunpack.c.l.b16 %v1465
  %v1971 = vunpack.c.l.b16 %v1466
  %v1972 = vunpack.c.l.b16 %v1467
  %v1973 = vunpack.c.l.b16 %v1468
  %v1974 = vunpack.c.l.b16 %v1469
  %v1975 = vunpack.c.l.b16 %v1470
  %v1976 = vunpack.c.l.b16 %v1471
  %v1977 = vunpack.c.l.b16 %v1472
  %v1978 = vunpack.c.l.b16 %v1473
  %v1979 = vunpack.c.l.b16 %v1474
  %v1980 = vunpack.c.l.b16 %v1475
  %v1981 = vunpack.c.l.b16 %v1476
  %v1982 = vunpack.c.l.b16 %v1477
  %v1983 = vunpack.c.l.b16 %v1478
  %v1984 = vunpack.c.l.b16 %v1479
  %v1985 = vunpack.c.l.b16 %v1480
  %v1986 = vunpack.c.l.b16 %v1481
  %v1987 = vunpack.c.l.b16 %v1482
  %v1988 = vunpack.c.l.b16 %v1483
  %v1989 = vunpack.c.l.b16 %v1484
  %v1990 = vunpack.c.l.b16 %v1485
  %v1991 = vunpack.c.l.b16 %v1486
  %v1992 = vunpack.c.l.b16 %v1487
  %v1993 = vunpack.c.l.b16 %v1488
  %v1994 = vunpack.c.l.b16 %v1489
  %v1995 = vunpack.c.l.b16 %v1490
  %v1996 = vunpack.c.l.b16 %v1491
  %v1997 = vunpack.c.l.b16 %v1492
  %v1998 = vunpack.c.l.b16 %v1493
  %v1999 = vunpack.c.l.b16 %v1494
  %v2000 = vunpack.c.l.b16 %v1495
  %v2001 = vunpack.c.l.b16 %v1496
  %v2002 = vunpack.c.l.b16 %v1497
  %v2003 = vunpack.c.l.b16 %v1498
  %v2004 = vunpack.c.l.b16 %v1499
  %v2005 = vunpack.c.l.b16 %v1500
  %v2006 = vunpack.c.l.b16 %v1501
  %v2007 = vunpack.c.l.b16 %v1502
  %v2008 = vunpack.c.l.b16 %v1503
  %v2009 = vunpack.c.l.b16 %v1504
  %v2010 = vunpack.c.l.b16 %v1505
  %v2011 = vunpack.c.l.b16 %v1506
  %v2012 = vunpack.c.l.b16 %v1507
  %v2013 = vunpack.c.l.b16 %v1508
  %v2014 = vunpack.c.l.b16 %v1509
  %v2015 = vunpack.c.l.b16 %v1510
  %v2016 = vunpack.c.l.b16 %v1511
  %v2017 = vunpack.c.l.b16 %v1512
  %v2018 = vunpack.c.l.b16 %v1513
  %v2019 = vunpack.c.l.b16 %v1514
  %v2020 = vunpack.c.l.b16 %v1515
  %v2021 = vunpack.c.l.b16 %v1516
  %v2022 = vunpack.c.l.b16 %v1517
  %v2023 = vunpack.c.l.b16 %v1518
  %v2024 = vunpack.c.l.b16 %v1519
  %v2025 = vunpack.c.l.b16 %v1520
  %v2026 = vunpack.c.l.b16 %v1521
  %v2027 = vunpack.c.l.b16 %v1522
  %v2028 = vunpack.c.l.b16 %v1523
  %v2029 = vunpack.c.l.b16 %v1524
  %v2030 = vunpack.c.l.b16 %v1525
  %v2031 = vunpack.c.l.b16 %v1526
  %v2032 = vunpack.c.l.b16 %v1527
  %v2033 = vunpack.c.l.b16 %v1528
  %v2034 = vunpack.c.l.b16 %v1529
  %v2035 = vunpack.c.l.b16 %v1530
  %v2036 = vunpack.c.l.b16 %v1531
  %v2037 = vunpack.c.l.b16 %v1532
  %v2038 = vunpack.c.l.b16 %v1533
  %v2039 = vunpack.c.l.b16 %v1534
  %v2040 = vunpack.c.l.b16 %v1535
  %v2041 = vunpack.c.l.b16 %v1536
  %v2042 = vunpack.c.l.b16 %v1537
  %v2043 = vunpack.c.l.b16 %v1538
  %v2044 = vunpack.c.l.b16 %v1539
  %v2045 = vunpack.c.l.b16 %v1540
  %v2046 = vunpack.c.l.b16 %v1541
  %v2047 = vunpack.c.l.b16 %v1542
  %v2048 = vunpack.c.l.b16 %v1543
  %v2049 = vunpack.c.l.b16 %v1544
  %v2050 = vunpack.c.l.b16 %v1545
  %v2051 = vunpack.c.l.b16 %v1546
  %v2052 = vunpack.c.l.b16 %v1547
  %v2053 = vunpack.c.l.b16 %v1548
  %v2054 = vunpack.c.l.b16 %v1549
  %v2055 = vunpack.c.l.b16 %v1550
  %v2056 = vunpack.c.l.b16 %v1551
  %v2057 = vunpack.c.l.b16 %v1552
  %v2058 = vunpack.c.l.b16 %v1553
  %v2059 = vunpack.c.l.b16 %v1554
  %v2060 = vunpack.c.l.b16 %v1555
  %v2061 = vunpack.c.l.b16 %v1556
  %v2062 = vunpack.c.l.b16 %v1557
  %v2063 = vunpack.c.l.b16 %v1558
  %v2064 = vunpack.c.l.b16 %v1559
  %v2065 = vunpack.c.l.b16 %v1560
  %v2066 = vunpack.c.l.b16 %v1561
  %v2067 = vunpack.c.l.b16 %v1562
  %v2068 = vunpack.c.l.b16 %v1563
  %v2069 = vunpack.c.l.b16 %v1564
  %v2070 = vunpack.c.l.b16 %v1565
  %v2071 = vunpack.c.l.b16 %v1566
  %v2072 = vunpack.c.l.b16 %v1567
  %v2073 = vunpack.c.l.b16 %v1568
  %v2074 = vunpack.c.l.b16 %v1569
  %v2075 = vunpack.c.l.b16 %v1570
  %v2076 = vunpack.c.l.b16 %v1571
  %v2077 = vunpack.c.l.b16 %v1572
  %v2078 = vunpack.c.l.b16 %v1573
  %v2079 = vunpack.c.l.b16 %v1574
  %v2080 = vunpack.c.l.b16 %v1575
  %v2081 = vunpack.c.l.b16 %v1576
  %v2082 = vunpack.c.l.b16 %v1577
  %v2083 = vunpack.c.l.b16 %v1578
  %v2084 = vunpack.c.l.b16 %v1579
  %v2085 = vunpack.c.l.b16 %v1580
  %v2086 = vunpack.c.l.b16 %v1581
  %v2087 = vunpack.c.l.b16 %v1582
  %v2088 = vunpack.c.l.b16 %v1583
  %v2089 = vunpack.c.l.b16 %v1584
  %v2090 = vunpack.c.l.b16 %v1585
  %v2091 = vunpack.c.l.b16 %v1586
  %v2092 = vunpack.c.l.b16 %v1587
  %v2093 = vunpack.c.l.b16 %v1588
  %v2094 = vunpack.c.l.b16 %v1589
  %v2095 = vunpack.c.l.b16 %v1590
  %v2096 = vunpack.c.l.b16 %v1591
  %v2097 = vunpack.c.l.b16 %v1592
  %v2098 = vunpack.c.l.b16 %v1593
  %v2099 = vunpack.c.l.b16 %v1594
  %v2100 = vunpack.c.l.b16 %v1595
  %v2101 = vunpack.c.l.b16 %v1596
  %v2102 = vunpack.c.l.b16 %v1597
  %v2103 = vunpack.c.l.b16 %v1598
  %v2104 = vunpack.c.l.b16 %v1599
  %v2105 = vunpack.c.l.b16 %v1600
  %v2106 = vunpack.c.l.b16 %v1601
  %v2107 = vunpack.c.l.b16 %v1602
  %v2108 = vunpack.c.l.b16 %v1603
  %v2109 = vunpack.c.l.b16 %v1604
  %v2110 = vunpack.c.l.b16 %v1605
  %v2111 = vunpack.c.l.b16 %v1606
  %v2112 = vunpack.c.l.b16 %v1607
  %v2113 = vunpack.c.l.b16 %v1608
  %v2114 = vunpack.c.l.b16 %v1609
  %v2115 = vunpack.c.l.b16 %v1610
  %v2116 = vunpack.c.l.b16 %v1611
  %v2117 = vunpack.c.l.b16 %v1612
  %v2118 = vunpack.c.l.b16 %v1613
  %v2119 = vunpack.c.l.b16 %v1614
  %v2120 = vunpack.c.l.b16 %v1615
  %v2121 = vunpack.c.l.b16 %v1616
  %v2122 = vunpack.c.l.b16 %v1617
  %v2123 = vunpack.c.l.b16 %v1618
  %v2124 = vunpack.c.l.b16 %v1619
  %v2125 = vunpack.c.l.b16 %v1620
  %v2126 = vunpack.c.l.b16 %v1621
  %v2127 = vunpack.c.l.b16 %v1622
  %v2128 = vunpack.c.l.b16 %v1623
  %v2129 = vunpack.c.l.b16 %v1624
  %v2130 = vunpack.c.l.b16 %v1625
  %v2131 = vunpack.c.l.b16 %v1626
  %v2132 = vunpack.c.l.b16 %v1627
  %v2133 = vunpack.c.l.b16 %v1628
  %v2134 = vunpack.c.l.b16 %v1629
  %v2135 = vunpack.c.l.b16 %v1630
  %v2136 = vunpack.c.l.b16 %v1631
  %v2137 = vunpack.c.l.b16 %v1632
  %v2138 = vunpack.c.l.b16 %v1633
  %v2139 = vunpack.c.l.b16 %v1634
  %v2140 = vunpack.c.l.b16 %v1635
  %v2141 = vunpack.c.l.b16 %v1636
  %v2142 = vunpack.c.l.b16 %v1637
  %v2143 = vunpack.c.l.b16 %v1638
  %v2144 = vunpack.c.l.b16 %v1639
  %v2145 = vunpack.c.l.b16 %v1640
  %v2146 = vunpack.c.l.b16 %v1641
  %v2147 = vunpack.c.l.b16 %v1642
  %v2148 = vunpack.c.l.b16 %v1643
  %v2149 = vunpack.c.l.b16 %v1644
  %v2150 = vunpack.c.l.b16 %v1645
  %v2151 = vunpack.c.l.b16 %v1646
  %v2152 = vunpack.c.l.b16 %v1647
  %v2153 = vunpack.c.l.b16 %v1648
  %v2154 = vunpack.c.l.b16 %v1649
  %v2155 = vunpack.c.l.b16 %v1650
  %v2156 = vunpack.c.l.b16 %v1651
  %v2157 = vunpack.c.l.b16 %v1652
  %v2158 = vunpack.c.l.b16 %v1653
  %v2159 = vunpack.c.l.b16 %v1654
  %v2160 = vunpack.c.l.b16 %v1655
  %v2161 = vunpack.c.l.b16 %v1656
  %v2162 = vunpack.c.l.b16 %v1657
  %v2163 = vunpack.c.l.b16 %v1658
  %v2164 = vunpack.c.l.b16 %v1659
  %v2165 = vunpack.c.l.b16 %v1660
  %v2166 = vunpack.c.l.b16 %v1661
  %v2167 = vunpack.c.l.b16 %v1662
  %v2168 = vunpack.c.l.b16 %v1663
  %v2169 = vunpack.c.l.b16 %v1664
  %v2170 = vunpack.c.l.b16 %v1665
  %v2171 = vunpack.c.l.b16 %v1666
  %v2172 = vunpack.c.l.b16 %v1667
  %v2173 = vunpack.c.l.b16 %v1668
  %v2174 = vunpack.c.l.b16 %v1669
  %v2175 = vunpack.c.l.b16 %v1670
  %v2176 = vunpack.c.l.b16 %v1671
  %v2177 = vunpack.c.l.b16 %v1672
  %v2178 = vunpack.c.l.b16 %v1673
  %v2179 = vunpack.c.l.b16 %v1674
  %v2180 = vunpack.c.l.b16 %v1675
  %v2181 = vunpack.c.l.b16 %v1676
  %v2182 = vunpack.c.l.b16 %v1677
  %v2183 = vunpack.c.l.b16 %v1678
  %v2184 = vunpack.c.l.b16 %v1679
  %v2185 = vunpack.c.l.b16 %v1680
  %v2186 = vunpack.c.l.b16 %v1681
  %v2187 = vunpack.c.l.b16 %v1682
  %v2188 = vunpack.c.l.b16 %v1683
  %v2189 = vunpack.c.l.b16 %v1684
  %v2190 = vunpack.c.l.b16 %v1685
  %v2191 = vunpack.c.l.b16 %v1686
  %v2192 = vunpack.c.l.b16 %v1687
  %v2193 = vunpack.c.l.b16 %v1688
  %v2194 = vunpack.c.l.b16 %v1689
  %v2195 = vunpack.c.l.b16 %v1690
  %v2196 = vunpack.c.l.b16 %v1691
  %v2197 = vunpack.c.l.b16 %v1692
  %v2198 = vunpack.c.l.b16 %v1693
  %v2199 = vunpack.c.l.b16 %v1694
  %v2200 = vunpack.c.l.b16 %v1695
  %v2201 = vunpack.c.l.b16 %v1696
  %v2202 = vunpack.c.l.b16 %v1697
  %v2203 = vunpack.c.l.b16 %v1698
  %v2204 = vunpack.c.l.b16 %v1699
  %v2205 = vunpack.c.l.b16 %v1700
  %v2206 = vunpack.c.l.b16 %v1701
  %v2207 = vunpack.c.l.b16 %v1702
  %v2208 = vunpack.c.l.b16 %v1703
  %v2209 = vunpack.c.l.b16 %v1704
  %v2210 = vunpack.c.l.b16 %v1705
  %v2211 = vunpack.c.l.b16 %v1706
  %v2212 = vunpack.c.l.b16 %v1707
  %v2213 = vunpack.c.l.b16 %v1708
  %v2214 = vunpack.c.l.b16 %v1709
  %v2215 = vunpack.c.l.b16 %v1710
  %v2216 = vunpack.c.l.b16 %v1711
  %v2217 = vunpack.c.l.b16 %v1712
  %v2218 = vunpack.c.l.b16 %v1713
  %v2219 = vpack.c.b16 %v1970, %v1969
  %v2220 = vpack.c.b16 %v1972, %v1971
  %v2221 = vpack.c.b16 %v1974, %v1973
  %v2222 = vpack.c.b16 %v1976, %v1975
  %v2223 = vpack.c.b16 %v1978, %v1977
  %v2224 = vpack.c.b16 %v1980, %v1979
  %v2225 = vpack.c.b16 %v1982, %v1981
  %v2226 = vpack.c.b16 %v1984, %v1983
  %v2227 = vpack.c.b16 %v1986, %v1985
  %v2228 = vpack.c.b16 %v1988, %v1987
  %v2229 = vpack.c.b16 %v1990, %v1989
  %v2230 = vpack.c.b16 %v1992, %v1991
  %v2231 = vpack.c.b16 %v1994, %v1993
  %v2232 = vpack.c.b16 %v1996, %v1995
  %v2233 = vpack.c.b16 %v1998, %v1997
  %v2234 = vpack.c.b16 %v2000, %v1999
  %v2235 = vpack.c.b16 %v2002, %v2001
  %v2236 = vpack.c.b16 %v2004, %v2003
  %v2237 = vpack.c.b16 %v2006, %v2005
  %v2238 = vpack.c.b16 %v2008, %v2007
  %v2239 = vpack.c.b16 %v2010, %v2009
  %v2240 = vpack.c.b16 %v2012, %v2011
  %v2241 = vpack.c.b16 %v2014, %v2013
  %v2242 = vpack.c.b16 %v2016, %v2015
  %v2243 = vpack.c.b16 %v2018, %v2017
  %v2244 = vpack.c.b16 %v2020, %v2019
  %v2245 = vpack.c.b16 %v2022, %v2021
  %v2246 = vpack.c.b16 %v2024, %v2023
  %v2247 = vpack.c.b16 %v2026, %v2025
  %v2248 = vpack.c.b16 %v2028, %v2027
  %v2249 = vpack.c.b16 %v2030, %v2029
  %v2250 = vpack.c.b16 %v2032, %v2031
  %v2251 = vpack.c.b16 %v2034, %v2033
  %v2252 = vpack.c.b16 %v2036, %v2035
  %v2253 = vpack.c.b16 %v2038, %v2037
  %v2254 = vpack.c.b16 %v2040, %v2039
  %v2255 = vpack.c.b16 %v2042, %v2041
  %v2256 = vpack.c.b16 %v2044, %v2043
  %v2257 = vpack.c.b16 %v2046, %v2045
  %v2258 = vpack.c.b16 %v2048, %v2047
  %v2259 = vpack.c.b16 %v2050, %v2049
  %v2260 = vpack.c.b16 %v2052, %v2051
  %v2261 = vpack.c.b16 %v2054, %v2053
  %v2262 = vpack.c.b16 %v2056, %v2055
  %v2263 = vpack.c.b16 %v2058, %v2057
  %v2264 = vpack.c.b16 %v2060, %v2059
  %v2265 = vpack.c.b16 %v2062, %v2061
  %v2266 = vpack.c.b16 %v2064, %v2063
  %v2267 = vpack.c.b16 %v2066, %v2065
  %v2268 = vpack.c.b16 %v2068, %v2067
  %v2269 = vpack.c.b16 %v2070, %v2069
  %v2270 = vpack.c.b16 %v2072, %v2071
  %v2271 = vpack.c.b16 %v2074, %v2073
  %v2272 = vpack.c.b16 %v2076, %v2075
  %v2273 = vpack.c.b16 %v2078, %v2077
  %v2274 = vpack.c.b16 %v2080, %v2079
  %v2275 = vpack.c.b16 %v2082, %v2081
  %v2276 = vpack.c.b16 %v2084, %v2083
  %v2277 = vpack.c.b16 %v2086, %v2085
  %v2278 = vpack.c.b16 %v2088, %v2087
  %v2279 = vpack.c.b16 %v2090, %v2089
  %v2280 = vpack.c.b16 %v2092, %v2091
  %v2281 = vpack.c.b16 %v2094, %v2093
  %v2282 = vpack.c.b16 %v2096, %v2095
  %v2283 = vpack.c.b16 %v2098, %v2097
  %v2284 = vpack.c.b16 %v2100, %v2099
  %v2285 = vpack.c.b16 %v2102, %v2101
  %v2286 = vpack.c.b16 %v2104, %v2103
  %v2287 = vpack.c.b16 %v2106, %v2105
  %v2288 = vpack.c.b16 %v2108, %v2107
  %v2289 = vpack.c.b16 %v2110, %v2109
  %v2290 = vpack.c.b16 %v2112, %v2111
  %v2291 = vpack.c.b16 %v2114, %v2113
  %v2292 = vpack.c.b16 %v2116, %v2115
  %v2293 = vpack.c.b16 %v2118, %v2117
  %v2294 = vpack.c.b16 %v2120, %v2119
  %v2295 = vpack.c.b16 %v2122, %v2121
  %v2296 = vpack.c.b16 %v2124, %v2123
  %v2297 = vpack.c.b16 %v2126, %v2125
  %v2298 = vpack.c.b16 %v2128, %v2127
  %v2299 = vpack.c.b16 %v2130, %v2129
  %v2300 = vpack.c.b16 %v2132, %v2131
  %v2301 = vpack.c.b16 %v2134, %v2133
  %v2302 = vpack.c.b16 %v2136, %v2135
  %v2303 = vpack.c.b16 %v2138, %v2137
  %v2304 = vpack.c.b16 %v2140, %v2139
  %v2305 = vpack.c.b16 %v2142, %v2141
  %v2306 = vpack.c.b16 %v2144, %v2143
  %v2307 = vpack.c.b16 %v2146, %v2145
  %v2308 = vpack.c.b16 %v2148, %v2147
  %v2309 = vpack.c.b16 %v2150, %v2149
  %v2310 = vpack.c.b16 %v2152, %v2151
  %v2311 = vpack.c.b16 %v2154, %v2153
  %v2312 = vpack.c.b16 %v2156, %v2155
  %v2313 = vpack.c.b16 %v2158, %v2157
  %v2314 = vpack.c.b16 %v2160, %v2159
  %v2315 = vpack.c.b16 %v2162, %v2161
  %v2316 = vpack.c.b16 %v2164, %v2163
  %v2317 = vpack.c.b16 %v2166, %v2165
  %v2318 = vpack.c.b16 %v2168, %v2167
  %v2319 = vpack.c.b16 %v2170, %v2169
  %v2320 = vpack.c.b16 %v2172, %v2171
  %v2321 = vpack.c.b16 %v2174, %v2173
  %v2322 = vpack.c.b16 %v2176, %v2175
  %v2323 = vpack.c.b16 %v2178, %v2177
  %v2324 = vpack.c.b16 %v2180, %v2179
  %v2325 = vpack.c.b16 %v2182, %v2181
  %v2326 = vpack.c.b16 %v2184, %v2183
  %v2327 = vpack.c.b16 %v2186, %v2185
  %v2328 = vpack.c.b16 %v2188, %v2187
  %v2329 = vpack.c.b16 %v2190, %v2189
  %v2330 = vpack.c.b16 %v2192, %v2191
  %v2331 = vpack.c.b16 %v2194, %v2193
  %v2332 = vpack.c.b16 %v2196, %v2195
  %v2333 = vpack.c.b16 %v2198, %v2197
  %v2334 = vpack.c.b16 %v2200, %v2199
  %v2335 = vpack.c.b16 %v2202, %v2201
  %v2336 = vpack.c.b16 %v2204, %v2203
  %v2337 = vpack.c.b16 %v2206, %v2205
  %v2338 = vpack.c.b16 %v2208, %v2207
  %v2339 = vpack.c.b16 %v2210, %v2209
  %v2340 = vpack.c.b16 %v2212, %v2211
  %v2341 = vpack.c.b16 %v2214, %v2213
  %v2342 = vpack.c.b16 %v2216, %v2215
  %v2343 = vpack.c.b16 %v2218, %v2217
  %2469 = vmatprep.subr.bf16.mxu0 0
  %2470 = vmatpush1.bf16.msra.mxu0 %v2219
  %2471 = vmatprep.subr.bf16.mxu0 0
  %2472 = vmatpush1.bf16.msra.mxu0 %v2220
  %2473 = vmatprep.subr.bf16.mxu0 0
  %2474 = vmatpush1.bf16.msra.mxu0 %v2221
  %2475 = vmatprep.subr.bf16.mxu0 0
  %2476 = vmatpush1.bf16.msra.mxu0 %v2222
  %2477 = vmatprep.subr.bf16.mxu0 0
  %2478 = vmatpush1.bf16.msra.mxu0 %v2223
  %2479 = vmatprep.subr.bf16.mxu0 0
  %2480 = vmatpush1.bf16.msra.mxu0 %v2224
  %2481 = vmatprep.subr.bf16.mxu0 0
  %2482 = vmatpush1.bf16.msra.mxu0 %v2225
  %2483 = vmatprep.subr.bf16.mxu0 0
  %2484 = vmatpush1.bf16.msra.mxu0 %v2226
  %2485 = vmatprep.subr.bf16.mxu0 0
  %2486 = vmatpush1.bf16.msra.mxu0 %v2227
  %2487 = vmatprep.subr.bf16.mxu0 0
  %2488 = vmatpush1.bf16.msra.mxu0 %v2228
  %2489 = vmatprep.subr.bf16.mxu0 0
  %2490 = vmatpush1.bf16.msra.mxu0 %v2229
  %2491 = vmatprep.subr.bf16.mxu0 0
  %2492 = vmatpush1.bf16.msra.mxu0 %v2230
  %2493 = vmatprep.subr.bf16.mxu0 0
  %2494 = vmatpush1.bf16.msra.mxu0 %v2231
  %2495 = vmatprep.subr.bf16.mxu0 0
  %2496 = vmatpush1.bf16.msra.mxu0 %v2232
  %2497 = vmatprep.subr.bf16.mxu0 0
  %2498 = vmatpush1.bf16.msra.mxu0 %v2233
  %2499 = vmatprep.subr.bf16.mxu0 0
  %2500 = vmatpush1.bf16.msra.mxu0 %v2234
  %2501 = vmatprep.mubr.bf16.mxu0 %v351
  %2502 = vmatmul.mubr.bf16.gmra.mrb[0].mxu0 %v350
  %v2503 = vpop.f32.mrb[0].mxu0
  %v2504 = vadd.f32 %v1718, %v2503
  %v2505 = vpop.f32.mrb[0].mxu0
  %v2506 = vpop.f32.mrb[0].mxu0
  %v2507 = vadd.f32 %v1718, %v2506
  %v2508 = vpop.f32.mrb[0].mxu0
  %2509 = vdwg.mxu0
  %2510 = vmatprep.subr.bf16.mxu0 0
  %2511 = vmatpush1.bf16.msra.mxu0 %v2235
  %2512 = vmatprep.subr.bf16.mxu0 0
  %2513 = vmatpush1.bf16.msra.mxu0 %v2236
  %2514 = vmatprep.subr.bf16.mxu0 0
  %2515 = vmatpush1.bf16.msra.mxu0 %v2237
  %2516 = vmatprep.subr.bf16.mxu0 0
  %2517 = vmatpush1.bf16.msra.mxu0 %v2238
  %2518 = vmatprep.subr.bf16.mxu0 0
  %2519 = vmatpush1.bf16.msra.mxu0 %v2239
  %2520 = vmatprep.subr.bf16.mxu0 0
  %2521 = vmatpush1.bf16.msra.mxu0 %v2240
  %2522 = vmatprep.subr.bf16.mxu0 0
  %2523 = vmatpush1.bf16.msra.mxu0 %v2241
  %2524 = vmatprep.subr.bf16.mxu0 0
  %2525 = vmatpush1.bf16.msra.mxu0 %v2242
  %2526 = vmatprep.subr.bf16.mxu0 0
  %2527 = vmatpush1.bf16.msra.mxu0 %v2243
  %2528 = vmatprep.subr.bf16.mxu0 0
  %2529 = vmatpush1.bf16.msra.mxu0 %v2244
  %2530 = vmatprep.subr.bf16.mxu0 0
  %2531 = vmatpush1.bf16.msra.mxu0 %v2245
  %2532 = vmatprep.subr.bf16.mxu0 0
  %2533 = vmatpush1.bf16.msra.mxu0 %v2246
  %2534 = vmatprep.subr.bf16.mxu0 0
  %2535 = vmatpush1.bf16.msra.mxu0 %v2247
  %2536 = vmatprep.subr.bf16.mxu0 0
  %2537 = vmatpush1.bf16.msra.mxu0 %v2248
  %2538 = vmatprep.subr.bf16.mxu0 0
  %2539 = vmatpush1.bf16.msra.mxu0 %v2249
  %2540 = vmatprep.subr.bf16.mxu0 0
  %2541 = vmatpush1.bf16.msra.mxu0 %v2250
  %2542 = vmatprep.mubr.bf16.mxu0 %v353
  %2543 = vmatmul.mubr.bf16.gmra.mrb[0].mxu0 %v352
  %v2544 = vpop.f32.mrb[0].mxu0
  %v2545 = vadd.f32 %v2504, %v2544
  %v2546 = vpop.f32.mrb[0].mxu0
  %v2547 = vpop.f32.mrb[0].mxu0
  %v2548 = vadd.f32 %v2507, %v2547
  %v2549 = vpop.f32.mrb[0].mxu0
  %2550 = vdwg.mxu0
  %2551 = vmatprep.subr.bf16.mxu0 0
  %2552 = vmatpush1.bf16.msra.mxu0 %v2251
  %2553 = vmatprep.subr.bf16.mxu0 0
  %2554 = vmatpush1.bf16.msra.mxu0 %v2252
  %2555 = vmatprep.subr.bf16.mxu0 0
  %2556 = vmatpush1.bf16.msra.mxu0 %v2253
  %2557 = vmatprep.subr.bf16.mxu0 0
  %2558 = vmatpush1.bf16.msra.mxu0 %v2254
  %2559 = vmatprep.subr.bf16.mxu0 0
  %2560 = vmatpush1.bf16.msra.mxu0 %v2255
  %2561 = vmatprep.subr.bf16.mxu0 0
  %2562 = vmatpush1.bf16.msra.mxu0 %v2256
  %2563 = vmatprep.subr.bf16.mxu0 0
  %2564 = vmatpush1.bf16.msra.mxu0 %v2257
  %2565 = vmatprep.subr.bf16.mxu0 0
  %2566 = vmatpush1.bf16.msra.mxu0 %v2258
  %2567 = vmatprep.subr.bf16.mxu0 0
  %2568 = vmatpush1.bf16.msra.mxu0 %v2259
  %2569 = vmatprep.subr.bf16.mxu0 0
  %2570 = vmatpush1.bf16.msra.mxu0 %v2260
  %2571 = vmatprep.subr.bf16.mxu0 0
  %2572 = vmatpush1.bf16.msra.mxu0 %v2261
  %2573 = vmatprep.subr.bf16.mxu0 0
  %2574 = vmatpush1.bf16.msra.mxu0 %v2262
  %2575 = vmatprep.subr.bf16.mxu0 0
  %2576 = vmatpush1.bf16.msra.mxu0 %v2263
  %2577 = vmatprep.subr.bf16.mxu0 0
  %2578 = vmatpush1.bf16.msra.mxu0 %v2264
  %2579 = vmatprep.subr.bf16.mxu0 0
  %2580 = vmatpush1.bf16.msra.mxu0 %v2265
  %2581 = vmatprep.subr.bf16.mxu0 0
  %2582 = vmatpush1.bf16.msra.mxu0 %v2266
  %2583 = vmatprep.mubr.bf16.mxu0 %v355
  %2584 = vmatmul.mubr.bf16.gmra.mrb[0].mxu0 %v354
  %v2585 = vpop.f32.mrb[0].mxu0
  %v2586 = vadd.f32 %v2545, %v2585
  %v2587 = vpop.f32.mrb[0].mxu0
  %v2588 = vpop.f32.mrb[0].mxu0
  %v2589 = vadd.f32 %v2548, %v2588
  %v2590 = vpop.f32.mrb[0].mxu0
  %2591 = vdwg.mxu0
  %2592 = vmatprep.subr.bf16.mxu0 0
  %2593 = vmatpush1.bf16.msra.mxu0 %v2267
  %2594 = vmatprep.subr.bf16.mxu0 0
  %2595 = vmatpush1.bf16.msra.mxu0 %v2268
  %2596 = vmatprep.subr.bf16.mxu0 0
  %2597 = vmatpush1.bf16.msra.mxu0 %v2269
  %2598 = vmatprep.subr.bf16.mxu0 0
  %2599 = vmatpush1.bf16.msra.mxu0 %v2270
  %2600 = vmatprep.subr.bf16.mxu0 0
  %2601 = vmatpush1.bf16.msra.mxu0 %v2271
  %2602 = vmatprep.subr.bf16.mxu0 0
  %2603 = vmatpush1.bf16.msra.mxu0 %v2272
  %2604 = vmatprep.subr.bf16.mxu0 0
  %2605 = vmatpush1.bf16.msra.mxu0 %v2273
  %2606 = vmatprep.subr.bf16.mxu0 0
  %2607 = vmatpush1.bf16.msra.mxu0 %v2274
  %2608 = vmatprep.subr.bf16.mxu0 0
  %2609 = vmatpush1.bf16.msra.mxu0 %v2275
  %2610 = vmatprep.subr.bf16.mxu0 0
  %2611 = vmatpush1.bf16.msra.mxu0 %v2276
  %2612 = vmatprep.subr.bf16.mxu0 0
  %2613 = vmatpush1.bf16.msra.mxu0 %v2277
  %2614 = vmatprep.subr.bf16.mxu0 0
  %2615 = vmatpush1.bf16.msra.mxu0 %v2278
  %2616 = vmatprep.subr.bf16.mxu0 0
  %2617 = vmatpush1.bf16.msra.mxu0 %v2279
  %2618 = vmatprep.subr.bf16.mxu0 0
  %2619 = vmatpush1.bf16.msra.mxu0 %v2280
  %2620 = vmatprep.subr.bf16.mxu0 0
  %2621 = vmatpush1.bf16.msra.mxu0 %v2281
  %2622 = vmatprep.subr.bf16.mxu0 0
  %2623 = vmatpush1.bf16.msra.mxu0 %v2282
  %2624 = vmatprep.mubr.bf16.mxu0 %v357
  %2625 = vmatmul.mubr.bf16.gmra.mrb[0].mxu0 %v356
  %v2626 = vpop.f32.mrb[0].mxu0
  %v2627 = vadd.f32 %v2586, %v2626
  %v2628 = vpop.f32.mrb[0].mxu0
  %v2629 = vpop.f32.mrb[0].mxu0
  %v2630 = vadd.f32 %v2589, %v2629
  %v2631 = vpop.f32.mrb[0].mxu0
  %2632 = vdwg.mxu0
  %2633 = vmatprep.subr.bf16.mxu0 0
  %2634 = vmatpush1.bf16.msra.mxu0 %v2283
  %2635 = vmatprep.subr.bf16.mxu0 0
  %2636 = vmatpush1.bf16.msra.mxu0 %v2284
  %2637 = vmatprep.subr.bf16.mxu0 0
  %2638 = vmatpush1.bf16.msra.mxu0 %v2285
  %2639 = vmatprep.subr.bf16.mxu0 0
  %2640 = vmatpush1.bf16.msra.mxu0 %v2286
  %2641 = vmatprep.subr.bf16.mxu0 0
  %2642 = vmatpush1.bf16.msra.mxu0 %v2287
  %2643 = vmatprep.subr.bf16.mxu0 0
  %2644 = vmatpush1.bf16.msra.mxu0 %v2288
  %2645 = vmatprep.subr.bf16.mxu0 0
  %2646 = vmatpush1.bf16.msra.mxu0 %v2289
  %2647 = vmatprep.subr.bf16.mxu0 0
  %2648 = vmatpush1.bf16.msra.mxu0 %v2290
  %2649 = vmatprep.subr.bf16.mxu0 0
  %2650 = vmatpush1.bf16.msra.mxu0 %v2291
  %2651 = vmatprep.subr.bf16.mxu0 0
  %2652 = vmatpush1.bf16.msra.mxu0 %v2292
  %2653 = vmatprep.subr.bf16.mxu0 0
  %2654 = vmatpush1.bf16.msra.mxu0 %v2293
  %2655 = vmatprep.subr.bf16.mxu0 0
  %2656 = vmatpush1.bf16.msra.mxu0 %v2294
  %2657 = vmatprep.subr.bf16.mxu0 0
  %2658 = vmatpush1.bf16.msra.mxu0 %v2295
  %2659 = vmatprep.subr.bf16.mxu0 0
  %2660 = vmatpush1.bf16.msra.mxu0 %v2296
  %2661 = vmatprep.subr.bf16.mxu0 0
  %2662 = vmatpush1.bf16.msra.mxu0 %v2297
  %2663 = vmatprep.subr.bf16.mxu0 0
  %2664 = vmatpush1.bf16.msra.mxu0 %v2298
  %2665 = vmatprep.mubr.bf16.mxu0 %v359
  %2666 = vmatmul.mubr.bf16.gmra.mrb[0].mxu0 %v358
  %v2667 = vpop.f32.mrb[0].mxu0
  %v2668 = vadd.f32 %v2627, %v2667
  %v2669 = vpop.f32.mrb[0].mxu0
  %v2670 = vpop.f32.mrb[0].mxu0
  %v2671 = vadd.f32 %v2630, %v2670
  %v2672 = vpop.f32.mrb[0].mxu0
  %2673 = vdwg.mxu0
  %2674 = vmatprep.subr.bf16.mxu0 0
  %2675 = vmatpush1.bf16.msra.mxu0 %v2299
  %2676 = vmatprep.subr.bf16.mxu0 0
  %2677 = vmatpush1.bf16.msra.mxu0 %v2300
  %2678 = vmatprep.subr.bf16.mxu0 0
  %2679 = vmatpush1.bf16.msra.mxu0 %v2301
  %2680 = vmatprep.subr.bf16.mxu0 0
  %2681 = vmatpush1.bf16.msra.mxu0 %v2302
  %2682 = vmatprep.subr.bf16.mxu0 0
  %2683 = vmatpush1.bf16.msra.mxu0 %v2303
  %2684 = vmatprep.subr.bf16.mxu0 0
  %2685 = vmatpush1.bf16.msra.mxu0 %v2304
  %2686 = vmatprep.subr.bf16.mxu0 0
  %2687 = vmatpush1.bf16.msra.mxu0 %v2305
  %2688 = vmatprep.subr.bf16.mxu0 0
  %2689 = vmatpush1.bf16.msra.mxu0 %v2306
  %2690 = vmatprep.subr.bf16.mxu0 0
  %2691 = vmatpush1.bf16.msra.mxu0 %v2307
  %2692 = vmatprep.subr.bf16.mxu0 0
  %2693 = vmatpush1.bf16.msra.mxu0 %v2308
  %2694 = vmatprep.subr.bf16.mxu0 0
  %2695 = vmatpush1.bf16.msra.mxu0 %v2309
  %2696 = vmatprep.subr.bf16.mxu0 0
  %2697 = vmatpush1.bf16.msra.mxu0 %v2310
  %2698 = vmatprep.subr.bf16.mxu0 0
  %2699 = vmatpush1.bf16.msra.mxu0 %v2311
  %2700 = vmatprep.subr.bf16.mxu0 0
  %2701 = vmatpush1.bf16.msra.mxu0 %v2312
  %2702 = vmatprep.subr.bf16.mxu0 0
  %2703 = vmatpush1.bf16.msra.mxu0 %v2313
  %2704 = vmatprep.subr.bf16.mxu0 0
  %2705 = vmatpush1.bf16.msra.mxu0 %v2314
  %2706 = vmatprep.mubr.bf16.mxu0 %v361
  %2707 = vmatmul.mubr.bf16.gmra.mrb[0].mxu0 %v360
  %v2708 = vpop.f32.mrb[0].mxu0
  %v2709 = vadd.f32 %v2668, %v2708
  %v2710 = vpop.f32.mrb[0].mxu0
  %v2711 = vpop.f32.mrb[0].mxu0
  %v2712 = vadd.f32 %v2671, %v2711
  %v2713 = vpop.f32.mrb[0].mxu0
  %2714 = vdwg.mxu0
  %2715 = vmatprep.subr.bf16.mxu0 0
  %2716 = vmatpush1.bf16.msra.mxu0 %v2315
  %2717 = vmatprep.subr.bf16.mxu0 0
  %2718 = vmatpush1.bf16.msra.mxu0 %v2316
  %2719 = vmatprep.subr.bf16.mxu0 0
  %2720 = vmatpush1.bf16.msra.mxu0 %v2317
  %2721 = vmatprep.subr.bf16.mxu0 0
  %2722 = vmatpush1.bf16.msra.mxu0 %v2318
  %2723 = vmatprep.subr.bf16.mxu0 0
  %2724 = vmatpush1.bf16.msra.mxu0 %v2319
  %2725 = vmatprep.subr.bf16.mxu0 0
  %2726 = vmatpush1.bf16.msra.mxu0 %v2320
  %2727 = vmatprep.subr.bf16.mxu0 0
  %2728 = vmatpush1.bf16.msra.mxu0 %v2321
  %2729 = vmatprep.subr.bf16.mxu0 0
  %2730 = vmatpush1.bf16.msra.mxu0 %v2322
  %2731 = vmatprep.subr.bf16.mxu0 0
  %2732 = vmatpush1.bf16.msra.mxu0 %v2323
  %2733 = vmatprep.subr.bf16.mxu0 0
  %2734 = vmatpush1.bf16.msra.mxu0 %v2324
  %2735 = vmatprep.subr.bf16.mxu0 0
  %2736 = vmatpush1.bf16.msra.mxu0 %v2325
  %2737 = vmatprep.subr.bf16.mxu0 0
  %2738 = vmatpush1.bf16.msra.mxu0 %v2326
  %2739 = vmatprep.subr.bf16.mxu0 0
  %2740 = vmatpush1.bf16.msra.mxu0 %v2327
  %2741 = vmatprep.subr.bf16.mxu0 0
  %2742 = vmatpush1.bf16.msra.mxu0 %v2328
  %2743 = vmatprep.subr.bf16.mxu0 0
  %2744 = vmatpush1.bf16.msra.mxu0 %v2329
  %2745 = vmatprep.subr.bf16.mxu0 0
  %2746 = vmatpush1.bf16.msra.mxu0 %v2330
  %2747 = vmatprep.mubr.bf16.mxu0 %v363
  %2748 = vmatmul.mubr.bf16.gmra.mrb[0].mxu0 %v362
  %v2749 = vpop.f32.mrb[0].mxu0
  %v2750 = vadd.f32 %v2709, %v2749
  %v2751 = vpop.f32.mrb[0].mxu0
  %v2752 = vpop.f32.mrb[0].mxu0
  %v2753 = vadd.f32 %v2712, %v2752
  %v2754 = vpop.f32.mrb[0].mxu0
  %2755 = vdwg.mxu0
  %2756 = vmatprep.subr.bf16.mxu0 0
  %2757 = vmatpush1.bf16.msra.mxu0 %v2331
  %2758 = vmatprep.subr.bf16.mxu0 0
  %2759 = vmatpush1.bf16.msra.mxu0 %v2332
  %2760 = vmatprep.subr.bf16.mxu0 0
  %2761 = vmatpush1.bf16.msra.mxu0 %v2333
  %2762 = vmatprep.subr.bf16.mxu0 0
  %2763 = vmatpush1.bf16.msra.mxu0 %v2334
  %2764 = vmatprep.subr.bf16.mxu0 0
  %2765 = vmatpush1.bf16.msra.mxu0 %v2335
  %2766 = vmatprep.subr.bf16.mxu0 0
  %2767 = vmatpush1.bf16.msra.mxu0 %v2336
  %2768 = vmatprep.subr.bf16.mxu0 0
  %2769 = vmatpush1.bf16.msra.mxu0 %v2337
  %2770 = vmatprep.subr.bf16.mxu0 0
  %2771 = vmatpush1.bf16.msra.mxu0 %v2338
  %2772 = vmatprep.subr.bf16.mxu0 0
  %2773 = vmatpush1.bf16.msra.mxu0 %v2339
  %2774 = vmatprep.subr.bf16.mxu0 0
  %2775 = vmatpush1.bf16.msra.mxu0 %v2340
  %2776 = vmatprep.subr.bf16.mxu0 0
  %2777 = vmatpush1.bf16.msra.mxu0 %v2341
  %2778 = vmatprep.subr.bf16.mxu0 0
  %2779 = vmatpush1.bf16.msra.mxu0 %v2342
  %2780 = vmatprep.subr.bf16.mxu0 0
  %2781 = vmatpush1.bf16.msra.mxu0 %v2343
  %2782 = vmatprep.subr.bf16.mxu0 0
  %2783 = vmatpush1.bf16.msra.mxu0 0
  %2784 = vmatprep.subr.bf16.mxu0 0
  %2785 = vmatpush1.bf16.msra.mxu0 0
  %2786 = vmatprep.subr.bf16.mxu0 0
  %2787 = vmatpush1.bf16.msra.mxu0 0
  %2788 = vmatprep.mubr.bf16.mxu0 %v1133
  %2789 = vmatmul.mubr.bf16.gmra.mrb[0].mxu0 %v364
  %v2790 = vpop.f32.mrb[0].mxu0
  %v2791 = vadd.f32 %v2750, %v2790
  %v2792 = vpop.f32.mrb[0].mxu0
  %v2793 = vpop.f32.mrb[0].mxu0
  %v2794 = vadd.f32 %v2753, %v2793
  %v2795 = vpop.f32.mrb[0].mxu0
  %2796 = vdwg.mxu0
  %2799 = vrot.lane.b32.xlu0 %v1457, 108
  %v2800 = vpop.permute.xlu0 %2799
  %2801 = vrot.lane.b32.xlu0 %v1460, 108
  %v2802 = vpop.permute.xlu0 %2801
  %vm2803 = vcmask 162816
  %v2804 = vsel %vm2803, %v1457, 0
  %v2806 = vsel %vm2803, %v1460, 0
  %v2808 = vsel %vm2803, %v2800, 0
  %v2810 = vsel %vm2803, %v2802, 0
  %2812 = vmatprep.subr.mxu0 0.0
  %2813 = vmatpush1.xpose.msra.mxu0 %v2808
  %2814 = vmatprep.subr.mxu0 0.0
  %2815 = vmatpush1.xpose.msra.mxu0 %v2810
  %2816 = vmatprep.subr.mxu0 0.0
  %2817 = vmatpush1.xpose.msra.mxu0 0.0
  %2818 = vmatprep.subr.mxu0 0.0
  %2819 = vmatpush1.xpose.msra.mxu0 0.0
  %2820 = vmatprep.subr.mxu0 0.0
  %2821 = vmatpush1.xpose.msra.mxu0 0.0
  %2822 = vmatprep.subr.mxu0 0.0
  %2823 = vmatpush1.xpose.msra.mxu0 0.0
  %2824 = vmatprep.subr.mxu0 0.0
  %2825 = vmatpush1.xpose.msra.mxu0 0.0
  %2826 = vmatprep.subr.mxu0 0.0
  %2827 = vmatpush1.xpose.msra.mxu0 0.0
  %2828 = vmatprep.subr.mxu0 0.0
  %2829 = vmatpush1.xpose.msra.mxu0 0.0
  %2830 = vmatprep.subr.mxu0 0.0
  %2831 = vmatpush1.xpose.msra.mxu0 0.0
  %2832 = vmatprep.subr.mxu0 0.0
  %2833 = vmatpush1.xpose.msra.mxu0 0.0
  %2834 = vmatprep.subr.mxu0 0.0
  %2835 = vmatpush1.xpose.msra.mxu0 0.0
  %2836 = vmatprep.subr.mxu0 0.0
  %2837 = vmatpush1.xpose.msra.mxu0 0.0
  %2838 = vmatprep.subr.mxu0 0.0
  %2839 = vmatpush1.xpose.msra.mxu0 0.0
  %2840 = vmatprep.subr.mxu0 0.0
  %2841 = vmatpush1.xpose.msra.mxu0 0.0
  %2842 = vmatprep.subr.mxu0 0.0
  %2843 = vmatpush1.xpose.msra.mxu0 0.0
  %2844 = vmatprep.subr.mxu0 0.0
  %2845 = vmatpush1.xpose.msra.mxu0 0.0
  %2846 = vmatprep.subr.mxu0 0.0
  %2847 = vmatpush1.xpose.msra.mxu0 0.0
  %2848 = vmatprep.subr.mxu0 0.0
  %2849 = vmatpush1.xpose.msra.mxu0 0.0
  %2850 = vmatprep.subr.mxu0 0.0
  %2851 = vmatpush1.xpose.msra.mxu0 0.0
  %2852 = vmatprep.subr.mxu0 0.0
  %2853 = vmatpush1.xpose.msra.mxu0 0.0
  %2854 = vmatprep.subr.mxu0 0.0
  %2855 = vmatpush1.xpose.msra.mxu0 0.0
  %2856 = vmatprep.subr.mxu0 0.0
  %2857 = vmatpush1.xpose.msra.mxu0 0.0
  %2858 = vmatprep.subr.mxu0 0.0
  %2859 = vmatpush1.xpose.msra.mxu0 0.0
  %2860 = vmatprep.subr.mxu0 0.0
  %2861 = vmatpush1.xpose.msra.mxu0 0.0
  %2862 = vmatprep.subr.mxu0 0.0
  %2863 = vmatpush1.xpose.msra.mxu0 0.0
  %2864 = vmatprep.subr.mxu0 0.0
  %2865 = vmatpush1.xpose.msra.mxu0 0.0
  %2866 = vmatprep.subr.mxu0 0.0
  %2867 = vmatpush1.xpose.msra.mxu0 0.0
  %2868 = vmatprep.subr.mxu0 0.0
  %2869 = vmatpush1.xpose.msra.mxu0 0.0
  %2870 = vmatprep.subr.mxu0 0.0
  %2871 = vmatpush1.xpose.msra.mxu0 0.0
  %2872 = vmatprep.subr.mxu0 0.0
  %2873 = vmatpush1.xpose.msra.mxu0 0.0
  %2874 = vmatprep.subr.mxu0 0.0
  %2875 = vmatpush1.xpose.msra.mxu0 0.0
  %2876 = vmatprep.mubr.f32.mxu0 0.0
  %2877 = vmatmul.mubr.f32.gmra.mrb[0].mxu0 %v2804
  %v2878 = vpop.f32.mrb[0].mxu0
  %v2879 = vadd.f32 0.0, %v2878
  %v2880 = vpop.f32.mrb[0].mxu0
  %2881 = vmatprep.mubr.f32.mxu0 0.0
  %2882 = vmatmul.mubr.f32.gmra.mrb[0].mxu0 %v2806
  %v2883 = vpop.f32.mrb[0].mxu0
  %v2884 = vadd.f32 0.0, %v2883
  %v2885 = vpop.f32.mrb[0].mxu0
  %2886 = vdwg.mxu0
  %vm2887 = vcmp.gt.f32.partialorder %v27, 0.0
  %vm2888 = vcmp.gt.f32.partialorder %v28, 0.0
  %v2889 = vsel %vm2887, %v2879, -1e+30
  %v2890 = vsel %vm2888, %v2884, -1e+30
  %vm2891 = vcmask 130048
  %v2892 = vsel %vm2891, %v2889, -inf
  %2893 = vmax.xlane.f32.xlu0 %v2892
  %v2894 = vpop.xlane.xlu0 %2893
  %v2895 = vsel %vm2891, %v2890, -inf
  %2896 = vmax.xlane.f32.xlu0 %v2895
  %v2897 = vpop.xlane.xlu0 %2896
  %v2898 = vsub.f32 %v2889, %v2894
  %v2899 = vsub.f32 %v2890, %v2897
  %v2900 = vmul.f32 %v2898, 1.442695
  %v2901 = vpow.pop %v2900
  %v2902 = vmul.f32 %v2899, 1.442695
  %v2903 = vpow.pop %v2902
  %v2904 = vmul.f32 %v2901, %v27
  %v2905 = vmul.f32 %v2903, %v28
  %v2906 = vsel %vm2891, %v2904, 0.0
  %2907 = vadd.xlane.f32.xlu0 %v2906
  %v2908 = vpop.xlane.xlu0 %2907
  %v2909 = vsel %vm2891, %v2905, 0.0
  %2910 = vadd.xlane.f32.xlu0 %v2909
  %v2911 = vpop.xlane.xlu0 %2910
  %vm2912 = vcmp.gt.f32.partialorder %v2908, 0.0
  %vm2913 = vcmp.gt.f32.partialorder %v2911, 0.0
  %v2914 = vsel %vm2912, %v2908, 1.0
  %v2915 = vsel %vm2913, %v2911, 1.0
  %v2916 = vrcp.pop %v2914
  %v2917 = vmul.f32 %v2904, %v2916
  %v2918 = vrcp.pop %v2915
  %v2919 = vmul.f32 %v2905, %v2918
  %2920 = vrot.lane.b32.xlu0 %v1457, 88
  %v2921 = vpop.permute.xlu0 %2920
  %2922 = vrot.lane.b32.xlu0 %v1460, 88
  %v2923 = vpop.permute.xlu0 %2922
  %2926 = vrot.lane.b32.xlu0 %v1457, 68
  %v2927 = vpop.permute.xlu0 %2926
  %2928 = vrot.lane.b32.xlu0 %v1460, 68
  %v2929 = vpop.permute.xlu0 %2928
  %v2933 = vsel %vm2891, %v2917, 0
  %v2936 = vsel %vm2891, %v2919, 0
  %2938 = vmatprep.subr.mxu0 0.0
  %2939 = vmatpush1.msra.mxu0 %v2921
  %2940 = vmatprep.subr.mxu0 0.0
  %2941 = vmatpush1.msra.mxu0 %v2923
  %2942 = vmatprep.subr.mxu0 0.0
  %2943 = vmatpush1.msra.mxu0 0.0
  %2944 = vmatprep.subr.mxu0 0.0
  %2945 = vmatpush1.msra.mxu0 0.0
  %2946 = vmatprep.subr.mxu0 0.0
  %2947 = vmatpush1.msra.mxu0 0.0
  %2948 = vmatprep.subr.mxu0 0.0
  %2949 = vmatpush1.msra.mxu0 0.0
  %2950 = vmatprep.subr.mxu0 0.0
  %2951 = vmatpush1.msra.mxu0 0.0
  %2952 = vmatprep.subr.mxu0 0.0
  %2953 = vmatpush1.msra.mxu0 0.0
  %2954 = vmatprep.subr.mxu0 0.0
  %2955 = vmatpush1.msra.mxu0 0.0
  %2956 = vmatprep.subr.mxu0 0.0
  %2957 = vmatpush1.msra.mxu0 0.0
  %2958 = vmatprep.subr.mxu0 0.0
  %2959 = vmatpush1.msra.mxu0 0.0
  %2960 = vmatprep.subr.mxu0 0.0
  %2961 = vmatpush1.msra.mxu0 0.0
  %2962 = vmatprep.subr.mxu0 0.0
  %2963 = vmatpush1.msra.mxu0 0.0
  %2964 = vmatprep.subr.mxu0 0.0
  %2965 = vmatpush1.msra.mxu0 0.0
  %2966 = vmatprep.subr.mxu0 0.0
  %2967 = vmatpush1.msra.mxu0 0.0
  %2968 = vmatprep.subr.mxu0 0.0
  %2969 = vmatpush1.msra.mxu0 0.0
  %2970 = vmatprep.subr.mxu0 0.0
  %2971 = vmatpush1.msra.mxu0 0.0
  %2972 = vmatprep.subr.mxu0 0.0
  %2973 = vmatpush1.msra.mxu0 0.0
  %2974 = vmatprep.subr.mxu0 0.0
  %2975 = vmatpush1.msra.mxu0 0.0
  %2976 = vmatprep.subr.mxu0 0.0
  %2977 = vmatpush1.msra.mxu0 0.0
  %2978 = vmatprep.subr.mxu0 0.0
  %2979 = vmatpush1.msra.mxu0 0.0
  %2980 = vmatprep.subr.mxu0 0.0
  %2981 = vmatpush1.msra.mxu0 0.0
  %2982 = vmatprep.subr.mxu0 0.0
  %2983 = vmatpush1.msra.mxu0 0.0
  %2984 = vmatprep.subr.mxu0 0.0
  %2985 = vmatpush1.msra.mxu0 0.0
  %2986 = vmatprep.subr.mxu0 0.0
  %2987 = vmatpush1.msra.mxu0 0.0
  %2988 = vmatprep.subr.mxu0 0.0
  %2989 = vmatpush1.msra.mxu0 0.0
  %2990 = vmatprep.subr.mxu0 0.0
  %2991 = vmatpush1.msra.mxu0 0.0
  %2992 = vmatprep.subr.mxu0 0.0
  %2993 = vmatpush1.msra.mxu0 0.0
  %2994 = vmatprep.subr.mxu0 0.0
  %2995 = vmatpush1.msra.mxu0 0.0
  %2996 = vmatprep.subr.mxu0 0.0
  %2997 = vmatpush1.msra.mxu0 0.0
  %2998 = vmatprep.subr.mxu0 0.0
  %2999 = vmatpush1.msra.mxu0 0.0
  %3000 = vmatprep.subr.mxu0 0.0
  %3001 = vmatpush1.msra.mxu0 0.0
  %3002 = vmatprep.mubr.f32.mxu0 0.0
  %3003 = vmatmul.mubr.f32.gmra.mrb[0].mxu0 %v2933
  %v3004 = vpop.f32.mrb[0].mxu0
  %v3005 = vadd.f32 %v2927, %v3004
  %v3006 = vpop.f32.mrb[0].mxu0
  %3007 = vmatprep.mubr.f32.mxu0 0.0
  %3008 = vmatmul.mubr.f32.gmra.mrb[0].mxu0 %v2936
  %v3009 = vpop.f32.mrb[0].mxu0
  %v3010 = vadd.f32 %v2929, %v3009
  %v3011 = vpop.f32.mrb[0].mxu0
  %3012 = vdwg.mxu0
  %3015 = vrot.lane.b32.xlu0 %v2791, 108
  %v3016 = vpop.permute.xlu0 %3015
  %3017 = vrot.lane.b32.xlu0 %v2794, 108
  %v3018 = vpop.permute.xlu0 %3017
  %v3019 = vsel %vm2803, %v2791, 0
  %v3021 = vsel %vm2803, %v2794, 0
  %v3023 = vsel %vm2803, %v3016, 0
  %v3025 = vsel %vm2803, %v3018, 0
  %3027 = vmatprep.subr.mxu0 0.0
  %3028 = vmatpush1.xpose.msra.mxu0 %v3023
  %3029 = vmatprep.subr.mxu0 0.0
  %3030 = vmatpush1.xpose.msra.mxu0 %v3025
  %3031 = vmatprep.subr.mxu0 0.0
  %3032 = vmatpush1.xpose.msra.mxu0 0.0
  %3033 = vmatprep.subr.mxu0 0.0
  %3034 = vmatpush1.xpose.msra.mxu0 0.0
  %3035 = vmatprep.subr.mxu0 0.0
  %3036 = vmatpush1.xpose.msra.mxu0 0.0
  %3037 = vmatprep.subr.mxu0 0.0
  %3038 = vmatpush1.xpose.msra.mxu0 0.0
  %3039 = vmatprep.subr.mxu0 0.0
  %3040 = vmatpush1.xpose.msra.mxu0 0.0
  %3041 = vmatprep.subr.mxu0 0.0
  %3042 = vmatpush1.xpose.msra.mxu0 0.0
  %3043 = vmatprep.subr.mxu0 0.0
  %3044 = vmatpush1.xpose.msra.mxu0 0.0
  %3045 = vmatprep.subr.mxu0 0.0
  %3046 = vmatpush1.xpose.msra.mxu0 0.0
  %3047 = vmatprep.subr.mxu0 0.0
  %3048 = vmatpush1.xpose.msra.mxu0 0.0
  %3049 = vmatprep.subr.mxu0 0.0
  %3050 = vmatpush1.xpose.msra.mxu0 0.0
  %3051 = vmatprep.subr.mxu0 0.0
  %3052 = vmatpush1.xpose.msra.mxu0 0.0
  %3053 = vmatprep.subr.mxu0 0.0
  %3054 = vmatpush1.xpose.msra.mxu0 0.0
  %3055 = vmatprep.subr.mxu0 0.0
  %3056 = vmatpush1.xpose.msra.mxu0 0.0
  %3057 = vmatprep.subr.mxu0 0.0
  %3058 = vmatpush1.xpose.msra.mxu0 0.0
  %3059 = vmatprep.subr.mxu0 0.0
  %3060 = vmatpush1.xpose.msra.mxu0 0.0
  %3061 = vmatprep.subr.mxu0 0.0
  %3062 = vmatpush1.xpose.msra.mxu0 0.0
  %3063 = vmatprep.subr.mxu0 0.0
  %3064 = vmatpush1.xpose.msra.mxu0 0.0
  %3065 = vmatprep.subr.mxu0 0.0
  %3066 = vmatpush1.xpose.msra.mxu0 0.0
  %3067 = vmatprep.subr.mxu0 0.0
  %3068 = vmatpush1.xpose.msra.mxu0 0.0
  %3069 = vmatprep.subr.mxu0 0.0
  %3070 = vmatpush1.xpose.msra.mxu0 0.0
  %3071 = vmatprep.subr.mxu0 0.0
  %3072 = vmatpush1.xpose.msra.mxu0 0.0
  %3073 = vmatprep.subr.mxu0 0.0
  %3074 = vmatpush1.xpose.msra.mxu0 0.0
  %3075 = vmatprep.subr.mxu0 0.0
  %3076 = vmatpush1.xpose.msra.mxu0 0.0
  %3077 = vmatprep.subr.mxu0 0.0
  %3078 = vmatpush1.xpose.msra.mxu0 0.0
  %3079 = vmatprep.subr.mxu0 0.0
  %3080 = vmatpush1.xpose.msra.mxu0 0.0
  %3081 = vmatprep.subr.mxu0 0.0
  %3082 = vmatpush1.xpose.msra.mxu0 0.0
  %3083 = vmatprep.subr.mxu0 0.0
  %3084 = vmatpush1.xpose.msra.mxu0 0.0
  %3085 = vmatprep.subr.mxu0 0.0
  %3086 = vmatpush1.xpose.msra.mxu0 0.0
  %3087 = vmatprep.subr.mxu0 0.0
  %3088 = vmatpush1.xpose.msra.mxu0 0.0
  %3089 = vmatprep.subr.mxu0 0.0
  %3090 = vmatpush1.xpose.msra.mxu0 0.0
  %3091 = vmatprep.mubr.f32.mxu0 0.0
  %3092 = vmatmul.mubr.f32.gmra.mrb[0].mxu0 %v3019
  %v3093 = vpop.f32.mrb[0].mxu0
  %v3094 = vadd.f32 0.0, %v3093
  %v3095 = vpop.f32.mrb[0].mxu0
  %3096 = vmatprep.mubr.f32.mxu0 0.0
  %3097 = vmatmul.mubr.f32.gmra.mrb[0].mxu0 %v3021
  %v3098 = vpop.f32.mrb[0].mxu0
  %v3099 = vadd.f32 0.0, %v3098
  %v3100 = vpop.f32.mrb[0].mxu0
  %3101 = vdwg.mxu0
  %vm3102 = vcmp.gt.f32.partialorder %v29, 0.0
  %vm3103 = vcmp.gt.f32.partialorder %v30, 0.0
  %v3104 = vsel %vm3102, %v3094, -1e+30
  %v3105 = vsel %vm3103, %v3099, -1e+30
  %v3106 = vsel %vm2891, %v3104, -inf
  %3107 = vmax.xlane.f32.xlu0 %v3106
  %v3108 = vpop.xlane.xlu0 %3107
  %v3109 = vsel %vm2891, %v3105, -inf
  %3110 = vmax.xlane.f32.xlu0 %v3109
  %v3111 = vpop.xlane.xlu0 %3110
  %v3112 = vsub.f32 %v3104, %v3108
  %v3113 = vsub.f32 %v3105, %v3111
  %v3114 = vmul.f32 %v3112, 1.442695
  %v3115 = vpow.pop %v3114
  %v3116 = vmul.f32 %v3113, 1.442695
  %v3117 = vpow.pop %v3116
  %v3118 = vmul.f32 %v3115, %v29
  %v3119 = vmul.f32 %v3117, %v30
  %v3120 = vsel %vm2891, %v3118, 0.0
  %3121 = vadd.xlane.f32.xlu0 %v3120
  %v3122 = vpop.xlane.xlu0 %3121
  %v3123 = vsel %vm2891, %v3119, 0.0
  %3124 = vadd.xlane.f32.xlu0 %v3123
  %v3125 = vpop.xlane.xlu0 %3124
  %vm3126 = vcmp.gt.f32.partialorder %v3122, 0.0
  %vm3127 = vcmp.gt.f32.partialorder %v3125, 0.0
  %v3128 = vsel %vm3126, %v3122, 1.0
  %v3129 = vsel %vm3127, %v3125, 1.0
  %v3130 = vrcp.pop %v3128
  %v3131 = vmul.f32 %v3118, %v3130
  %v3132 = vrcp.pop %v3129
  %v3133 = vmul.f32 %v3119, %v3132
  %3134 = vrot.lane.b32.xlu0 %v2791, 88
  %v3135 = vpop.permute.xlu0 %3134
  %3136 = vrot.lane.b32.xlu0 %v2794, 88
  %v3137 = vpop.permute.xlu0 %3136
  %3140 = vrot.lane.b32.xlu0 %v2791, 68
  %v3141 = vpop.permute.xlu0 %3140
  %3142 = vrot.lane.b32.xlu0 %v2794, 68
  %v3143 = vpop.permute.xlu0 %3142
  %v3147 = vsel %vm2891, %v3131, 0
  %v3150 = vsel %vm2891, %v3133, 0
  %3152 = vmatprep.subr.mxu0 0.0
  %3153 = vmatpush1.msra.mxu0 %v3135
  %3154 = vmatprep.subr.mxu0 0.0
  %3155 = vmatpush1.msra.mxu0 %v3137
  %3156 = vmatprep.subr.mxu0 0.0
  %3157 = vmatpush1.msra.mxu0 0.0
  %3158 = vmatprep.subr.mxu0 0.0
  %3159 = vmatpush1.msra.mxu0 0.0
  %3160 = vmatprep.subr.mxu0 0.0
  %3161 = vmatpush1.msra.mxu0 0.0
  %3162 = vmatprep.subr.mxu0 0.0
  %3163 = vmatpush1.msra.mxu0 0.0
  %3164 = vmatprep.subr.mxu0 0.0
  %3165 = vmatpush1.msra.mxu0 0.0
  %3166 = vmatprep.subr.mxu0 0.0
  %3167 = vmatpush1.msra.mxu0 0.0
  %3168 = vmatprep.subr.mxu0 0.0
  %3169 = vmatpush1.msra.mxu0 0.0
  %3170 = vmatprep.subr.mxu0 0.0
  %3171 = vmatpush1.msra.mxu0 0.0
  %3172 = vmatprep.subr.mxu0 0.0
  %3173 = vmatpush1.msra.mxu0 0.0
  %3174 = vmatprep.subr.mxu0 0.0
  %3175 = vmatpush1.msra.mxu0 0.0
  %3176 = vmatprep.subr.mxu0 0.0
  %3177 = vmatpush1.msra.mxu0 0.0
  %3178 = vmatprep.subr.mxu0 0.0
  %3179 = vmatpush1.msra.mxu0 0.0
  %3180 = vmatprep.subr.mxu0 0.0
  %3181 = vmatpush1.msra.mxu0 0.0
  %3182 = vmatprep.subr.mxu0 0.0
  %3183 = vmatpush1.msra.mxu0 0.0
  %3184 = vmatprep.subr.mxu0 0.0
  %3185 = vmatpush1.msra.mxu0 0.0
  %3186 = vmatprep.subr.mxu0 0.0
  %3187 = vmatpush1.msra.mxu0 0.0
  %3188 = vmatprep.subr.mxu0 0.0
  %3189 = vmatpush1.msra.mxu0 0.0
  %3190 = vmatprep.subr.mxu0 0.0
  %3191 = vmatpush1.msra.mxu0 0.0
  %3192 = vmatprep.subr.mxu0 0.0
  %3193 = vmatpush1.msra.mxu0 0.0
  %3194 = vmatprep.subr.mxu0 0.0
  %3195 = vmatpush1.msra.mxu0 0.0
  %3196 = vmatprep.subr.mxu0 0.0
  %3197 = vmatpush1.msra.mxu0 0.0
  %3198 = vmatprep.subr.mxu0 0.0
  %3199 = vmatpush1.msra.mxu0 0.0
  %3200 = vmatprep.subr.mxu0 0.0
  %3201 = vmatpush1.msra.mxu0 0.0
  %3202 = vmatprep.subr.mxu0 0.0
  %3203 = vmatpush1.msra.mxu0 0.0
  %3204 = vmatprep.subr.mxu0 0.0
  %3205 = vmatpush1.msra.mxu0 0.0
  %3206 = vmatprep.subr.mxu0 0.0
  %3207 = vmatpush1.msra.mxu0 0.0
  %3208 = vmatprep.subr.mxu0 0.0
  %3209 = vmatpush1.msra.mxu0 0.0
  %3210 = vmatprep.subr.mxu0 0.0
  %3211 = vmatpush1.msra.mxu0 0.0
  %3212 = vmatprep.subr.mxu0 0.0
  %3213 = vmatpush1.msra.mxu0 0.0
  %3214 = vmatprep.subr.mxu0 0.0
  %3215 = vmatpush1.msra.mxu0 0.0
  %3216 = vmatprep.mubr.f32.mxu0 0.0
  %3217 = vmatmul.mubr.f32.gmra.mrb[0].mxu0 %v3147
  %v3218 = vpop.f32.mrb[0].mxu0
  %v3219 = vadd.f32 %v3141, %v3218
  %v3220 = vpop.f32.mrb[0].mxu0
  %3221 = vmatprep.mubr.f32.mxu0 0.0
  %3222 = vmatmul.mubr.f32.gmra.mrb[0].mxu0 %v3150
  %v3223 = vpop.f32.mrb[0].mxu0
  %v3224 = vadd.f32 %v3143, %v3223
  %v3225 = vpop.f32.mrb[0].mxu0
  %3226 = vdwg.mxu0
  %v3227 = vadd.f32 %v3005, %v3219
  %v3228 = vadd.f32 %v3010, %v3224
  %vm3229 = vcmp.gt.f32.partialorder %v3227, 0.0
  %vm3230 = vcmp.gt.f32.partialorder %v3228, 0.0
  %v3231 = vmul.f32 %v3227, 0.01
  %v3232 = vmul.f32 %v3228, 0.01
  %v3233 = vsel %vm3229, %v3227, %v3231
  %v3234 = vsel %vm3230, %v3228, %v3232
  %v3235 = vld [vmem:[%s5] sm:$0xff]
  %v3236 = vld [vmem:[%s5 + $0x8] sm:$0xff]
  %v3237 = vld [vmem:[%s5 + $0x10] sm:$0xf]
  %v3238 = vpack.c.bf16 %v3234, %v3233
  %v3239 = vld [vmem:[%s4] sm:$0xf]
  %v3240 = vld [vmem:[%s4 + $0x4] sm:$0xf]
  %v3241 = vld [vmem:[%s4 + $0x8] sm:$0x3]
  %v3242 = vld [vmem:[%s6 + $0x2] sm:$0x1]
  %v3243 = vlaneseq
  %v3244 = vshrl.u32 %v3243, 7
  %v3245 = vsub.s32 0, %v3244
  %v3246 = vrot.slane %v3242, %v3245
  %v3250 = vunpack.c.l.b16 %v3239
  %v3251 = vunpack.c.l.b16 %v3240
  %v3252 = vunpack.c.l.b16 %v3241
  %v3253 = vpack.c.b16 %v3251, %v3250
  %v3254 = vpack.c.b16 %v3252, %v3252
  %v3257 = vsel %vm2803, %v3238, 0
  %vm3259 = vcmask 1041408
  %v3261 = vsel %vm3259, %v3254, 0
  %3263 = vmatprep.subr.bf16.mxu0 0
  %3264 = vmatpush1.bf16.msra.mxu0 %v3253
  %3265 = vmatprep.subr.bf16.mxu0 0
  %3266 = vmatpush1.bf16.msra.mxu0 %v3261
  %3267 = vmatprep.subr.bf16.mxu0 0
  %3268 = vmatpush1.bf16.msra.mxu0 0
  %3269 = vmatprep.subr.bf16.mxu0 0
  %3270 = vmatpush1.bf16.msra.mxu0 0
  %3271 = vmatprep.subr.bf16.mxu0 0
  %3272 = vmatpush1.bf16.msra.mxu0 0
  %3273 = vmatprep.subr.bf16.mxu0 0
  %3274 = vmatpush1.bf16.msra.mxu0 0
  %3275 = vmatprep.subr.bf16.mxu0 0
  %3276 = vmatpush1.bf16.msra.mxu0 0
  %3277 = vmatprep.subr.bf16.mxu0 0
  %3278 = vmatpush1.bf16.msra.mxu0 0
  %3279 = vmatprep.subr.bf16.mxu0 0
  %3280 = vmatpush1.bf16.msra.mxu0 0
  %3281 = vmatprep.subr.bf16.mxu0 0
  %3282 = vmatpush1.bf16.msra.mxu0 0
  %3283 = vmatprep.subr.bf16.mxu0 0
  %3284 = vmatpush1.bf16.msra.mxu0 0
  %3285 = vmatprep.subr.bf16.mxu0 0
  %3286 = vmatpush1.bf16.msra.mxu0 0
  %3287 = vmatprep.subr.bf16.mxu0 0
  %3288 = vmatpush1.bf16.msra.mxu0 0
  %3289 = vmatprep.subr.bf16.mxu0 0
  %3290 = vmatpush1.bf16.msra.mxu0 0
  %3291 = vmatprep.subr.bf16.mxu0 0
  %3292 = vmatpush1.bf16.msra.mxu0 0
  %3293 = vmatprep.subr.bf16.mxu0 0
  %3294 = vmatpush1.bf16.msra.mxu0 0
  %3295 = vmatprep.mubr.bf16.mxu0 0
  %3296 = vmatmul.mubr.bf16.gmra.mrb[0].mxu0 %v3257
  %v3297 = vpop.f32.mrb[0].mxu0
  %v3298 = vadd.f32 %v3246, %v3297
  %v3299 = vpop.f32.mrb[0].mxu0
  %v3300 = vpop.f32.mrb[0].mxu0
  %v3301 = vadd.f32 %v3246, %v3300
  %v3302 = vpop.f32.mrb[0].mxu0
  %3303 = vdwg.mxu0
  %s3304 = scalar_lea.vmem %s4, 12
  %v3305 = vld [vmem:[%s3304] sm:$0xf]
  %v3306 = vld [vmem:[%s3304 + $0x4] sm:$0xf]
  %v3307 = vld [vmem:[%s3304 + $0x8] sm:$0x3]
  %v3308 = vld [vmem:[%s6 + $0x3] sm:$0x1]
  %v3309 = vlaneseq
  %v3310 = vshrl.u32 %v3309, 7
  %v3311 = vsub.s32 0, %v3310
  %v3312 = vrot.slane %v3308, %v3311
  %v3316 = vunpack.c.l.b16 %v3305
  %v3317 = vunpack.c.l.b16 %v3306
  %v3318 = vunpack.c.l.b16 %v3307
  %v3319 = vpack.c.b16 %v3317, %v3316
  %v3320 = vpack.c.b16 %v3318, %v3318
  %v3323 = vsel %vm3259, %v3320, 0
  %3325 = vmatprep.subr.bf16.mxu0 0
  %3326 = vmatpush1.bf16.msra.mxu0 %v3319
  %3327 = vmatprep.subr.bf16.mxu0 0
  %3328 = vmatpush1.bf16.msra.mxu0 %v3323
  %3329 = vmatprep.subr.bf16.mxu0 0
  %3330 = vmatpush1.bf16.msra.mxu0 0
  %3331 = vmatprep.subr.bf16.mxu0 0
  %3332 = vmatpush1.bf16.msra.mxu0 0
  %3333 = vmatprep.subr.bf16.mxu0 0
  %3334 = vmatpush1.bf16.msra.mxu0 0
  %3335 = vmatprep.subr.bf16.mxu0 0
  %3336 = vmatpush1.bf16.msra.mxu0 0
  %3337 = vmatprep.subr.bf16.mxu0 0
  %3338 = vmatpush1.bf16.msra.mxu0 0
  %3339 = vmatprep.subr.bf16.mxu0 0
  %3340 = vmatpush1.bf16.msra.mxu0 0
  %3341 = vmatprep.subr.bf16.mxu0 0
  %3342 = vmatpush1.bf16.msra.mxu0 0
  %3343 = vmatprep.subr.bf16.mxu0 0
  %3344 = vmatpush1.bf16.msra.mxu0 0
  %3345 = vmatprep.subr.bf16.mxu0 0
  %3346 = vmatpush1.bf16.msra.mxu0 0
  %3347 = vmatprep.subr.bf16.mxu0 0
  %3348 = vmatpush1.bf16.msra.mxu0 0
  %3349 = vmatprep.subr.bf16.mxu0 0
  %3350 = vmatpush1.bf16.msra.mxu0 0
  %3351 = vmatprep.subr.bf16.mxu0 0
  %3352 = vmatpush1.bf16.msra.mxu0 0
  %3353 = vmatprep.subr.bf16.mxu0 0
  %3354 = vmatpush1.bf16.msra.mxu0 0
  %3355 = vmatprep.subr.bf16.mxu0 0
  %3356 = vmatpush1.bf16.msra.mxu0 0
  %3357 = vmatprep.mubr.bf16.mxu0 0
  %3358 = vmatmul.mubr.bf16.gmra.mrb[0].mxu0 %v3257
  %v3359 = vpop.f32.mrb[0].mxu0
  %v3360 = vadd.f32 %v3312, %v3359
  %v3361 = vpop.f32.mrb[0].mxu0
  %v3362 = vpop.f32.mrb[0].mxu0
  %v3363 = vadd.f32 %v3312, %v3362
  %v3364 = vpop.f32.mrb[0].mxu0
  %3365 = vdwg.mxu0
  %3368 = vrot.lane.b32.xlu0 %v3298, 108
  %v3369 = vpop.permute.xlu0 %3368
  %3370 = vrot.lane.b32.xlu0 %v3301, 108
  %v3371 = vpop.permute.xlu0 %3370
  %v3372 = vsel %vm2803, %v3298, 0
  %v3374 = vsel %vm2803, %v3301, 0
  %v3376 = vsel %vm2803, %v3369, 0
  %v3378 = vsel %vm2803, %v3371, 0
  %3380 = vmatprep.subr.mxu0 0.0
  %3381 = vmatpush1.xpose.msra.mxu0 %v3376
  %3382 = vmatprep.subr.mxu0 0.0
  %3383 = vmatpush1.xpose.msra.mxu0 %v3378
  %3384 = vmatprep.subr.mxu0 0.0
  %3385 = vmatpush1.xpose.msra.mxu0 0.0
  %3386 = vmatprep.subr.mxu0 0.0
  %3387 = vmatpush1.xpose.msra.mxu0 0.0
  %3388 = vmatprep.subr.mxu0 0.0
  %3389 = vmatpush1.xpose.msra.mxu0 0.0
  %3390 = vmatprep.subr.mxu0 0.0
  %3391 = vmatpush1.xpose.msra.mxu0 0.0
  %3392 = vmatprep.subr.mxu0 0.0
  %3393 = vmatpush1.xpose.msra.mxu0 0.0
  %3394 = vmatprep.subr.mxu0 0.0
  %3395 = vmatpush1.xpose.msra.mxu0 0.0
  %3396 = vmatprep.subr.mxu0 0.0
  %3397 = vmatpush1.xpose.msra.mxu0 0.0
  %3398 = vmatprep.subr.mxu0 0.0
  %3399 = vmatpush1.xpose.msra.mxu0 0.0
  %3400 = vmatprep.subr.mxu0 0.0
  %3401 = vmatpush1.xpose.msra.mxu0 0.0
  %3402 = vmatprep.subr.mxu0 0.0
  %3403 = vmatpush1.xpose.msra.mxu0 0.0
  %3404 = vmatprep.subr.mxu0 0.0
  %3405 = vmatpush1.xpose.msra.mxu0 0.0
  %3406 = vmatprep.subr.mxu0 0.0
  %3407 = vmatpush1.xpose.msra.mxu0 0.0
  %3408 = vmatprep.subr.mxu0 0.0
  %3409 = vmatpush1.xpose.msra.mxu0 0.0
  %3410 = vmatprep.subr.mxu0 0.0
  %3411 = vmatpush1.xpose.msra.mxu0 0.0
  %3412 = vmatprep.subr.mxu0 0.0
  %3413 = vmatpush1.xpose.msra.mxu0 0.0
  %3414 = vmatprep.subr.mxu0 0.0
  %3415 = vmatpush1.xpose.msra.mxu0 0.0
  %3416 = vmatprep.subr.mxu0 0.0
  %3417 = vmatpush1.xpose.msra.mxu0 0.0
  %3418 = vmatprep.subr.mxu0 0.0
  %3419 = vmatpush1.xpose.msra.mxu0 0.0
  %3420 = vmatprep.subr.mxu0 0.0
  %3421 = vmatpush1.xpose.msra.mxu0 0.0
  %3422 = vmatprep.subr.mxu0 0.0
  %3423 = vmatpush1.xpose.msra.mxu0 0.0
  %3424 = vmatprep.subr.mxu0 0.0
  %3425 = vmatpush1.xpose.msra.mxu0 0.0
  %3426 = vmatprep.subr.mxu0 0.0
  %3427 = vmatpush1.xpose.msra.mxu0 0.0
  %3428 = vmatprep.subr.mxu0 0.0
  %3429 = vmatpush1.xpose.msra.mxu0 0.0
  %3430 = vmatprep.subr.mxu0 0.0
  %3431 = vmatpush1.xpose.msra.mxu0 0.0
  %3432 = vmatprep.subr.mxu0 0.0
  %3433 = vmatpush1.xpose.msra.mxu0 0.0
  %3434 = vmatprep.subr.mxu0 0.0
  %3435 = vmatpush1.xpose.msra.mxu0 0.0
  %3436 = vmatprep.subr.mxu0 0.0
  %3437 = vmatpush1.xpose.msra.mxu0 0.0
  %3438 = vmatprep.subr.mxu0 0.0
  %3439 = vmatpush1.xpose.msra.mxu0 0.0
  %3440 = vmatprep.subr.mxu0 0.0
  %3441 = vmatpush1.xpose.msra.mxu0 0.0
  %3442 = vmatprep.subr.mxu0 0.0
  %3443 = vmatpush1.xpose.msra.mxu0 0.0
  %3444 = vmatprep.mubr.f32.mxu0 0.0
  %3445 = vmatmul.mubr.f32.gmra.mrb[0].mxu0 %v3372
  %v3446 = vpop.f32.mrb[0].mxu0
  %v3447 = vadd.f32 0.0, %v3446
  %v3448 = vpop.f32.mrb[0].mxu0
  %3449 = vmatprep.mubr.f32.mxu0 0.0
  %3450 = vmatmul.mubr.f32.gmra.mrb[0].mxu0 %v3374
  %v3451 = vpop.f32.mrb[0].mxu0
  %v3452 = vadd.f32 0.0, %v3451
  %v3453 = vpop.f32.mrb[0].mxu0
  %3454 = vdwg.mxu0
  %v3455 = vsel %vm2887, %v3447, -1e+30
  %v3456 = vsel %vm2888, %v3452, -1e+30
  %v3457 = vsel %vm2891, %v3455, -inf
  %3458 = vmax.xlane.f32.xlu0 %v3457
  %v3459 = vpop.xlane.xlu0 %3458
  %v3460 = vsel %vm2891, %v3456, -inf
  %3461 = vmax.xlane.f32.xlu0 %v3460
  %v3462 = vpop.xlane.xlu0 %3461
  %v3463 = vsub.f32 %v3455, %v3459
  %v3464 = vsub.f32 %v3456, %v3462
  %v3465 = vmul.f32 %v3463, 1.442695
  %v3466 = vpow.pop %v3465
  %v3467 = vmul.f32 %v3464, 1.442695
  %v3468 = vpow.pop %v3467
  %v3469 = vmul.f32 %v3466, %v27
  %v3470 = vmul.f32 %v3468, %v28
  %v3471 = vsel %vm2891, %v3469, 0.0
  %3472 = vadd.xlane.f32.xlu0 %v3471
  %v3473 = vpop.xlane.xlu0 %3472
  %v3474 = vsel %vm2891, %v3470, 0.0
  %3475 = vadd.xlane.f32.xlu0 %v3474
  %v3476 = vpop.xlane.xlu0 %3475
  %vm3477 = vcmp.gt.f32.partialorder %v3473, 0.0
  %vm3478 = vcmp.gt.f32.partialorder %v3476, 0.0
  %v3479 = vsel %vm3477, %v3473, 1.0
  %v3480 = vsel %vm3478, %v3476, 1.0
  %v3481 = vrcp.pop %v3479
  %v3482 = vmul.f32 %v3469, %v3481
  %v3483 = vrcp.pop %v3480
  %v3484 = vmul.f32 %v3470, %v3483
  %3485 = vrot.lane.b32.xlu0 %v3298, 88
  %v3486 = vpop.permute.xlu0 %3485
  %3487 = vrot.lane.b32.xlu0 %v3301, 88
  %v3488 = vpop.permute.xlu0 %3487
  %3491 = vrot.lane.b32.xlu0 %v3298, 68
  %v3492 = vpop.permute.xlu0 %3491
  %3493 = vrot.lane.b32.xlu0 %v3301, 68
  %v3494 = vpop.permute.xlu0 %3493
  %v3498 = vsel %vm2891, %v3482, 0
  %v3501 = vsel %vm2891, %v3484, 0
  %3503 = vmatprep.subr.mxu0 0.0
  %3504 = vmatpush1.msra.mxu0 %v3486
  %3505 = vmatprep.subr.mxu0 0.0
  %3506 = vmatpush1.msra.mxu0 %v3488
  %3507 = vmatprep.subr.mxu0 0.0
  %3508 = vmatpush1.msra.mxu0 0.0
  %3509 = vmatprep.subr.mxu0 0.0
  %3510 = vmatpush1.msra.mxu0 0.0
  %3511 = vmatprep.subr.mxu0 0.0
  %3512 = vmatpush1.msra.mxu0 0.0
  %3513 = vmatprep.subr.mxu0 0.0
  %3514 = vmatpush1.msra.mxu0 0.0
  %3515 = vmatprep.subr.mxu0 0.0
  %3516 = vmatpush1.msra.mxu0 0.0
  %3517 = vmatprep.subr.mxu0 0.0
  %3518 = vmatpush1.msra.mxu0 0.0
  %3519 = vmatprep.subr.mxu0 0.0
  %3520 = vmatpush1.msra.mxu0 0.0
  %3521 = vmatprep.subr.mxu0 0.0
  %3522 = vmatpush1.msra.mxu0 0.0
  %3523 = vmatprep.subr.mxu0 0.0
  %3524 = vmatpush1.msra.mxu0 0.0
  %3525 = vmatprep.subr.mxu0 0.0
  %3526 = vmatpush1.msra.mxu0 0.0
  %3527 = vmatprep.subr.mxu0 0.0
  %3528 = vmatpush1.msra.mxu0 0.0
  %3529 = vmatprep.subr.mxu0 0.0
  %3530 = vmatpush1.msra.mxu0 0.0
  %3531 = vmatprep.subr.mxu0 0.0
  %3532 = vmatpush1.msra.mxu0 0.0
  %3533 = vmatprep.subr.mxu0 0.0
  %3534 = vmatpush1.msra.mxu0 0.0
  %3535 = vmatprep.subr.mxu0 0.0
  %3536 = vmatpush1.msra.mxu0 0.0
  %3537 = vmatprep.subr.mxu0 0.0
  %3538 = vmatpush1.msra.mxu0 0.0
  %3539 = vmatprep.subr.mxu0 0.0
  %3540 = vmatpush1.msra.mxu0 0.0
  %3541 = vmatprep.subr.mxu0 0.0
  %3542 = vmatpush1.msra.mxu0 0.0
  %3543 = vmatprep.subr.mxu0 0.0
  %3544 = vmatpush1.msra.mxu0 0.0
  %3545 = vmatprep.subr.mxu0 0.0
  %3546 = vmatpush1.msra.mxu0 0.0
  %3547 = vmatprep.subr.mxu0 0.0
  %3548 = vmatpush1.msra.mxu0 0.0
  %3549 = vmatprep.subr.mxu0 0.0
  %3550 = vmatpush1.msra.mxu0 0.0
  %3551 = vmatprep.subr.mxu0 0.0
  %3552 = vmatpush1.msra.mxu0 0.0
  %3553 = vmatprep.subr.mxu0 0.0
  %3554 = vmatpush1.msra.mxu0 0.0
  %3555 = vmatprep.subr.mxu0 0.0
  %3556 = vmatpush1.msra.mxu0 0.0
  %3557 = vmatprep.subr.mxu0 0.0
  %3558 = vmatpush1.msra.mxu0 0.0
  %3559 = vmatprep.subr.mxu0 0.0
  %3560 = vmatpush1.msra.mxu0 0.0
  %3561 = vmatprep.subr.mxu0 0.0
  %3562 = vmatpush1.msra.mxu0 0.0
  %3563 = vmatprep.subr.mxu0 0.0
  %3564 = vmatpush1.msra.mxu0 0.0
  %3565 = vmatprep.subr.mxu0 0.0
  %3566 = vmatpush1.msra.mxu0 0.0
  %3567 = vmatprep.mubr.f32.mxu0 0.0
  %3568 = vmatmul.mubr.f32.gmra.mrb[0].mxu0 %v3498
  %v3569 = vpop.f32.mrb[0].mxu0
  %v3570 = vadd.f32 %v3492, %v3569
  %v3571 = vpop.f32.mrb[0].mxu0
  %3572 = vmatprep.mubr.f32.mxu0 0.0
  %3573 = vmatmul.mubr.f32.gmra.mrb[0].mxu0 %v3501
  %v3574 = vpop.f32.mrb[0].mxu0
  %v3575 = vadd.f32 %v3494, %v3574
  %v3576 = vpop.f32.mrb[0].mxu0
  %3577 = vdwg.mxu0
  %3580 = vrot.lane.b32.xlu0 %v3360, 108
  %v3581 = vpop.permute.xlu0 %3580
  %3582 = vrot.lane.b32.xlu0 %v3363, 108
  %v3583 = vpop.permute.xlu0 %3582
  %v3584 = vsel %vm2803, %v3360, 0
  %v3586 = vsel %vm2803, %v3363, 0
  %v3588 = vsel %vm2803, %v3581, 0
  %v3590 = vsel %vm2803, %v3583, 0
  %3592 = vmatprep.subr.mxu0 0.0
  %3593 = vmatpush1.xpose.msra.mxu0 %v3588
  %3594 = vmatprep.subr.mxu0 0.0
  %3595 = vmatpush1.xpose.msra.mxu0 %v3590
  %3596 = vmatprep.subr.mxu0 0.0
  %3597 = vmatpush1.xpose.msra.mxu0 0.0
  %3598 = vmatprep.subr.mxu0 0.0
  %3599 = vmatpush1.xpose.msra.mxu0 0.0
  %3600 = vmatprep.subr.mxu0 0.0
  %3601 = vmatpush1.xpose.msra.mxu0 0.0
  %3602 = vmatprep.subr.mxu0 0.0
  %3603 = vmatpush1.xpose.msra.mxu0 0.0
  %3604 = vmatprep.subr.mxu0 0.0
  %3605 = vmatpush1.xpose.msra.mxu0 0.0
  %3606 = vmatprep.subr.mxu0 0.0
  %3607 = vmatpush1.xpose.msra.mxu0 0.0
  %3608 = vmatprep.subr.mxu0 0.0
  %3609 = vmatpush1.xpose.msra.mxu0 0.0
  %3610 = vmatprep.subr.mxu0 0.0
  %3611 = vmatpush1.xpose.msra.mxu0 0.0
  %3612 = vmatprep.subr.mxu0 0.0
  %3613 = vmatpush1.xpose.msra.mxu0 0.0
  %3614 = vmatprep.subr.mxu0 0.0
  %3615 = vmatpush1.xpose.msra.mxu0 0.0
  %3616 = vmatprep.subr.mxu0 0.0
  %3617 = vmatpush1.xpose.msra.mxu0 0.0
  %3618 = vmatprep.subr.mxu0 0.0
  %3619 = vmatpush1.xpose.msra.mxu0 0.0
  %3620 = vmatprep.subr.mxu0 0.0
  %3621 = vmatpush1.xpose.msra.mxu0 0.0
  %3622 = vmatprep.subr.mxu0 0.0
  %3623 = vmatpush1.xpose.msra.mxu0 0.0
  %3624 = vmatprep.subr.mxu0 0.0
  %3625 = vmatpush1.xpose.msra.mxu0 0.0
  %3626 = vmatprep.subr.mxu0 0.0
  %3627 = vmatpush1.xpose.msra.mxu0 0.0
  %3628 = vmatprep.subr.mxu0 0.0
  %3629 = vmatpush1.xpose.msra.mxu0 0.0
  %3630 = vmatprep.subr.mxu0 0.0
  %3631 = vmatpush1.xpose.msra.mxu0 0.0
  %3632 = vmatprep.subr.mxu0 0.0
  %3633 = vmatpush1.xpose.msra.mxu0 0.0
  %3634 = vmatprep.subr.mxu0 0.0
  %3635 = vmatpush1.xpose.msra.mxu0 0.0
  %3636 = vmatprep.subr.mxu0 0.0
  %3637 = vmatpush1.xpose.msra.mxu0 0.0
  %3638 = vmatprep.subr.mxu0 0.0
  %3639 = vmatpush1.xpose.msra.mxu0 0.0
  %3640 = vmatprep.subr.mxu0 0.0
  %3641 = vmatpush1.xpose.msra.mxu0 0.0
  %3642 = vmatprep.subr.mxu0 0.0
  %3643 = vmatpush1.xpose.msra.mxu0 0.0
  %3644 = vmatprep.subr.mxu0 0.0
  %3645 = vmatpush1.xpose.msra.mxu0 0.0
  %3646 = vmatprep.subr.mxu0 0.0
  %3647 = vmatpush1.xpose.msra.mxu0 0.0
  %3648 = vmatprep.subr.mxu0 0.0
  %3649 = vmatpush1.xpose.msra.mxu0 0.0
  %3650 = vmatprep.subr.mxu0 0.0
  %3651 = vmatpush1.xpose.msra.mxu0 0.0
  %3652 = vmatprep.subr.mxu0 0.0
  %3653 = vmatpush1.xpose.msra.mxu0 0.0
  %3654 = vmatprep.subr.mxu0 0.0
  %3655 = vmatpush1.xpose.msra.mxu0 0.0
  %3656 = vmatprep.mubr.f32.mxu0 0.0
  %3657 = vmatmul.mubr.f32.gmra.mrb[0].mxu0 %v3584
  %v3658 = vpop.f32.mrb[0].mxu0
  %v3659 = vadd.f32 0.0, %v3658
  %v3660 = vpop.f32.mrb[0].mxu0
  %3661 = vmatprep.mubr.f32.mxu0 0.0
  %3662 = vmatmul.mubr.f32.gmra.mrb[0].mxu0 %v3586
  %v3663 = vpop.f32.mrb[0].mxu0
  %v3664 = vadd.f32 0.0, %v3663
  %v3665 = vpop.f32.mrb[0].mxu0
  %3666 = vdwg.mxu0
  %v3667 = vsel %vm3102, %v3659, -1e+30
  %v3668 = vsel %vm3103, %v3664, -1e+30
  %v3669 = vsel %vm2891, %v3667, -inf
  %3670 = vmax.xlane.f32.xlu0 %v3669
  %v3671 = vpop.xlane.xlu0 %3670
  %v3672 = vsel %vm2891, %v3668, -inf
  %3673 = vmax.xlane.f32.xlu0 %v3672
  %v3674 = vpop.xlane.xlu0 %3673
  %v3675 = vsub.f32 %v3667, %v3671
  %v3676 = vsub.f32 %v3668, %v3674
  %v3677 = vmul.f32 %v3675, 1.442695
  %v3678 = vpow.pop %v3677
  %v3679 = vmul.f32 %v3676, 1.442695
  %v3680 = vpow.pop %v3679
  %v3681 = vmul.f32 %v3678, %v29
  %v3682 = vmul.f32 %v3680, %v30
  %v3683 = vsel %vm2891, %v3681, 0.0
  %3684 = vadd.xlane.f32.xlu0 %v3683
  %v3685 = vpop.xlane.xlu0 %3684
  %v3686 = vsel %vm2891, %v3682, 0.0
  %3687 = vadd.xlane.f32.xlu0 %v3686
  %v3688 = vpop.xlane.xlu0 %3687
  %vm3689 = vcmp.gt.f32.partialorder %v3685, 0.0
  %vm3690 = vcmp.gt.f32.partialorder %v3688, 0.0
  %v3691 = vsel %vm3689, %v3685, 1.0
  %v3692 = vsel %vm3690, %v3688, 1.0
  %v3693 = vrcp.pop %v3691
  %v3694 = vmul.f32 %v3681, %v3693
  %v3695 = vrcp.pop %v3692
  %v3696 = vmul.f32 %v3682, %v3695
  %3697 = vrot.lane.b32.xlu0 %v3360, 88
  %v3698 = vpop.permute.xlu0 %3697
  %3699 = vrot.lane.b32.xlu0 %v3363, 88
  %v3700 = vpop.permute.xlu0 %3699
  %3703 = vrot.lane.b32.xlu0 %v3360, 68
  %v3704 = vpop.permute.xlu0 %3703
  %3705 = vrot.lane.b32.xlu0 %v3363, 68
  %v3706 = vpop.permute.xlu0 %3705
  %v3710 = vsel %vm2891, %v3694, 0
  %v3713 = vsel %vm2891, %v3696, 0
  %3715 = vmatprep.subr.mxu0 0.0
  %3716 = vmatpush1.msra.mxu0 %v3698
  %3717 = vmatprep.subr.mxu0 0.0
  %3718 = vmatpush1.msra.mxu0 %v3700
  %3719 = vmatprep.subr.mxu0 0.0
  %3720 = vmatpush1.msra.mxu0 0.0
  %3721 = vmatprep.subr.mxu0 0.0
  %3722 = vmatpush1.msra.mxu0 0.0
  %3723 = vmatprep.subr.mxu0 0.0
  %3724 = vmatpush1.msra.mxu0 0.0
  %3725 = vmatprep.subr.mxu0 0.0
  %3726 = vmatpush1.msra.mxu0 0.0
  %3727 = vmatprep.subr.mxu0 0.0
  %3728 = vmatpush1.msra.mxu0 0.0
  %3729 = vmatprep.subr.mxu0 0.0
  %3730 = vmatpush1.msra.mxu0 0.0
  %3731 = vmatprep.subr.mxu0 0.0
  %3732 = vmatpush1.msra.mxu0 0.0
  %3733 = vmatprep.subr.mxu0 0.0
  %3734 = vmatpush1.msra.mxu0 0.0
  %3735 = vmatprep.subr.mxu0 0.0
  %3736 = vmatpush1.msra.mxu0 0.0
  %3737 = vmatprep.subr.mxu0 0.0
  %3738 = vmatpush1.msra.mxu0 0.0
  %3739 = vmatprep.subr.mxu0 0.0
  %3740 = vmatpush1.msra.mxu0 0.0
  %3741 = vmatprep.subr.mxu0 0.0
  %3742 = vmatpush1.msra.mxu0 0.0
  %3743 = vmatprep.subr.mxu0 0.0
  %3744 = vmatpush1.msra.mxu0 0.0
  %3745 = vmatprep.subr.mxu0 0.0
  %3746 = vmatpush1.msra.mxu0 0.0
  %3747 = vmatprep.subr.mxu0 0.0
  %3748 = vmatpush1.msra.mxu0 0.0
  %3749 = vmatprep.subr.mxu0 0.0
  %3750 = vmatpush1.msra.mxu0 0.0
  %3751 = vmatprep.subr.mxu0 0.0
  %3752 = vmatpush1.msra.mxu0 0.0
  %3753 = vmatprep.subr.mxu0 0.0
  %3754 = vmatpush1.msra.mxu0 0.0
  %3755 = vmatprep.subr.mxu0 0.0
  %3756 = vmatpush1.msra.mxu0 0.0
  %3757 = vmatprep.subr.mxu0 0.0
  %3758 = vmatpush1.msra.mxu0 0.0
  %3759 = vmatprep.subr.mxu0 0.0
  %3760 = vmatpush1.msra.mxu0 0.0
  %3761 = vmatprep.subr.mxu0 0.0
  %3762 = vmatpush1.msra.mxu0 0.0
  %3763 = vmatprep.subr.mxu0 0.0
  %3764 = vmatpush1.msra.mxu0 0.0
  %3765 = vmatprep.subr.mxu0 0.0
  %3766 = vmatpush1.msra.mxu0 0.0
  %3767 = vmatprep.subr.mxu0 0.0
  %3768 = vmatpush1.msra.mxu0 0.0
  %3769 = vmatprep.subr.mxu0 0.0
  %3770 = vmatpush1.msra.mxu0 0.0
  %3771 = vmatprep.subr.mxu0 0.0
  %3772 = vmatpush1.msra.mxu0 0.0
  %3773 = vmatprep.subr.mxu0 0.0
  %3774 = vmatpush1.msra.mxu0 0.0
  %3775 = vmatprep.subr.mxu0 0.0
  %3776 = vmatpush1.msra.mxu0 0.0
  %3777 = vmatprep.subr.mxu0 0.0
  %3778 = vmatpush1.msra.mxu0 0.0
  %3779 = vmatprep.mubr.f32.mxu0 0.0
  %3780 = vmatmul.mubr.f32.gmra.mrb[0].mxu0 %v3710
  %v3781 = vpop.f32.mrb[0].mxu0
  %v3782 = vadd.f32 %v3704, %v3781
  %v3783 = vpop.f32.mrb[0].mxu0
  %3784 = vmatprep.mubr.f32.mxu0 0.0
  %3785 = vmatmul.mubr.f32.gmra.mrb[0].mxu0 %v3713
  %v3786 = vpop.f32.mrb[0].mxu0
  %v3787 = vadd.f32 %v3706, %v3786
  %v3788 = vpop.f32.mrb[0].mxu0
  %3789 = vdwg.mxu0
  %v3790 = vadd.f32 %v3570, %v3782
  %v3791 = vadd.f32 %v3575, %v3787
  %vm3792 = vcmp.gt.f32.partialorder %v3790, 0.0
  %vm3793 = vcmp.gt.f32.partialorder %v3791, 0.0
  %v3794 = vmul.f32 %v3790, 0.01
  %v3795 = vmul.f32 %v3791, 0.01
  %v3796 = vsel %vm3792, %v3790, %v3794
  %v3797 = vsel %vm3793, %v3791, %v3795
  %s3798 = scalar_lea.vmem %s5, 24
  %v3799 = vld [vmem:[%s3798] sm:$0xff]
  %v3800 = vld [vmem:[%s3798 + $0x8] sm:$0xff]
  %v3801 = vld [vmem:[%s3798 + $0x10] sm:$0xf]
  %v3803 = vsel %vm2803, %v3796, 0
  %v3806 = vsel %vm2803, %v3797, 0
  %vm3808 = vcmask 1043456
  %v3810 = vsel %vm3808, %v3801, 0
  %3812 = vmatprep.subr.mxu0 0.0
  %3813 = vmatpush1.msra.mxu0 %v3799
  %3814 = vmatprep.subr.mxu0 0.0
  %3815 = vmatpush1.msra.mxu0 %v3800
  %3816 = vmatprep.subr.mxu0 0.0
  %3817 = vmatpush1.msra.mxu0 %v3810
  %3818 = vmatprep.subr.mxu0 0.0
  %3819 = vmatpush1.msra.mxu0 0.0
  %3820 = vmatprep.subr.mxu0 0.0
  %3821 = vmatpush1.msra.mxu0 0.0
  %3822 = vmatprep.subr.mxu0 0.0
  %3823 = vmatpush1.msra.mxu0 0.0
  %3824 = vmatprep.subr.mxu0 0.0
  %3825 = vmatpush1.msra.mxu0 0.0
  %3826 = vmatprep.subr.mxu0 0.0
  %3827 = vmatpush1.msra.mxu0 0.0
  %3828 = vmatprep.subr.mxu0 0.0
  %3829 = vmatpush1.msra.mxu0 0.0
  %3830 = vmatprep.subr.mxu0 0.0
  %3831 = vmatpush1.msra.mxu0 0.0
  %3832 = vmatprep.subr.mxu0 0.0
  %3833 = vmatpush1.msra.mxu0 0.0
  %3834 = vmatprep.subr.mxu0 0.0
  %3835 = vmatpush1.msra.mxu0 0.0
  %3836 = vmatprep.subr.mxu0 0.0
  %3837 = vmatpush1.msra.mxu0 0.0
  %3838 = vmatprep.subr.mxu0 0.0
  %3839 = vmatpush1.msra.mxu0 0.0
  %3840 = vmatprep.subr.mxu0 0.0
  %3841 = vmatpush1.msra.mxu0 0.0
  %3842 = vmatprep.subr.mxu0 0.0
  %3843 = vmatpush1.msra.mxu0 0.0
  %3844 = vmatprep.subr.mxu0 0.0
  %3845 = vmatpush1.msra.mxu0 0.0
  %3846 = vmatprep.subr.mxu0 0.0
  %3847 = vmatpush1.msra.mxu0 0.0
  %3848 = vmatprep.subr.mxu0 0.0
  %3849 = vmatpush1.msra.mxu0 0.0
  %3850 = vmatprep.subr.mxu0 0.0
  %3851 = vmatpush1.msra.mxu0 0.0
  %3852 = vmatprep.subr.mxu0 0.0
  %3853 = vmatpush1.msra.mxu0 0.0
  %3854 = vmatprep.subr.mxu0 0.0
  %3855 = vmatpush1.msra.mxu0 0.0
  %3856 = vmatprep.subr.mxu0 0.0
  %3857 = vmatpush1.msra.mxu0 0.0
  %3858 = vmatprep.subr.mxu0 0.0
  %3859 = vmatpush1.msra.mxu0 0.0
  %3860 = vmatprep.subr.mxu0 0.0
  %3861 = vmatpush1.msra.mxu0 0.0
  %3862 = vmatprep.subr.mxu0 0.0
  %3863 = vmatpush1.msra.mxu0 0.0
  %3864 = vmatprep.subr.mxu0 0.0
  %3865 = vmatpush1.msra.mxu0 0.0
  %3866 = vmatprep.subr.mxu0 0.0
  %3867 = vmatpush1.msra.mxu0 0.0
  %3868 = vmatprep.subr.mxu0 0.0
  %3869 = vmatpush1.msra.mxu0 0.0
  %3870 = vmatprep.subr.mxu0 0.0
  %3871 = vmatpush1.msra.mxu0 0.0
  %3872 = vmatprep.subr.mxu0 0.0
  %3873 = vmatpush1.msra.mxu0 0.0
  %3874 = vmatprep.subr.mxu0 0.0
  %3875 = vmatpush1.msra.mxu0 0.0
  %3876 = vmatprep.mubr.f32.mxu0 0.0
  %3877 = vmatmul.mubr.f32.gmra.mrb[0].mxu0 %v3803
  %v3878 = vpop.f32.mrb[0].mxu0
  %v3879 = vadd.f32 0.0, %v3878
  %v3880 = vpop.f32.mrb[0].mxu0
  %3881 = vmatprep.mubr.f32.mxu0 0.0
  %3882 = vmatmul.mubr.f32.gmra.mrb[0].mxu0 %v3806
  %v3883 = vpop.f32.mrb[0].mxu0
  %v3884 = vadd.f32 0.0, %v3883
  %v3885 = vpop.f32.mrb[0].mxu0
  %3886 = vdwg.mxu0
  %v3888 = vsel %vm2803, %v3233, 0
  %v3891 = vsel %vm2803, %v3234, 0
  %v3894 = vsel %vm3808, %v3237, 0
  %3896 = vmatprep.subr.mxu0 0.0
  %3897 = vmatpush1.msra.mxu0 %v3235
  %3898 = vmatprep.subr.mxu0 0.0
  %3899 = vmatpush1.msra.mxu0 %v3236
  %3900 = vmatprep.subr.mxu0 0.0
  %3901 = vmatpush1.msra.mxu0 %v3894
  %3902 = vmatprep.subr.mxu0 0.0
  %3903 = vmatpush1.msra.mxu0 0.0
  %3904 = vmatprep.subr.mxu0 0.0
  %3905 = vmatpush1.msra.mxu0 0.0
  %3906 = vmatprep.subr.mxu0 0.0
  %3907 = vmatpush1.msra.mxu0 0.0
  %3908 = vmatprep.subr.mxu0 0.0
  %3909 = vmatpush1.msra.mxu0 0.0
  %3910 = vmatprep.subr.mxu0 0.0
  %3911 = vmatpush1.msra.mxu0 0.0
  %3912 = vmatprep.subr.mxu0 0.0
  %3913 = vmatpush1.msra.mxu0 0.0
  %3914 = vmatprep.subr.mxu0 0.0
  %3915 = vmatpush1.msra.mxu0 0.0
  %3916 = vmatprep.subr.mxu0 0.0
  %3917 = vmatpush1.msra.mxu0 0.0
  %3918 = vmatprep.subr.mxu0 0.0
  %3919 = vmatpush1.msra.mxu0 0.0
  %3920 = vmatprep.subr.mxu0 0.0
  %3921 = vmatpush1.msra.mxu0 0.0
  %3922 = vmatprep.subr.mxu0 0.0
  %3923 = vmatpush1.msra.mxu0 0.0
  %3924 = vmatprep.subr.mxu0 0.0
  %3925 = vmatpush1.msra.mxu0 0.0
  %3926 = vmatprep.subr.mxu0 0.0
  %3927 = vmatpush1.msra.mxu0 0.0
  %3928 = vmatprep.subr.mxu0 0.0
  %3929 = vmatpush1.msra.mxu0 0.0
  %3930 = vmatprep.subr.mxu0 0.0
  %3931 = vmatpush1.msra.mxu0 0.0
  %3932 = vmatprep.subr.mxu0 0.0
  %3933 = vmatpush1.msra.mxu0 0.0
  %3934 = vmatprep.subr.mxu0 0.0
  %3935 = vmatpush1.msra.mxu0 0.0
  %3936 = vmatprep.subr.mxu0 0.0
  %3937 = vmatpush1.msra.mxu0 0.0
  %3938 = vmatprep.subr.mxu0 0.0
  %3939 = vmatpush1.msra.mxu0 0.0
  %3940 = vmatprep.subr.mxu0 0.0
  %3941 = vmatpush1.msra.mxu0 0.0
  %3942 = vmatprep.subr.mxu0 0.0
  %3943 = vmatpush1.msra.mxu0 0.0
  %3944 = vmatprep.subr.mxu0 0.0
  %3945 = vmatpush1.msra.mxu0 0.0
  %3946 = vmatprep.subr.mxu0 0.0
  %3947 = vmatpush1.msra.mxu0 0.0
  %3948 = vmatprep.subr.mxu0 0.0
  %3949 = vmatpush1.msra.mxu0 0.0
  %3950 = vmatprep.subr.mxu0 0.0
  %3951 = vmatpush1.msra.mxu0 0.0
  %3952 = vmatprep.subr.mxu0 0.0
  %3953 = vmatpush1.msra.mxu0 0.0
  %3954 = vmatprep.subr.mxu0 0.0
  %3955 = vmatpush1.msra.mxu0 0.0
  %3956 = vmatprep.subr.mxu0 0.0
  %3957 = vmatpush1.msra.mxu0 0.0
  %3958 = vmatprep.subr.mxu0 0.0
  %3959 = vmatpush1.msra.mxu0 0.0
  %3960 = vmatprep.mubr.f32.mxu0 0.0
  %3961 = vmatmul.mubr.f32.gmra.mrb[0].mxu0 %v3888
  %v3962 = vpop.f32.mrb[0].mxu0
  %v3963 = vadd.f32 %v3879, %v3962
  %v3964 = vpop.f32.mrb[0].mxu0
  %3965 = vmatprep.mubr.f32.mxu0 0.0
  %3966 = vmatmul.mubr.f32.gmra.mrb[0].mxu0 %v3891
  %v3967 = vpop.f32.mrb[0].mxu0
  %v3968 = vadd.f32 %v3884, %v3967
  %v3969 = vpop.f32.mrb[0].mxu0
  %3970 = vdwg.mxu0
  %v3971 = vpack.c.bf16 %v3797, %v3796
  %s3972 = scalar_lea.vmem %s4, 24
  %v3973 = vld [vmem:[%s3972] sm:$0xf]
  %v3974 = vld [vmem:[%s3972 + $0x4] sm:$0xf]
  %v3975 = vld [vmem:[%s3972 + $0x8] sm:$0x3]
  %v3976 = vld [vmem:[%s6 + $0x4] sm:$0x1]
  %v3977 = vlaneseq
  %v3978 = vshrl.u32 %v3977, 7
  %v3979 = vsub.s32 0, %v3978
  %v3980 = vrot.slane %v3976, %v3979
  %v3984 = vunpack.c.l.b16 %v3973
  %v3985 = vunpack.c.l.b16 %v3974
  %v3986 = vunpack.c.l.b16 %v3975
  %v3987 = vpack.c.b16 %v3985, %v3984
  %v3988 = vpack.c.b16 %v3986, %v3986
  %v3991 = vsel %vm2803, %v3971, 0
  %v3994 = vsel %vm3259, %v3988, 0
  %3996 = vmatprep.subr.bf16.mxu0 0
  %3997 = vmatpush1.bf16.msra.mxu0 %v3987
  %3998 = vmatprep.subr.bf16.mxu0 0
  %3999 = vmatpush1.bf16.msra.mxu0 %v3994
  %4000 = vmatprep.subr.bf16.mxu0 0
  %4001 = vmatpush1.bf16.msra.mxu0 0
  %4002 = vmatprep.subr.bf16.mxu0 0
  %4003 = vmatpush1.bf16.msra.mxu0 0
  %4004 = vmatprep.subr.bf16.mxu0 0
  %4005 = vmatpush1.bf16.msra.mxu0 0
  %4006 = vmatprep.subr.bf16.mxu0 0
  %4007 = vmatpush1.bf16.msra.mxu0 0
  %4008 = vmatprep.subr.bf16.mxu0 0
  %4009 = vmatpush1.bf16.msra.mxu0 0
  %4010 = vmatprep.subr.bf16.mxu0 0
  %4011 = vmatpush1.bf16.msra.mxu0 0
  %4012 = vmatprep.subr.bf16.mxu0 0
  %4013 = vmatpush1.bf16.msra.mxu0 0
  %4014 = vmatprep.subr.bf16.mxu0 0
  %4015 = vmatpush1.bf16.msra.mxu0 0
  %4016 = vmatprep.subr.bf16.mxu0 0
  %4017 = vmatpush1.bf16.msra.mxu0 0
  %4018 = vmatprep.subr.bf16.mxu0 0
  %4019 = vmatpush1.bf16.msra.mxu0 0
  %4020 = vmatprep.subr.bf16.mxu0 0
  %4021 = vmatpush1.bf16.msra.mxu0 0
  %4022 = vmatprep.subr.bf16.mxu0 0
  %4023 = vmatpush1.bf16.msra.mxu0 0
  %4024 = vmatprep.subr.bf16.mxu0 0
  %4025 = vmatpush1.bf16.msra.mxu0 0
  %4026 = vmatprep.subr.bf16.mxu0 0
  %4027 = vmatpush1.bf16.msra.mxu0 0
  %4028 = vmatprep.mubr.bf16.mxu0 0
  %4029 = vmatmul.mubr.bf16.gmra.mrb[0].mxu0 %v3991
  %v4030 = vpop.f32.mrb[0].mxu0
  %v4031 = vadd.f32 %v3980, %v4030
  %v4032 = vpop.f32.mrb[0].mxu0
  %v4033 = vpop.f32.mrb[0].mxu0
  %v4034 = vadd.f32 %v3980, %v4033
  %v4035 = vpop.f32.mrb[0].mxu0
  %4036 = vdwg.mxu0
  %s4037 = scalar_lea.vmem %s4, 36
  %v4038 = vld [vmem:[%s4037] sm:$0xf]
  %v4039 = vld [vmem:[%s4037 + $0x4] sm:$0xf]
  %v4040 = vld [vmem:[%s4037 + $0x8] sm:$0x3]
  %v4041 = vld [vmem:[%s6 + $0x5] sm:$0x1]
  %v4042 = vlaneseq
  %v4043 = vshrl.u32 %v4042, 7
  %v4044 = vsub.s32 0, %v4043
  %v4045 = vrot.slane %v4041, %v4044
  %v4049 = vunpack.c.l.b16 %v4038
  %v4050 = vunpack.c.l.b16 %v4039
  %v4051 = vunpack.c.l.b16 %v4040
  %v4052 = vpack.c.b16 %v4050, %v4049
  %v4053 = vpack.c.b16 %v4051, %v4051
  %v4056 = vsel %vm3259, %v4053, 0
  %4058 = vmatprep.subr.bf16.mxu0 0
  %4059 = vmatpush1.bf16.msra.mxu0 %v4052
  %4060 = vmatprep.subr.bf16.mxu0 0
  %4061 = vmatpush1.bf16.msra.mxu0 %v4056
  %4062 = vmatprep.subr.bf16.mxu0 0
  %4063 = vmatpush1.bf16.msra.mxu0 0
  %4064 = vmatprep.subr.bf16.mxu0 0
  %4065 = vmatpush1.bf16.msra.mxu0 0
  %4066 = vmatprep.subr.bf16.mxu0 0
  %4067 = vmatpush1.bf16.msra.mxu0 0
  %4068 = vmatprep.subr.bf16.mxu0 0
  %4069 = vmatpush1.bf16.msra.mxu0 0
  %4070 = vmatprep.subr.bf16.mxu0 0
  %4071 = vmatpush1.bf16.msra.mxu0 0
  %4072 = vmatprep.subr.bf16.mxu0 0
  %4073 = vmatpush1.bf16.msra.mxu0 0
  %4074 = vmatprep.subr.bf16.mxu0 0
  %4075 = vmatpush1.bf16.msra.mxu0 0
  %4076 = vmatprep.subr.bf16.mxu0 0
  %4077 = vmatpush1.bf16.msra.mxu0 0
  %4078 = vmatprep.subr.bf16.mxu0 0
  %4079 = vmatpush1.bf16.msra.mxu0 0
  %4080 = vmatprep.subr.bf16.mxu0 0
  %4081 = vmatpush1.bf16.msra.mxu0 0
  %4082 = vmatprep.subr.bf16.mxu0 0
  %4083 = vmatpush1.bf16.msra.mxu0 0
  %4084 = vmatprep.subr.bf16.mxu0 0
  %4085 = vmatpush1.bf16.msra.mxu0 0
  %4086 = vmatprep.subr.bf16.mxu0 0
  %4087 = vmatpush1.bf16.msra.mxu0 0
  %4088 = vmatprep.subr.bf16.mxu0 0
  %4089 = vmatpush1.bf16.msra.mxu0 0
  %4090 = vmatprep.mubr.bf16.mxu0 0
  %4091 = vmatmul.mubr.bf16.gmra.mrb[0].mxu0 %v3991
  %v4092 = vpop.f32.mrb[0].mxu0
  %v4093 = vadd.f32 %v4045, %v4092
  %v4094 = vpop.f32.mrb[0].mxu0
  %v4095 = vpop.f32.mrb[0].mxu0
  %v4096 = vadd.f32 %v4045, %v4095
  %v4097 = vpop.f32.mrb[0].mxu0
  %4098 = vdwg.mxu0
  %4101 = vrot.lane.b32.xlu0 %v4031, 108
  %v4102 = vpop.permute.xlu0 %4101
  %4103 = vrot.lane.b32.xlu0 %v4034, 108
  %v4104 = vpop.permute.xlu0 %4103
  %v4105 = vsel %vm2803, %v4031, 0
  %v4107 = vsel %vm2803, %v4034, 0
  %v4109 = vsel %vm2803, %v4102, 0
  %v4111 = vsel %vm2803, %v4104, 0
  %4113 = vmatprep.subr.mxu0 0.0
  %4114 = vmatpush1.xpose.msra.mxu0 %v4109
  %4115 = vmatprep.subr.mxu0 0.0
  %4116 = vmatpush1.xpose.msra.mxu0 %v4111
  %4117 = vmatprep.subr.mxu0 0.0
  %4118 = vmatpush1.xpose.msra.mxu0 0.0
  %4119 = vmatprep.subr.mxu0 0.0
  %4120 = vmatpush1.xpose.msra.mxu0 0.0
  %4121 = vmatprep.subr.mxu0 0.0
  %4122 = vmatpush1.xpose.msra.mxu0 0.0
  %4123 = vmatprep.subr.mxu0 0.0
  %4124 = vmatpush1.xpose.msra.mxu0 0.0
  %4125 = vmatprep.subr.mxu0 0.0
  %4126 = vmatpush1.xpose.msra.mxu0 0.0
  %4127 = vmatprep.subr.mxu0 0.0
  %4128 = vmatpush1.xpose.msra.mxu0 0.0
  %4129 = vmatprep.subr.mxu0 0.0
  %4130 = vmatpush1.xpose.msra.mxu0 0.0
  %4131 = vmatprep.subr.mxu0 0.0
  %4132 = vmatpush1.xpose.msra.mxu0 0.0
  %4133 = vmatprep.subr.mxu0 0.0
  %4134 = vmatpush1.xpose.msra.mxu0 0.0
  %4135 = vmatprep.subr.mxu0 0.0
  %4136 = vmatpush1.xpose.msra.mxu0 0.0
  %4137 = vmatprep.subr.mxu0 0.0
  %4138 = vmatpush1.xpose.msra.mxu0 0.0
  %4139 = vmatprep.subr.mxu0 0.0
  %4140 = vmatpush1.xpose.msra.mxu0 0.0
  %4141 = vmatprep.subr.mxu0 0.0
  %4142 = vmatpush1.xpose.msra.mxu0 0.0
  %4143 = vmatprep.subr.mxu0 0.0
  %4144 = vmatpush1.xpose.msra.mxu0 0.0
  %4145 = vmatprep.subr.mxu0 0.0
  %4146 = vmatpush1.xpose.msra.mxu0 0.0
  %4147 = vmatprep.subr.mxu0 0.0
  %4148 = vmatpush1.xpose.msra.mxu0 0.0
  %4149 = vmatprep.subr.mxu0 0.0
  %4150 = vmatpush1.xpose.msra.mxu0 0.0
  %4151 = vmatprep.subr.mxu0 0.0
  %4152 = vmatpush1.xpose.msra.mxu0 0.0
  %4153 = vmatprep.subr.mxu0 0.0
  %4154 = vmatpush1.xpose.msra.mxu0 0.0
  %4155 = vmatprep.subr.mxu0 0.0
  %4156 = vmatpush1.xpose.msra.mxu0 0.0
  %4157 = vmatprep.subr.mxu0 0.0
  %4158 = vmatpush1.xpose.msra.mxu0 0.0
  %4159 = vmatprep.subr.mxu0 0.0
  %4160 = vmatpush1.xpose.msra.mxu0 0.0
  %4161 = vmatprep.subr.mxu0 0.0
  %4162 = vmatpush1.xpose.msra.mxu0 0.0
  %4163 = vmatprep.subr.mxu0 0.0
  %4164 = vmatpush1.xpose.msra.mxu0 0.0
  %4165 = vmatprep.subr.mxu0 0.0
  %4166 = vmatpush1.xpose.msra.mxu0 0.0
  %4167 = vmatprep.subr.mxu0 0.0
  %4168 = vmatpush1.xpose.msra.mxu0 0.0
  %4169 = vmatprep.subr.mxu0 0.0
  %4170 = vmatpush1.xpose.msra.mxu0 0.0
  %4171 = vmatprep.subr.mxu0 0.0
  %4172 = vmatpush1.xpose.msra.mxu0 0.0
  %4173 = vmatprep.subr.mxu0 0.0
  %4174 = vmatpush1.xpose.msra.mxu0 0.0
  %4175 = vmatprep.subr.mxu0 0.0
  %4176 = vmatpush1.xpose.msra.mxu0 0.0
  %4177 = vmatprep.mubr.f32.mxu0 0.0
  %4178 = vmatmul.mubr.f32.gmra.mrb[0].mxu0 %v4105
  %v4179 = vpop.f32.mrb[0].mxu0
  %v4180 = vadd.f32 0.0, %v4179
  %v4181 = vpop.f32.mrb[0].mxu0
  %4182 = vmatprep.mubr.f32.mxu0 0.0
  %4183 = vmatmul.mubr.f32.gmra.mrb[0].mxu0 %v4107
  %v4184 = vpop.f32.mrb[0].mxu0
  %v4185 = vadd.f32 0.0, %v4184
  %v4186 = vpop.f32.mrb[0].mxu0
  %4187 = vdwg.mxu0
  %v4188 = vsel %vm2887, %v4180, -1e+30
  %v4189 = vsel %vm2888, %v4185, -1e+30
  %v4190 = vsel %vm2891, %v4188, -inf
  %4191 = vmax.xlane.f32.xlu0 %v4190
  %v4192 = vpop.xlane.xlu0 %4191
  %v4193 = vsel %vm2891, %v4189, -inf
  %4194 = vmax.xlane.f32.xlu0 %v4193
  %v4195 = vpop.xlane.xlu0 %4194
  %v4196 = vsub.f32 %v4188, %v4192
  %v4197 = vsub.f32 %v4189, %v4195
  %v4198 = vmul.f32 %v4196, 1.442695
  %v4199 = vpow.pop %v4198
  %v4200 = vmul.f32 %v4197, 1.442695
  %v4201 = vpow.pop %v4200
  %v4202 = vmul.f32 %v4199, %v27
  %v4203 = vmul.f32 %v4201, %v28
  %v4204 = vsel %vm2891, %v4202, 0.0
  %4205 = vadd.xlane.f32.xlu0 %v4204
  %v4206 = vpop.xlane.xlu0 %4205
  %v4207 = vsel %vm2891, %v4203, 0.0
  %4208 = vadd.xlane.f32.xlu0 %v4207
  %v4209 = vpop.xlane.xlu0 %4208
  %vm4210 = vcmp.gt.f32.partialorder %v4206, 0.0
  %vm4211 = vcmp.gt.f32.partialorder %v4209, 0.0
  %v4212 = vsel %vm4210, %v4206, 1.0
  %v4213 = vsel %vm4211, %v4209, 1.0
  %v4214 = vrcp.pop %v4212
  %v4215 = vmul.f32 %v4202, %v4214
  %v4216 = vrcp.pop %v4213
  %v4217 = vmul.f32 %v4203, %v4216
  %4218 = vrot.lane.b32.xlu0 %v4031, 88
  %v4219 = vpop.permute.xlu0 %4218
  %4220 = vrot.lane.b32.xlu0 %v4034, 88
  %v4221 = vpop.permute.xlu0 %4220
  %4224 = vrot.lane.b32.xlu0 %v4031, 68
  %v4225 = vpop.permute.xlu0 %4224
  %4226 = vrot.lane.b32.xlu0 %v4034, 68
  %v4227 = vpop.permute.xlu0 %4226
  %v4231 = vsel %vm2891, %v4215, 0
  %v4234 = vsel %vm2891, %v4217, 0
  %4236 = vmatprep.subr.mxu0 0.0
  %4237 = vmatpush1.msra.mxu0 %v4219
  %4238 = vmatprep.subr.mxu0 0.0
  %4239 = vmatpush1.msra.mxu0 %v4221
  %4240 = vmatprep.subr.mxu0 0.0
  %4241 = vmatpush1.msra.mxu0 0.0
  %4242 = vmatprep.subr.mxu0 0.0
  %4243 = vmatpush1.msra.mxu0 0.0
  %4244 = vmatprep.subr.mxu0 0.0
  %4245 = vmatpush1.msra.mxu0 0.0
  %4246 = vmatprep.subr.mxu0 0.0
  %4247 = vmatpush1.msra.mxu0 0.0
  %4248 = vmatprep.subr.mxu0 0.0
  %4249 = vmatpush1.msra.mxu0 0.0
  %4250 = vmatprep.subr.mxu0 0.0
  %4251 = vmatpush1.msra.mxu0 0.0
  %4252 = vmatprep.subr.mxu0 0.0
  %4253 = vmatpush1.msra.mxu0 0.0
  %4254 = vmatprep.subr.mxu0 0.0
  %4255 = vmatpush1.msra.mxu0 0.0
  %4256 = vmatprep.subr.mxu0 0.0
  %4257 = vmatpush1.msra.mxu0 0.0
  %4258 = vmatprep.subr.mxu0 0.0
  %4259 = vmatpush1.msra.mxu0 0.0
  %4260 = vmatprep.subr.mxu0 0.0
  %4261 = vmatpush1.msra.mxu0 0.0
  %4262 = vmatprep.subr.mxu0 0.0
  %4263 = vmatpush1.msra.mxu0 0.0
  %4264 = vmatprep.subr.mxu0 0.0
  %4265 = vmatpush1.msra.mxu0 0.0
  %4266 = vmatprep.subr.mxu0 0.0
  %4267 = vmatpush1.msra.mxu0 0.0
  %4268 = vmatprep.subr.mxu0 0.0
  %4269 = vmatpush1.msra.mxu0 0.0
  %4270 = vmatprep.subr.mxu0 0.0
  %4271 = vmatpush1.msra.mxu0 0.0
  %4272 = vmatprep.subr.mxu0 0.0
  %4273 = vmatpush1.msra.mxu0 0.0
  %4274 = vmatprep.subr.mxu0 0.0
  %4275 = vmatpush1.msra.mxu0 0.0
  %4276 = vmatprep.subr.mxu0 0.0
  %4277 = vmatpush1.msra.mxu0 0.0
  %4278 = vmatprep.subr.mxu0 0.0
  %4279 = vmatpush1.msra.mxu0 0.0
  %4280 = vmatprep.subr.mxu0 0.0
  %4281 = vmatpush1.msra.mxu0 0.0
  %4282 = vmatprep.subr.mxu0 0.0
  %4283 = vmatpush1.msra.mxu0 0.0
  %4284 = vmatprep.subr.mxu0 0.0
  %4285 = vmatpush1.msra.mxu0 0.0
  %4286 = vmatprep.subr.mxu0 0.0
  %4287 = vmatpush1.msra.mxu0 0.0
  %4288 = vmatprep.subr.mxu0 0.0
  %4289 = vmatpush1.msra.mxu0 0.0
  %4290 = vmatprep.subr.mxu0 0.0
  %4291 = vmatpush1.msra.mxu0 0.0
  %4292 = vmatprep.subr.mxu0 0.0
  %4293 = vmatpush1.msra.mxu0 0.0
  %4294 = vmatprep.subr.mxu0 0.0
  %4295 = vmatpush1.msra.mxu0 0.0
  %4296 = vmatprep.subr.mxu0 0.0
  %4297 = vmatpush1.msra.mxu0 0.0
  %4298 = vmatprep.subr.mxu0 0.0
  %4299 = vmatpush1.msra.mxu0 0.0
  %4300 = vmatprep.mubr.f32.mxu0 0.0
  %4301 = vmatmul.mubr.f32.gmra.mrb[0].mxu0 %v4231
  %v4302 = vpop.f32.mrb[0].mxu0
  %v4303 = vadd.f32 %v4225, %v4302
  %v4304 = vpop.f32.mrb[0].mxu0
  %4305 = vmatprep.mubr.f32.mxu0 0.0
  %4306 = vmatmul.mubr.f32.gmra.mrb[0].mxu0 %v4234
  %v4307 = vpop.f32.mrb[0].mxu0
  %v4308 = vadd.f32 %v4227, %v4307
  %v4309 = vpop.f32.mrb[0].mxu0
  %4310 = vdwg.mxu0
  %4313 = vrot.lane.b32.xlu0 %v4093, 108
  %v4314 = vpop.permute.xlu0 %4313
  %4315 = vrot.lane.b32.xlu0 %v4096, 108
  %v4316 = vpop.permute.xlu0 %4315
  %v4317 = vsel %vm2803, %v4093, 0
  %v4319 = vsel %vm2803, %v4096, 0
  %v4321 = vsel %vm2803, %v4314, 0
  %v4323 = vsel %vm2803, %v4316, 0
  %4325 = vmatprep.subr.mxu0 0.0
  %4326 = vmatpush1.xpose.msra.mxu0 %v4321
  %4327 = vmatprep.subr.mxu0 0.0
  %4328 = vmatpush1.xpose.msra.mxu0 %v4323
  %4329 = vmatprep.subr.mxu0 0.0
  %4330 = vmatpush1.xpose.msra.mxu0 0.0
  %4331 = vmatprep.subr.mxu0 0.0
  %4332 = vmatpush1.xpose.msra.mxu0 0.0
  %4333 = vmatprep.subr.mxu0 0.0
  %4334 = vmatpush1.xpose.msra.mxu0 0.0
  %4335 = vmatprep.subr.mxu0 0.0
  %4336 = vmatpush1.xpose.msra.mxu0 0.0
  %4337 = vmatprep.subr.mxu0 0.0
  %4338 = vmatpush1.xpose.msra.mxu0 0.0
  %4339 = vmatprep.subr.mxu0 0.0
  %4340 = vmatpush1.xpose.msra.mxu0 0.0
  %4341 = vmatprep.subr.mxu0 0.0
  %4342 = vmatpush1.xpose.msra.mxu0 0.0
  %4343 = vmatprep.subr.mxu0 0.0
  %4344 = vmatpush1.xpose.msra.mxu0 0.0
  %4345 = vmatprep.subr.mxu0 0.0
  %4346 = vmatpush1.xpose.msra.mxu0 0.0
  %4347 = vmatprep.subr.mxu0 0.0
  %4348 = vmatpush1.xpose.msra.mxu0 0.0
  %4349 = vmatprep.subr.mxu0 0.0
  %4350 = vmatpush1.xpose.msra.mxu0 0.0
  %4351 = vmatprep.subr.mxu0 0.0
  %4352 = vmatpush1.xpose.msra.mxu0 0.0
  %4353 = vmatprep.subr.mxu0 0.0
  %4354 = vmatpush1.xpose.msra.mxu0 0.0
  %4355 = vmatprep.subr.mxu0 0.0
  %4356 = vmatpush1.xpose.msra.mxu0 0.0
  %4357 = vmatprep.subr.mxu0 0.0
  %4358 = vmatpush1.xpose.msra.mxu0 0.0
  %4359 = vmatprep.subr.mxu0 0.0
  %4360 = vmatpush1.xpose.msra.mxu0 0.0
  %4361 = vmatprep.subr.mxu0 0.0
  %4362 = vmatpush1.xpose.msra.mxu0 0.0
  %4363 = vmatprep.subr.mxu0 0.0
  %4364 = vmatpush1.xpose.msra.mxu0 0.0
  %4365 = vmatprep.subr.mxu0 0.0
  %4366 = vmatpush1.xpose.msra.mxu0 0.0
  %4367 = vmatprep.subr.mxu0 0.0
  %4368 = vmatpush1.xpose.msra.mxu0 0.0
  %4369 = vmatprep.subr.mxu0 0.0
  %4370 = vmatpush1.xpose.msra.mxu0 0.0
  %4371 = vmatprep.subr.mxu0 0.0
  %4372 = vmatpush1.xpose.msra.mxu0 0.0
  %4373 = vmatprep.subr.mxu0 0.0
  %4374 = vmatpush1.xpose.msra.mxu0 0.0
  %4375 = vmatprep.subr.mxu0 0.0
  %4376 = vmatpush1.xpose.msra.mxu0 0.0
  %4377 = vmatprep.subr.mxu0 0.0
  %4378 = vmatpush1.xpose.msra.mxu0 0.0
  %4379 = vmatprep.subr.mxu0 0.0
  %4380 = vmatpush1.xpose.msra.mxu0 0.0
  %4381 = vmatprep.subr.mxu0 0.0
  %4382 = vmatpush1.xpose.msra.mxu0 0.0
  %4383 = vmatprep.subr.mxu0 0.0
  %4384 = vmatpush1.xpose.msra.mxu0 0.0
  %4385 = vmatprep.subr.mxu0 0.0
  %4386 = vmatpush1.xpose.msra.mxu0 0.0
  %4387 = vmatprep.subr.mxu0 0.0
  %4388 = vmatpush1.xpose.msra.mxu0 0.0
  %4389 = vmatprep.mubr.f32.mxu0 0.0
  %4390 = vmatmul.mubr.f32.gmra.mrb[0].mxu0 %v4317
  %v4391 = vpop.f32.mrb[0].mxu0
  %v4392 = vadd.f32 0.0, %v4391
  %v4393 = vpop.f32.mrb[0].mxu0
  %4394 = vmatprep.mubr.f32.mxu0 0.0
  %4395 = vmatmul.mubr.f32.gmra.mrb[0].mxu0 %v4319
  %v4396 = vpop.f32.mrb[0].mxu0
  %v4397 = vadd.f32 0.0, %v4396
  %v4398 = vpop.f32.mrb[0].mxu0
  %4399 = vdwg.mxu0
  %v4400 = vsel %vm3102, %v4392, -1e+30
  %v4401 = vsel %vm3103, %v4397, -1e+30
  %v4402 = vsel %vm2891, %v4400, -inf
  %4403 = vmax.xlane.f32.xlu0 %v4402
  %v4404 = vpop.xlane.xlu0 %4403
  %v4405 = vsel %vm2891, %v4401, -inf
  %4406 = vmax.xlane.f32.xlu0 %v4405
  %v4407 = vpop.xlane.xlu0 %4406
  %v4408 = vsub.f32 %v4400, %v4404
  %v4409 = vsub.f32 %v4401, %v4407
  %v4410 = vmul.f32 %v4408, 1.442695
  %v4411 = vpow.pop %v4410
  %v4412 = vmul.f32 %v4409, 1.442695
  %v4413 = vpow.pop %v4412
  %v4414 = vmul.f32 %v4411, %v29
  %v4415 = vmul.f32 %v4413, %v30
  %v4416 = vsel %vm2891, %v4414, 0.0
  %4417 = vadd.xlane.f32.xlu0 %v4416
  %v4418 = vpop.xlane.xlu0 %4417
  %v4419 = vsel %vm2891, %v4415, 0.0
  %4420 = vadd.xlane.f32.xlu0 %v4419
  %v4421 = vpop.xlane.xlu0 %4420
  %vm4422 = vcmp.gt.f32.partialorder %v4418, 0.0
  %vm4423 = vcmp.gt.f32.partialorder %v4421, 0.0
  %v4424 = vsel %vm4422, %v4418, 1.0
  %v4425 = vsel %vm4423, %v4421, 1.0
  %v4426 = vrcp.pop %v4424
  %v4427 = vmul.f32 %v4414, %v4426
  %v4428 = vrcp.pop %v4425
  %v4429 = vmul.f32 %v4415, %v4428
  %4430 = vrot.lane.b32.xlu0 %v4093, 88
  %v4431 = vpop.permute.xlu0 %4430
  %4432 = vrot.lane.b32.xlu0 %v4096, 88
  %v4433 = vpop.permute.xlu0 %4432
  %4436 = vrot.lane.b32.xlu0 %v4093, 68
  %v4437 = vpop.permute.xlu0 %4436
  %4438 = vrot.lane.b32.xlu0 %v4096, 68
  %v4439 = vpop.permute.xlu0 %4438
  %v4443 = vsel %vm2891, %v4427, 0
  %v4446 = vsel %vm2891, %v4429, 0
  %4448 = vmatprep.subr.mxu0 0.0
  %4449 = vmatpush1.msra.mxu0 %v4431
  %4450 = vmatprep.subr.mxu0 0.0
  %4451 = vmatpush1.msra.mxu0 %v4433
  %4452 = vmatprep.subr.mxu0 0.0
  %4453 = vmatpush1.msra.mxu0 0.0
  %4454 = vmatprep.subr.mxu0 0.0
  %4455 = vmatpush1.msra.mxu0 0.0
  %4456 = vmatprep.subr.mxu0 0.0
  %4457 = vmatpush1.msra.mxu0 0.0
  %4458 = vmatprep.subr.mxu0 0.0
  %4459 = vmatpush1.msra.mxu0 0.0
  %4460 = vmatprep.subr.mxu0 0.0
  %4461 = vmatpush1.msra.mxu0 0.0
  %4462 = vmatprep.subr.mxu0 0.0
  %4463 = vmatpush1.msra.mxu0 0.0
  %4464 = vmatprep.subr.mxu0 0.0
  %4465 = vmatpush1.msra.mxu0 0.0
  %4466 = vmatprep.subr.mxu0 0.0
  %4467 = vmatpush1.msra.mxu0 0.0
  %4468 = vmatprep.subr.mxu0 0.0
  %4469 = vmatpush1.msra.mxu0 0.0
  %4470 = vmatprep.subr.mxu0 0.0
  %4471 = vmatpush1.msra.mxu0 0.0
  %4472 = vmatprep.subr.mxu0 0.0
  %4473 = vmatpush1.msra.mxu0 0.0
  %4474 = vmatprep.subr.mxu0 0.0
  %4475 = vmatpush1.msra.mxu0 0.0
  %4476 = vmatprep.subr.mxu0 0.0
  %4477 = vmatpush1.msra.mxu0 0.0
  %4478 = vmatprep.subr.mxu0 0.0
  %4479 = vmatpush1.msra.mxu0 0.0
  %4480 = vmatprep.subr.mxu0 0.0
  %4481 = vmatpush1.msra.mxu0 0.0
  %4482 = vmatprep.subr.mxu0 0.0
  %4483 = vmatpush1.msra.mxu0 0.0
  %4484 = vmatprep.subr.mxu0 0.0
  %4485 = vmatpush1.msra.mxu0 0.0
  %4486 = vmatprep.subr.mxu0 0.0
  %4487 = vmatpush1.msra.mxu0 0.0
  %4488 = vmatprep.subr.mxu0 0.0
  %4489 = vmatpush1.msra.mxu0 0.0
  %4490 = vmatprep.subr.mxu0 0.0
  %4491 = vmatpush1.msra.mxu0 0.0
  %4492 = vmatprep.subr.mxu0 0.0
  %4493 = vmatpush1.msra.mxu0 0.0
  %4494 = vmatprep.subr.mxu0 0.0
  %4495 = vmatpush1.msra.mxu0 0.0
  %4496 = vmatprep.subr.mxu0 0.0
  %4497 = vmatpush1.msra.mxu0 0.0
  %4498 = vmatprep.subr.mxu0 0.0
  %4499 = vmatpush1.msra.mxu0 0.0
  %4500 = vmatprep.subr.mxu0 0.0
  %4501 = vmatpush1.msra.mxu0 0.0
  %4502 = vmatprep.subr.mxu0 0.0
  %4503 = vmatpush1.msra.mxu0 0.0
  %4504 = vmatprep.subr.mxu0 0.0
  %4505 = vmatpush1.msra.mxu0 0.0
  %4506 = vmatprep.subr.mxu0 0.0
  %4507 = vmatpush1.msra.mxu0 0.0
  %4508 = vmatprep.subr.mxu0 0.0
  %4509 = vmatpush1.msra.mxu0 0.0
  %4510 = vmatprep.subr.mxu0 0.0
  %4511 = vmatpush1.msra.mxu0 0.0
  %4512 = vmatprep.mubr.f32.mxu0 0.0
  %4513 = vmatmul.mubr.f32.gmra.mrb[0].mxu0 %v4443
  %v4514 = vpop.f32.mrb[0].mxu0
  %v4515 = vadd.f32 %v4437, %v4514
  %v4516 = vpop.f32.mrb[0].mxu0
  %4517 = vmatprep.mubr.f32.mxu0 0.0
  %4518 = vmatmul.mubr.f32.gmra.mrb[0].mxu0 %v4446
  %v4519 = vpop.f32.mrb[0].mxu0
  %v4520 = vadd.f32 %v4439, %v4519
  %v4521 = vpop.f32.mrb[0].mxu0
  %4522 = vdwg.mxu0
  %v4523 = vadd.f32 %v4303, %v4515
  %v4524 = vadd.f32 %v4308, %v4520
  %vm4525 = vcmp.gt.f32.partialorder %v4523, 0.0
  %vm4526 = vcmp.gt.f32.partialorder %v4524, 0.0
  %v4527 = vmul.f32 %v4523, 0.01
  %v4528 = vmul.f32 %v4524, 0.01
  %v4529 = vsel %vm4525, %v4523, %v4527
  %v4530 = vsel %vm4526, %v4524, %v4528
  %s4531 = scalar_lea.vmem %s5, 48
  %v4532 = vld [vmem:[%s4531] sm:$0xff]
  %v4533 = vld [vmem:[%s4531 + $0x8] sm:$0xff]
  %v4534 = vld [vmem:[%s4531 + $0x10] sm:$0xf]
  %v4536 = vsel %vm2803, %v4529, 0
  %v4539 = vsel %vm2803, %v4530, 0
  %v4542 = vsel %vm3808, %v4534, 0
  %4544 = vmatprep.subr.mxu0 0.0
  %4545 = vmatpush1.msra.mxu0 %v4532
  %4546 = vmatprep.subr.mxu0 0.0
  %4547 = vmatpush1.msra.mxu0 %v4533
  %4548 = vmatprep.subr.mxu0 0.0
  %4549 = vmatpush1.msra.mxu0 %v4542
  %4550 = vmatprep.subr.mxu0 0.0
  %4551 = vmatpush1.msra.mxu0 0.0
  %4552 = vmatprep.subr.mxu0 0.0
  %4553 = vmatpush1.msra.mxu0 0.0
  %4554 = vmatprep.subr.mxu0 0.0
  %4555 = vmatpush1.msra.mxu0 0.0
  %4556 = vmatprep.subr.mxu0 0.0
  %4557 = vmatpush1.msra.mxu0 0.0
  %4558 = vmatprep.subr.mxu0 0.0
  %4559 = vmatpush1.msra.mxu0 0.0
  %4560 = vmatprep.subr.mxu0 0.0
  %4561 = vmatpush1.msra.mxu0 0.0
  %4562 = vmatprep.subr.mxu0 0.0
  %4563 = vmatpush1.msra.mxu0 0.0
  %4564 = vmatprep.subr.mxu0 0.0
  %4565 = vmatpush1.msra.mxu0 0.0
  %4566 = vmatprep.subr.mxu0 0.0
  %4567 = vmatpush1.msra.mxu0 0.0
  %4568 = vmatprep.subr.mxu0 0.0
  %4569 = vmatpush1.msra.mxu0 0.0
  %4570 = vmatprep.subr.mxu0 0.0
  %4571 = vmatpush1.msra.mxu0 0.0
  %4572 = vmatprep.subr.mxu0 0.0
  %4573 = vmatpush1.msra.mxu0 0.0
  %4574 = vmatprep.subr.mxu0 0.0
  %4575 = vmatpush1.msra.mxu0 0.0
  %4576 = vmatprep.subr.mxu0 0.0
  %4577 = vmatpush1.msra.mxu0 0.0
  %4578 = vmatprep.subr.mxu0 0.0
  %4579 = vmatpush1.msra.mxu0 0.0
  %4580 = vmatprep.subr.mxu0 0.0
  %4581 = vmatpush1.msra.mxu0 0.0
  %4582 = vmatprep.subr.mxu0 0.0
  %4583 = vmatpush1.msra.mxu0 0.0
  %4584 = vmatprep.subr.mxu0 0.0
  %4585 = vmatpush1.msra.mxu0 0.0
  %4586 = vmatprep.subr.mxu0 0.0
  %4587 = vmatpush1.msra.mxu0 0.0
  %4588 = vmatprep.subr.mxu0 0.0
  %4589 = vmatpush1.msra.mxu0 0.0
  %4590 = vmatprep.subr.mxu0 0.0
  %4591 = vmatpush1.msra.mxu0 0.0
  %4592 = vmatprep.subr.mxu0 0.0
  %4593 = vmatpush1.msra.mxu0 0.0
  %4594 = vmatprep.subr.mxu0 0.0
  %4595 = vmatpush1.msra.mxu0 0.0
  %4596 = vmatprep.subr.mxu0 0.0
  %4597 = vmatpush1.msra.mxu0 0.0
  %4598 = vmatprep.subr.mxu0 0.0
  %4599 = vmatpush1.msra.mxu0 0.0
  %4600 = vmatprep.subr.mxu0 0.0
  %4601 = vmatpush1.msra.mxu0 0.0
  %4602 = vmatprep.subr.mxu0 0.0
  %4603 = vmatpush1.msra.mxu0 0.0
  %4604 = vmatprep.subr.mxu0 0.0
  %4605 = vmatpush1.msra.mxu0 0.0
  %4606 = vmatprep.subr.mxu0 0.0
  %4607 = vmatpush1.msra.mxu0 0.0
  %4608 = vmatprep.mubr.f32.mxu0 0.0
  %4609 = vmatmul.mubr.f32.gmra.mrb[0].mxu0 %v4536
  %v4610 = vpop.f32.mrb[0].mxu0
  %v4611 = vadd.f32 0.0, %v4610
  %v4612 = vpop.f32.mrb[0].mxu0
  %4613 = vmatprep.mubr.f32.mxu0 0.0
  %4614 = vmatmul.mubr.f32.gmra.mrb[0].mxu0 %v4539
  %v4615 = vpop.f32.mrb[0].mxu0
  %v4616 = vadd.f32 0.0, %v4615
  %v4617 = vpop.f32.mrb[0].mxu0
  %4618 = vdwg.mxu0
  %v4619 = vadd.f32 %v3963, %v4611
  %v4620 = vadd.f32 %v3968, %v4616
  %v4621 = vpack.c.bf16 %v4530, %v4529
  %s4622 = scalar_lea.vmem %s4, 48
  %v4623 = vld [vmem:[%s4622] sm:$0xf]
  %v4624 = vld [vmem:[%s4622 + $0x4] sm:$0xf]
  %v4625 = vld [vmem:[%s4622 + $0x8] sm:$0x3]
  %v4626 = vld [vmem:[%s6 + $0x6] sm:$0x1]
  %v4627 = vlaneseq
  %v4628 = vshrl.u32 %v4627, 7
  %v4629 = vsub.s32 0, %v4628
  %v4630 = vrot.slane %v4626, %v4629
  %v4634 = vunpack.c.l.b16 %v4623
  %v4635 = vunpack.c.l.b16 %v4624
  %v4636 = vunpack.c.l.b16 %v4625
  %v4637 = vpack.c.b16 %v4635, %v4634
  %v4638 = vpack.c.b16 %v4636, %v4636
  %v4641 = vsel %vm2803, %v4621, 0
  %v4644 = vsel %vm3259, %v4638, 0
  %4646 = vmatprep.subr.bf16.mxu0 0
  %4647 = vmatpush1.bf16.msra.mxu0 %v4637
  %4648 = vmatprep.subr.bf16.mxu0 0
  %4649 = vmatpush1.bf16.msra.mxu0 %v4644
  %4650 = vmatprep.subr.bf16.mxu0 0
  %4651 = vmatpush1.bf16.msra.mxu0 0
  %4652 = vmatprep.subr.bf16.mxu0 0
  %4653 = vmatpush1.bf16.msra.mxu0 0
  %4654 = vmatprep.subr.bf16.mxu0 0
  %4655 = vmatpush1.bf16.msra.mxu0 0
  %4656 = vmatprep.subr.bf16.mxu0 0
  %4657 = vmatpush1.bf16.msra.mxu0 0
  %4658 = vmatprep.subr.bf16.mxu0 0
  %4659 = vmatpush1.bf16.msra.mxu0 0
  %4660 = vmatprep.subr.bf16.mxu0 0
  %4661 = vmatpush1.bf16.msra.mxu0 0
  %4662 = vmatprep.subr.bf16.mxu0 0
  %4663 = vmatpush1.bf16.msra.mxu0 0
  %4664 = vmatprep.subr.bf16.mxu0 0
  %4665 = vmatpush1.bf16.msra.mxu0 0
  %4666 = vmatprep.subr.bf16.mxu0 0
  %4667 = vmatpush1.bf16.msra.mxu0 0
  %4668 = vmatprep.subr.bf16.mxu0 0
  %4669 = vmatpush1.bf16.msra.mxu0 0
  %4670 = vmatprep.subr.bf16.mxu0 0
  %4671 = vmatpush1.bf16.msra.mxu0 0
  %4672 = vmatprep.subr.bf16.mxu0 0
  %4673 = vmatpush1.bf16.msra.mxu0 0
  %4674 = vmatprep.subr.bf16.mxu0 0
  %4675 = vmatpush1.bf16.msra.mxu0 0
  %4676 = vmatprep.subr.bf16.mxu0 0
  %4677 = vmatpush1.bf16.msra.mxu0 0
  %4678 = vmatprep.mubr.bf16.mxu0 0
  %4679 = vmatmul.mubr.bf16.gmra.mrb[0].mxu0 %v4641
  %v4680 = vpop.f32.mrb[0].mxu0
  %v4681 = vadd.f32 %v4630, %v4680
  %v4682 = vpop.f32.mrb[0].mxu0
  %v4683 = vpop.f32.mrb[0].mxu0
  %v4684 = vadd.f32 %v4630, %v4683
  %v4685 = vpop.f32.mrb[0].mxu0
  %4686 = vdwg.mxu0
  %s4687 = scalar_lea.vmem %s4, 60
  %v4688 = vld [vmem:[%s4687] sm:$0xf]
  %v4689 = vld [vmem:[%s4687 + $0x4] sm:$0xf]
  %v4690 = vld [vmem:[%s4687 + $0x8] sm:$0x3]
  %v4691 = vld [vmem:[%s6 + $0x7] sm:$0x1]
  %v4692 = vlaneseq
  %v4693 = vshrl.u32 %v4692, 7
  %v4694 = vsub.s32 0, %v4693
  %v4695 = vrot.slane %v4691, %v4694
  %v4699 = vunpack.c.l.b16 %v4688
  %v4700 = vunpack.c.l.b16 %v4689
  %v4701 = vunpack.c.l.b16 %v4690
  %v4702 = vpack.c.b16 %v4700, %v4699
  %v4703 = vpack.c.b16 %v4701, %v4701
  %v4706 = vsel %vm3259, %v4703, 0
  %4708 = vmatprep.subr.bf16.mxu0 0
  %4709 = vmatpush1.bf16.msra.mxu0 %v4702
  %4710 = vmatprep.subr.bf16.mxu0 0
  %4711 = vmatpush1.bf16.msra.mxu0 %v4706
  %4712 = vmatprep.subr.bf16.mxu0 0
  %4713 = vmatpush1.bf16.msra.mxu0 0
  %4714 = vmatprep.subr.bf16.mxu0 0
  %4715 = vmatpush1.bf16.msra.mxu0 0
  %4716 = vmatprep.subr.bf16.mxu0 0
  %4717 = vmatpush1.bf16.msra.mxu0 0
  %4718 = vmatprep.subr.bf16.mxu0 0
  %4719 = vmatpush1.bf16.msra.mxu0 0
  %4720 = vmatprep.subr.bf16.mxu0 0
  %4721 = vmatpush1.bf16.msra.mxu0 0
  %4722 = vmatprep.subr.bf16.mxu0 0
  %4723 = vmatpush1.bf16.msra.mxu0 0
  %4724 = vmatprep.subr.bf16.mxu0 0
  %4725 = vmatpush1.bf16.msra.mxu0 0
  %4726 = vmatprep.subr.bf16.mxu0 0
  %4727 = vmatpush1.bf16.msra.mxu0 0
  %4728 = vmatprep.subr.bf16.mxu0 0
  %4729 = vmatpush1.bf16.msra.mxu0 0
  %4730 = vmatprep.subr.bf16.mxu0 0
  %4731 = vmatpush1.bf16.msra.mxu0 0
  %4732 = vmatprep.subr.bf16.mxu0 0
  %4733 = vmatpush1.bf16.msra.mxu0 0
  %4734 = vmatprep.subr.bf16.mxu0 0
  %4735 = vmatpush1.bf16.msra.mxu0 0
  %4736 = vmatprep.subr.bf16.mxu0 0
  %4737 = vmatpush1.bf16.msra.mxu0 0
  %4738 = vmatprep.subr.bf16.mxu0 0
  %4739 = vmatpush1.bf16.msra.mxu0 0
  %4740 = vmatprep.mubr.bf16.mxu0 0
  %4741 = vmatmul.mubr.bf16.gmra.mrb[0].mxu0 %v4641
  %v4742 = vpop.f32.mrb[0].mxu0
  %v4743 = vadd.f32 %v4695, %v4742
  %v4744 = vpop.f32.mrb[0].mxu0
  %v4745 = vpop.f32.mrb[0].mxu0
  %v4746 = vadd.f32 %v4695, %v4745
  %v4747 = vpop.f32.mrb[0].mxu0
  %4748 = vdwg.mxu0
  %4751 = vrot.lane.b32.xlu0 %v4681, 108
  %v4752 = vpop.permute.xlu0 %4751
  %4753 = vrot.lane.b32.xlu0 %v4684, 108
  %v4754 = vpop.permute.xlu0 %4753
  %v4755 = vsel %vm2803, %v4681, 0
  %v4757 = vsel %vm2803, %v4684, 0
  %v4759 = vsel %vm2803, %v4752, 0
  %v4761 = vsel %vm2803, %v4754, 0
  %4763 = vmatprep.subr.mxu0 0.0
  %4764 = vmatpush1.xpose.msra.mxu0 %v4759
  %4765 = vmatprep.subr.mxu0 0.0
  %4766 = vmatpush1.xpose.msra.mxu0 %v4761
  %4767 = vmatprep.subr.mxu0 0.0
  %4768 = vmatpush1.xpose.msra.mxu0 0.0
  %4769 = vmatprep.subr.mxu0 0.0
  %4770 = vmatpush1.xpose.msra.mxu0 0.0
  %4771 = vmatprep.subr.mxu0 0.0
  %4772 = vmatpush1.xpose.msra.mxu0 0.0
  %4773 = vmatprep.subr.mxu0 0.0
  %4774 = vmatpush1.xpose.msra.mxu0 0.0
  %4775 = vmatprep.subr.mxu0 0.0
  %4776 = vmatpush1.xpose.msra.mxu0 0.0
  %4777 = vmatprep.subr.mxu0 0.0
  %4778 = vmatpush1.xpose.msra.mxu0 0.0
  %4779 = vmatprep.subr.mxu0 0.0
  %4780 = vmatpush1.xpose.msra.mxu0 0.0
  %4781 = vmatprep.subr.mxu0 0.0
  %4782 = vmatpush1.xpose.msra.mxu0 0.0
  %4783 = vmatprep.subr.mxu0 0.0
  %4784 = vmatpush1.xpose.msra.mxu0 0.0
  %4785 = vmatprep.subr.mxu0 0.0
  %4786 = vmatpush1.xpose.msra.mxu0 0.0
  %4787 = vmatprep.subr.mxu0 0.0
  %4788 = vmatpush1.xpose.msra.mxu0 0.0
  %4789 = vmatprep.subr.mxu0 0.0
  %4790 = vmatpush1.xpose.msra.mxu0 0.0
  %4791 = vmatprep.subr.mxu0 0.0
  %4792 = vmatpush1.xpose.msra.mxu0 0.0
  %4793 = vmatprep.subr.mxu0 0.0
  %4794 = vmatpush1.xpose.msra.mxu0 0.0
  %4795 = vmatprep.subr.mxu0 0.0
  %4796 = vmatpush1.xpose.msra.mxu0 0.0
  %4797 = vmatprep.subr.mxu0 0.0
  %4798 = vmatpush1.xpose.msra.mxu0 0.0
  %4799 = vmatprep.subr.mxu0 0.0
  %4800 = vmatpush1.xpose.msra.mxu0 0.0
  %4801 = vmatprep.subr.mxu0 0.0
  %4802 = vmatpush1.xpose.msra.mxu0 0.0
  %4803 = vmatprep.subr.mxu0 0.0
  %4804 = vmatpush1.xpose.msra.mxu0 0.0
  %4805 = vmatprep.subr.mxu0 0.0
  %4806 = vmatpush1.xpose.msra.mxu0 0.0
  %4807 = vmatprep.subr.mxu0 0.0
  %4808 = vmatpush1.xpose.msra.mxu0 0.0
  %4809 = vmatprep.subr.mxu0 0.0
  %4810 = vmatpush1.xpose.msra.mxu0 0.0
  %4811 = vmatprep.subr.mxu0 0.0
  %4812 = vmatpush1.xpose.msra.mxu0 0.0
  %4813 = vmatprep.subr.mxu0 0.0
  %4814 = vmatpush1.xpose.msra.mxu0 0.0
  %4815 = vmatprep.subr.mxu0 0.0
  %4816 = vmatpush1.xpose.msra.mxu0 0.0
  %4817 = vmatprep.subr.mxu0 0.0
  %4818 = vmatpush1.xpose.msra.mxu0 0.0
  %4819 = vmatprep.subr.mxu0 0.0
  %4820 = vmatpush1.xpose.msra.mxu0 0.0
  %4821 = vmatprep.subr.mxu0 0.0
  %4822 = vmatpush1.xpose.msra.mxu0 0.0
  %4823 = vmatprep.subr.mxu0 0.0
  %4824 = vmatpush1.xpose.msra.mxu0 0.0
  %4825 = vmatprep.subr.mxu0 0.0
  %4826 = vmatpush1.xpose.msra.mxu0 0.0
  %4827 = vmatprep.mubr.f32.mxu0 0.0
  %4828 = vmatmul.mubr.f32.gmra.mrb[0].mxu0 %v4755
  %v4829 = vpop.f32.mrb[0].mxu0
  %v4830 = vadd.f32 0.0, %v4829
  %v4831 = vpop.f32.mrb[0].mxu0
  %4832 = vmatprep.mubr.f32.mxu0 0.0
  %4833 = vmatmul.mubr.f32.gmra.mrb[0].mxu0 %v4757
  %v4834 = vpop.f32.mrb[0].mxu0
  %v4835 = vadd.f32 0.0, %v4834
  %v4836 = vpop.f32.mrb[0].mxu0
  %4837 = vdwg.mxu0
  %v4838 = vsel %vm2887, %v4830, -1e+30
  %v4839 = vsel %vm2888, %v4835, -1e+30
  %v4840 = vsel %vm2891, %v4838, -inf
  %4841 = vmax.xlane.f32.xlu0 %v4840
  %v4842 = vpop.xlane.xlu0 %4841
  %v4843 = vsel %vm2891, %v4839, -inf
  %4844 = vmax.xlane.f32.xlu0 %v4843
  %v4845 = vpop.xlane.xlu0 %4844
  %v4846 = vsub.f32 %v4838, %v4842
  %v4847 = vsub.f32 %v4839, %v4845
  %v4848 = vmul.f32 %v4846, 1.442695
  %v4849 = vpow.pop %v4848
  %v4850 = vmul.f32 %v4847, 1.442695
  %v4851 = vpow.pop %v4850
  %v4852 = vmul.f32 %v4849, %v27
  %v4853 = vmul.f32 %v4851, %v28
  %v4854 = vsel %vm2891, %v4852, 0.0
  %4855 = vadd.xlane.f32.xlu0 %v4854
  %v4856 = vpop.xlane.xlu0 %4855
  %v4857 = vsel %vm2891, %v4853, 0.0
  %4858 = vadd.xlane.f32.xlu0 %v4857
  %v4859 = vpop.xlane.xlu0 %4858
  %vm4860 = vcmp.gt.f32.partialorder %v4856, 0.0
  %vm4861 = vcmp.gt.f32.partialorder %v4859, 0.0
  %v4862 = vsel %vm4860, %v4856, 1.0
  %v4863 = vsel %vm4861, %v4859, 1.0
  %v4864 = vrcp.pop %v4862
  %v4865 = vmul.f32 %v4852, %v4864
  %v4866 = vrcp.pop %v4863
  %v4867 = vmul.f32 %v4853, %v4866
  %4868 = vrot.lane.b32.xlu0 %v4681, 88
  %v4869 = vpop.permute.xlu0 %4868
  %4870 = vrot.lane.b32.xlu0 %v4684, 88
  %v4871 = vpop.permute.xlu0 %4870
  %4874 = vrot.lane.b32.xlu0 %v4681, 68
  %v4875 = vpop.permute.xlu0 %4874
  %4876 = vrot.lane.b32.xlu0 %v4684, 68
  %v4877 = vpop.permute.xlu0 %4876
  %v4881 = vsel %vm2891, %v4865, 0
  %v4884 = vsel %vm2891, %v4867, 0
  %4886 = vmatprep.subr.mxu0 0.0
  %4887 = vmatpush1.msra.mxu0 %v4869
  %4888 = vmatprep.subr.mxu0 0.0
  %4889 = vmatpush1.msra.mxu0 %v4871
  %4890 = vmatprep.subr.mxu0 0.0
  %4891 = vmatpush1.msra.mxu0 0.0
  %4892 = vmatprep.subr.mxu0 0.0
  %4893 = vmatpush1.msra.mxu0 0.0
  %4894 = vmatprep.subr.mxu0 0.0
  %4895 = vmatpush1.msra.mxu0 0.0
  %4896 = vmatprep.subr.mxu0 0.0
  %4897 = vmatpush1.msra.mxu0 0.0
  %4898 = vmatprep.subr.mxu0 0.0
  %4899 = vmatpush1.msra.mxu0 0.0
  %4900 = vmatprep.subr.mxu0 0.0
  %4901 = vmatpush1.msra.mxu0 0.0
  %4902 = vmatprep.subr.mxu0 0.0
  %4903 = vmatpush1.msra.mxu0 0.0
  %4904 = vmatprep.subr.mxu0 0.0
  %4905 = vmatpush1.msra.mxu0 0.0
  %4906 = vmatprep.subr.mxu0 0.0
  %4907 = vmatpush1.msra.mxu0 0.0
  %4908 = vmatprep.subr.mxu0 0.0
  %4909 = vmatpush1.msra.mxu0 0.0
  %4910 = vmatprep.subr.mxu0 0.0
  %4911 = vmatpush1.msra.mxu0 0.0
  %4912 = vmatprep.subr.mxu0 0.0
  %4913 = vmatpush1.msra.mxu0 0.0
  %4914 = vmatprep.subr.mxu0 0.0
  %4915 = vmatpush1.msra.mxu0 0.0
  %4916 = vmatprep.subr.mxu0 0.0
  %4917 = vmatpush1.msra.mxu0 0.0
  %4918 = vmatprep.subr.mxu0 0.0
  %4919 = vmatpush1.msra.mxu0 0.0
  %4920 = vmatprep.subr.mxu0 0.0
  %4921 = vmatpush1.msra.mxu0 0.0
  %4922 = vmatprep.subr.mxu0 0.0
  %4923 = vmatpush1.msra.mxu0 0.0
  %4924 = vmatprep.subr.mxu0 0.0
  %4925 = vmatpush1.msra.mxu0 0.0
  %4926 = vmatprep.subr.mxu0 0.0
  %4927 = vmatpush1.msra.mxu0 0.0
  %4928 = vmatprep.subr.mxu0 0.0
  %4929 = vmatpush1.msra.mxu0 0.0
  %4930 = vmatprep.subr.mxu0 0.0
  %4931 = vmatpush1.msra.mxu0 0.0
  %4932 = vmatprep.subr.mxu0 0.0
  %4933 = vmatpush1.msra.mxu0 0.0
  %4934 = vmatprep.subr.mxu0 0.0
  %4935 = vmatpush1.msra.mxu0 0.0
  %4936 = vmatprep.subr.mxu0 0.0
  %4937 = vmatpush1.msra.mxu0 0.0
  %4938 = vmatprep.subr.mxu0 0.0
  %4939 = vmatpush1.msra.mxu0 0.0
  %4940 = vmatprep.subr.mxu0 0.0
  %4941 = vmatpush1.msra.mxu0 0.0
  %4942 = vmatprep.subr.mxu0 0.0
  %4943 = vmatpush1.msra.mxu0 0.0
  %4944 = vmatprep.subr.mxu0 0.0
  %4945 = vmatpush1.msra.mxu0 0.0
  %4946 = vmatprep.subr.mxu0 0.0
  %4947 = vmatpush1.msra.mxu0 0.0
  %4948 = vmatprep.subr.mxu0 0.0
  %4949 = vmatpush1.msra.mxu0 0.0
  %4950 = vmatprep.mubr.f32.mxu0 0.0
  %4951 = vmatmul.mubr.f32.gmra.mrb[0].mxu0 %v4881
  %v4952 = vpop.f32.mrb[0].mxu0
  %v4953 = vadd.f32 %v4875, %v4952
  %v4954 = vpop.f32.mrb[0].mxu0
  %4955 = vmatprep.mubr.f32.mxu0 0.0
  %4956 = vmatmul.mubr.f32.gmra.mrb[0].mxu0 %v4884
  %v4957 = vpop.f32.mrb[0].mxu0
  %v4958 = vadd.f32 %v4877, %v4957
  %v4959 = vpop.f32.mrb[0].mxu0
  %4960 = vdwg.mxu0
  %4963 = vrot.lane.b32.xlu0 %v4743, 108
  %v4964 = vpop.permute.xlu0 %4963
  %4965 = vrot.lane.b32.xlu0 %v4746, 108
  %v4966 = vpop.permute.xlu0 %4965
  %v4967 = vsel %vm2803, %v4743, 0
  %v4969 = vsel %vm2803, %v4746, 0
  %v4971 = vsel %vm2803, %v4964, 0
  %v4973 = vsel %vm2803, %v4966, 0
  %4975 = vmatprep.subr.mxu0 0.0
  %4976 = vmatpush1.xpose.msra.mxu0 %v4971
  %4977 = vmatprep.subr.mxu0 0.0
  %4978 = vmatpush1.xpose.msra.mxu0 %v4973
  %4979 = vmatprep.subr.mxu0 0.0
  %4980 = vmatpush1.xpose.msra.mxu0 0.0
  %4981 = vmatprep.subr.mxu0 0.0
  %4982 = vmatpush1.xpose.msra.mxu0 0.0
  %4983 = vmatprep.subr.mxu0 0.0
  %4984 = vmatpush1.xpose.msra.mxu0 0.0
  %4985 = vmatprep.subr.mxu0 0.0
  %4986 = vmatpush1.xpose.msra.mxu0 0.0
  %4987 = vmatprep.subr.mxu0 0.0
  %4988 = vmatpush1.xpose.msra.mxu0 0.0
  %4989 = vmatprep.subr.mxu0 0.0
  %4990 = vmatpush1.xpose.msra.mxu0 0.0
  %4991 = vmatprep.subr.mxu0 0.0
  %4992 = vmatpush1.xpose.msra.mxu0 0.0
  %4993 = vmatprep.subr.mxu0 0.0
  %4994 = vmatpush1.xpose.msra.mxu0 0.0
  %4995 = vmatprep.subr.mxu0 0.0
  %4996 = vmatpush1.xpose.msra.mxu0 0.0
  %4997 = vmatprep.subr.mxu0 0.0
  %4998 = vmatpush1.xpose.msra.mxu0 0.0
  %4999 = vmatprep.subr.mxu0 0.0
  %5000 = vmatpush1.xpose.msra.mxu0 0.0
  %5001 = vmatprep.subr.mxu0 0.0
  %5002 = vmatpush1.xpose.msra.mxu0 0.0
  %5003 = vmatprep.subr.mxu0 0.0
  %5004 = vmatpush1.xpose.msra.mxu0 0.0
  %5005 = vmatprep.subr.mxu0 0.0
  %5006 = vmatpush1.xpose.msra.mxu0 0.0
  %5007 = vmatprep.subr.mxu0 0.0
  %5008 = vmatpush1.xpose.msra.mxu0 0.0
  %5009 = vmatprep.subr.mxu0 0.0
  %5010 = vmatpush1.xpose.msra.mxu0 0.0
  %5011 = vmatprep.subr.mxu0 0.0
  %5012 = vmatpush1.xpose.msra.mxu0 0.0
  %5013 = vmatprep.subr.mxu0 0.0
  %5014 = vmatpush1.xpose.msra.mxu0 0.0
  %5015 = vmatprep.subr.mxu0 0.0
  %5016 = vmatpush1.xpose.msra.mxu0 0.0
  %5017 = vmatprep.subr.mxu0 0.0
  %5018 = vmatpush1.xpose.msra.mxu0 0.0
  %5019 = vmatprep.subr.mxu0 0.0
  %5020 = vmatpush1.xpose.msra.mxu0 0.0
  %5021 = vmatprep.subr.mxu0 0.0
  %5022 = vmatpush1.xpose.msra.mxu0 0.0
  %5023 = vmatprep.subr.mxu0 0.0
  %5024 = vmatpush1.xpose.msra.mxu0 0.0
  %5025 = vmatprep.subr.mxu0 0.0
  %5026 = vmatpush1.xpose.msra.mxu0 0.0
  %5027 = vmatprep.subr.mxu0 0.0
  %5028 = vmatpush1.xpose.msra.mxu0 0.0
  %5029 = vmatprep.subr.mxu0 0.0
  %5030 = vmatpush1.xpose.msra.mxu0 0.0
  %5031 = vmatprep.subr.mxu0 0.0
  %5032 = vmatpush1.xpose.msra.mxu0 0.0
  %5033 = vmatprep.subr.mxu0 0.0
  %5034 = vmatpush1.xpose.msra.mxu0 0.0
  %5035 = vmatprep.subr.mxu0 0.0
  %5036 = vmatpush1.xpose.msra.mxu0 0.0
  %5037 = vmatprep.subr.mxu0 0.0
  %5038 = vmatpush1.xpose.msra.mxu0 0.0
  %5039 = vmatprep.mubr.f32.mxu0 0.0
  %5040 = vmatmul.mubr.f32.gmra.mrb[0].mxu0 %v4967
  %v5041 = vpop.f32.mrb[0].mxu0
  %v5042 = vadd.f32 0.0, %v5041
  %v5043 = vpop.f32.mrb[0].mxu0
  %5044 = vmatprep.mubr.f32.mxu0 0.0
  %5045 = vmatmul.mubr.f32.gmra.mrb[0].mxu0 %v4969
  %v5046 = vpop.f32.mrb[0].mxu0
  %v5047 = vadd.f32 0.0, %v5046
  %v5048 = vpop.f32.mrb[0].mxu0
  %5049 = vdwg.mxu0
  %v5050 = vsel %vm3102, %v5042, -1e+30
  %v5051 = vsel %vm3103, %v5047, -1e+30
  %v5052 = vsel %vm2891, %v5050, -inf
  %5053 = vmax.xlane.f32.xlu0 %v5052
  %v5054 = vpop.xlane.xlu0 %5053
  %v5055 = vsel %vm2891, %v5051, -inf
  %5056 = vmax.xlane.f32.xlu0 %v5055
  %v5057 = vpop.xlane.xlu0 %5056
  %v5058 = vsub.f32 %v5050, %v5054
  %v5059 = vsub.f32 %v5051, %v5057
  %v5060 = vmul.f32 %v5058, 1.442695
  %v5061 = vpow.pop %v5060
  %v5062 = vmul.f32 %v5059, 1.442695
  %v5063 = vpow.pop %v5062
  %v5064 = vmul.f32 %v5061, %v29
  %v5065 = vmul.f32 %v5063, %v30
  %v5066 = vsel %vm2891, %v5064, 0.0
  %5067 = vadd.xlane.f32.xlu0 %v5066
  %v5068 = vpop.xlane.xlu0 %5067
  %v5069 = vsel %vm2891, %v5065, 0.0
  %5070 = vadd.xlane.f32.xlu0 %v5069
  %v5071 = vpop.xlane.xlu0 %5070
  %vm5072 = vcmp.gt.f32.partialorder %v5068, 0.0
  %vm5073 = vcmp.gt.f32.partialorder %v5071, 0.0
  %v5074 = vsel %vm5072, %v5068, 1.0
  %v5075 = vsel %vm5073, %v5071, 1.0
  %v5076 = vrcp.pop %v5074
  %v5077 = vmul.f32 %v5064, %v5076
  %v5078 = vrcp.pop %v5075
  %v5079 = vmul.f32 %v5065, %v5078
  %5080 = vrot.lane.b32.xlu0 %v4743, 88
  %v5081 = vpop.permute.xlu0 %5080
  %5082 = vrot.lane.b32.xlu0 %v4746, 88
  %v5083 = vpop.permute.xlu0 %5082
  %5086 = vrot.lane.b32.xlu0 %v4743, 68
  %v5087 = vpop.permute.xlu0 %5086
  %5088 = vrot.lane.b32.xlu0 %v4746, 68
  %v5089 = vpop.permute.xlu0 %5088
  %v5093 = vsel %vm2891, %v5077, 0
  %v5096 = vsel %vm2891, %v5079, 0
  %5098 = vmatprep.subr.mxu0 0.0
  %5099 = vmatpush1.msra.mxu0 %v5081
  %5100 = vmatprep.subr.mxu0 0.0
  %5101 = vmatpush1.msra.mxu0 %v5083
  %5102 = vmatprep.subr.mxu0 0.0
  %5103 = vmatpush1.msra.mxu0 0.0
  %5104 = vmatprep.subr.mxu0 0.0
  %5105 = vmatpush1.msra.mxu0 0.0
  %5106 = vmatprep.subr.mxu0 0.0
  %5107 = vmatpush1.msra.mxu0 0.0
  %5108 = vmatprep.subr.mxu0 0.0
  %5109 = vmatpush1.msra.mxu0 0.0
  %5110 = vmatprep.subr.mxu0 0.0
  %5111 = vmatpush1.msra.mxu0 0.0
  %5112 = vmatprep.subr.mxu0 0.0
  %5113 = vmatpush1.msra.mxu0 0.0
  %5114 = vmatprep.subr.mxu0 0.0
  %5115 = vmatpush1.msra.mxu0 0.0
  %5116 = vmatprep.subr.mxu0 0.0
  %5117 = vmatpush1.msra.mxu0 0.0
  %5118 = vmatprep.subr.mxu0 0.0
  %5119 = vmatpush1.msra.mxu0 0.0
  %5120 = vmatprep.subr.mxu0 0.0
  %5121 = vmatpush1.msra.mxu0 0.0
  %5122 = vmatprep.subr.mxu0 0.0
  %5123 = vmatpush1.msra.mxu0 0.0
  %5124 = vmatprep.subr.mxu0 0.0
  %5125 = vmatpush1.msra.mxu0 0.0
  %5126 = vmatprep.subr.mxu0 0.0
  %5127 = vmatpush1.msra.mxu0 0.0
  %5128 = vmatprep.subr.mxu0 0.0
  %5129 = vmatpush1.msra.mxu0 0.0
  %5130 = vmatprep.subr.mxu0 0.0
  %5131 = vmatpush1.msra.mxu0 0.0
  %5132 = vmatprep.subr.mxu0 0.0
  %5133 = vmatpush1.msra.mxu0 0.0
  %5134 = vmatprep.subr.mxu0 0.0
  %5135 = vmatpush1.msra.mxu0 0.0
  %5136 = vmatprep.subr.mxu0 0.0
  %5137 = vmatpush1.msra.mxu0 0.0
  %5138 = vmatprep.subr.mxu0 0.0
  %5139 = vmatpush1.msra.mxu0 0.0
  %5140 = vmatprep.subr.mxu0 0.0
  %5141 = vmatpush1.msra.mxu0 0.0
  %5142 = vmatprep.subr.mxu0 0.0
  %5143 = vmatpush1.msra.mxu0 0.0
  %5144 = vmatprep.subr.mxu0 0.0
  %5145 = vmatpush1.msra.mxu0 0.0
  %5146 = vmatprep.subr.mxu0 0.0
  %5147 = vmatpush1.msra.mxu0 0.0
  %5148 = vmatprep.subr.mxu0 0.0
  %5149 = vmatpush1.msra.mxu0 0.0
  %5150 = vmatprep.subr.mxu0 0.0
  %5151 = vmatpush1.msra.mxu0 0.0
  %5152 = vmatprep.subr.mxu0 0.0
  %5153 = vmatpush1.msra.mxu0 0.0
  %5154 = vmatprep.subr.mxu0 0.0
  %5155 = vmatpush1.msra.mxu0 0.0
  %5156 = vmatprep.subr.mxu0 0.0
  %5157 = vmatpush1.msra.mxu0 0.0
  %5158 = vmatprep.subr.mxu0 0.0
  %5159 = vmatpush1.msra.mxu0 0.0
  %5160 = vmatprep.subr.mxu0 0.0
  %5161 = vmatpush1.msra.mxu0 0.0
  %5162 = vmatprep.mubr.f32.mxu0 0.0
  %5163 = vmatmul.mubr.f32.gmra.mrb[0].mxu0 %v5093
  %v5164 = vpop.f32.mrb[0].mxu0
  %v5165 = vadd.f32 %v5087, %v5164
  %v5166 = vpop.f32.mrb[0].mxu0
  %5167 = vmatprep.mubr.f32.mxu0 0.0
  %5168 = vmatmul.mubr.f32.gmra.mrb[0].mxu0 %v5096
  %v5169 = vpop.f32.mrb[0].mxu0
  %v5170 = vadd.f32 %v5089, %v5169
  %v5171 = vpop.f32.mrb[0].mxu0
  %5172 = vdwg.mxu0
  %v5173 = vadd.f32 %v4953, %v5165
  %v5174 = vadd.f32 %v4958, %v5170
  %vm5175 = vcmp.gt.f32.partialorder %v5173, 0.0
  %vm5176 = vcmp.gt.f32.partialorder %v5174, 0.0
  %v5177 = vmul.f32 %v5173, 0.01
  %v5178 = vmul.f32 %v5174, 0.01
  %v5179 = vsel %vm5175, %v5173, %v5177
  %v5180 = vsel %vm5176, %v5174, %v5178
  %s5181 = scalar_lea.vmem %s5, 72
  %v5182 = vld [vmem:[%s5181] sm:$0xff]
  %v5183 = vld [vmem:[%s5181 + $0x8] sm:$0xff]
  %v5184 = vld [vmem:[%s5181 + $0x10] sm:$0xf]
  %v5186 = vsel %vm2803, %v5179, 0
  %v5189 = vsel %vm2803, %v5180, 0
  %v5192 = vsel %vm3808, %v5184, 0
  %5194 = vmatprep.subr.mxu0 0.0
  %5195 = vmatpush1.msra.mxu0 %v5182
  %5196 = vmatprep.subr.mxu0 0.0
  %5197 = vmatpush1.msra.mxu0 %v5183
  %5198 = vmatprep.subr.mxu0 0.0
  %5199 = vmatpush1.msra.mxu0 %v5192
  %5200 = vmatprep.subr.mxu0 0.0
  %5201 = vmatpush1.msra.mxu0 0.0
  %5202 = vmatprep.subr.mxu0 0.0
  %5203 = vmatpush1.msra.mxu0 0.0
  %5204 = vmatprep.subr.mxu0 0.0
  %5205 = vmatpush1.msra.mxu0 0.0
  %5206 = vmatprep.subr.mxu0 0.0
  %5207 = vmatpush1.msra.mxu0 0.0
  %5208 = vmatprep.subr.mxu0 0.0
  %5209 = vmatpush1.msra.mxu0 0.0
  %5210 = vmatprep.subr.mxu0 0.0
  %5211 = vmatpush1.msra.mxu0 0.0
  %5212 = vmatprep.subr.mxu0 0.0
  %5213 = vmatpush1.msra.mxu0 0.0
  %5214 = vmatprep.subr.mxu0 0.0
  %5215 = vmatpush1.msra.mxu0 0.0
  %5216 = vmatprep.subr.mxu0 0.0
  %5217 = vmatpush1.msra.mxu0 0.0
  %5218 = vmatprep.subr.mxu0 0.0
  %5219 = vmatpush1.msra.mxu0 0.0
  %5220 = vmatprep.subr.mxu0 0.0
  %5221 = vmatpush1.msra.mxu0 0.0
  %5222 = vmatprep.subr.mxu0 0.0
  %5223 = vmatpush1.msra.mxu0 0.0
  %5224 = vmatprep.subr.mxu0 0.0
  %5225 = vmatpush1.msra.mxu0 0.0
  %5226 = vmatprep.subr.mxu0 0.0
  %5227 = vmatpush1.msra.mxu0 0.0
  %5228 = vmatprep.subr.mxu0 0.0
  %5229 = vmatpush1.msra.mxu0 0.0
  %5230 = vmatprep.subr.mxu0 0.0
  %5231 = vmatpush1.msra.mxu0 0.0
  %5232 = vmatprep.subr.mxu0 0.0
  %5233 = vmatpush1.msra.mxu0 0.0
  %5234 = vmatprep.subr.mxu0 0.0
  %5235 = vmatpush1.msra.mxu0 0.0
  %5236 = vmatprep.subr.mxu0 0.0
  %5237 = vmatpush1.msra.mxu0 0.0
  %5238 = vmatprep.subr.mxu0 0.0
  %5239 = vmatpush1.msra.mxu0 0.0
  %5240 = vmatprep.subr.mxu0 0.0
  %5241 = vmatpush1.msra.mxu0 0.0
  %5242 = vmatprep.subr.mxu0 0.0
  %5243 = vmatpush1.msra.mxu0 0.0
  %5244 = vmatprep.subr.mxu0 0.0
  %5245 = vmatpush1.msra.mxu0 0.0
  %5246 = vmatprep.subr.mxu0 0.0
  %5247 = vmatpush1.msra.mxu0 0.0
  %5248 = vmatprep.subr.mxu0 0.0
  %5249 = vmatpush1.msra.mxu0 0.0
  %5250 = vmatprep.subr.mxu0 0.0
  %5251 = vmatpush1.msra.mxu0 0.0
  %5252 = vmatprep.subr.mxu0 0.0
  %5253 = vmatpush1.msra.mxu0 0.0
  %5254 = vmatprep.subr.mxu0 0.0
  %5255 = vmatpush1.msra.mxu0 0.0
  %5256 = vmatprep.subr.mxu0 0.0
  %5257 = vmatpush1.msra.mxu0 0.0
  %5258 = vmatprep.mubr.f32.mxu0 0.0
  %5259 = vmatmul.mubr.f32.gmra.mrb[0].mxu0 %v5186
  %v5260 = vpop.f32.mrb[0].mxu0
  %v5261 = vadd.f32 0.0, %v5260
  %v5262 = vpop.f32.mrb[0].mxu0
  %5263 = vmatprep.mubr.f32.mxu0 0.0
  %5264 = vmatmul.mubr.f32.gmra.mrb[0].mxu0 %v5189
  %v5265 = vpop.f32.mrb[0].mxu0
  %v5266 = vadd.f32 0.0, %v5265
  %v5267 = vpop.f32.mrb[0].mxu0
  %5268 = vdwg.mxu0
  %v5269 = vadd.f32 %v4619, %v5261
  %v5270 = vadd.f32 %v4620, %v5266
  %v5271 = vld [vmem:[%s6 + $0x8] sm:$0x1]
  %v5272 = vlaneseq
  %v5273 = vshrl.u32 %v5272, 7
  %v5274 = vsub.s32 0, %v5273
  %v5275 = vrot.slane %v5271, %v5274
  %v5276 = vadd.f32 %v5269, %v5275
  %v5277 = vadd.f32 %v5270, %v5275
  %vm5278 = vcmask 15360
  %5279 = vst.msk [vmem:[%s7] sm:$0xff] %vm5278, %v5276
  %5280 = vst.msk [vmem:[%s7 + $0x8] sm:$0xff] %vm5278, %v5277
  // Predicated region
  $region30: #{hpg_forward.1} parent=0 // pred_check
    _
  $region31: #{hpg_forward.1} parent=0 // pred_check_branch
    %5282 = sbr.rel (0) target = $region33
  $region32: #{hpg_forward.1} parent=0 // pred_region
    _
  $region33: #{hpg_forward.1} parent=0 // pred_fallthru
    _
  // Predicated region
  $region34: #{hpg_forward.1} parent=0 // pred_check
    _
  $region35: #{hpg_forward.1} parent=0 // pred_check_branch
    %5284 = sbr.rel (0) target = $region37
  $region36: #{hpg_forward.1} parent=0 // pred_region
    _
  $region37: #{hpg_forward.1} parent=0 // pred_fallthru
    _

</llo_original>
